<compile_context>
chip_gen: v7x
topology: tpu7x:2x2x1
jax: 0.10.0
libtpu: 0.0.40
codegen_flags: <defaults>
</compile_context>

<pallas_src>
import math

import jax
import jax.numpy as jnp
from jax.experimental import pallas as pl
from jax.experimental.pallas import tpu as pltpu


# ------------------------------- kernel body ---------------------------------
def _make_kernel(offsets, TR, Wo, Cout, apply_gdn):
    """One grid step: a TR-row tile of a 5x5/stride-2 conv (+bias) [+ fused GDN].

    offsets: static tuple of (row, col) offsets of the packed "super taps";
             each tap is a (TR*Wo, KL) x (KL, Cout) MXU dot with bf16 operands
             and f32 accumulation.
    """

    def kernel(xs_ref, wg_ref, b_ref, *rest):
        if apply_gdn:
            g_ref, beta_ref, o_ref = rest
        else:
            (o_ref,) = rest

        KL = xs_ref.shape[-1]
        acc = jnp.zeros((TR * Wo, Cout), jnp.float32)
        for g, (a, c) in enumerate(offsets):
            # Contiguous lane-dense slab: last dim is the full packed K (= KL).
            patch = xs_ref[0, 0, a:a + TR, c:c + Wo, :].reshape(TR * Wo, KL)
            acc = acc + jnp.dot(patch, wg_ref[g],
                                preferred_element_type=jnp.float32)

        acc = acc + b_ref[...]                      # (1, Cout) broadcast, f32

        if apply_gdn:
            norm = jnp.dot((acc * acc).astype(jnp.bfloat16), g_ref[...],
                           preferred_element_type=jnp.float32) + beta_ref[...]
            acc = acc * jax.lax.rsqrt(norm)

        o_ref[...] = acc[None, None, :, :].astype(o_ref.dtype)

    return kernel


# ------------------------------ layer wrapper --------------------------------
def conv5x5_s2_gdn(x, w, b, gamma_t=None, beta=None, *,
                   out_dtype=jnp.bfloat16, tile_pixels=256):
    """y = [GDN](conv5x5, stride 2, pad 2)(x) + b.  x is NHWC."""
    N, H, W, Cin = x.shape
    KH, KW, _, Cout = w.shape
    assert (KH, KW) == (5, 5) and H % 2 == 0 and W % 2 == 0
    Ho, Wo = H // 2, W // 2
    apply_gdn = gamma_t is not None

    xb = x.astype(jnp.bfloat16)
    xp = jnp.pad(xb, ((0, 0), (2, 2), (2, 2), (0, 0)))

    if 4 * Cin < 128:
        # ---- layer-1 style: wrapper im2col, single K = KH*KW*Cin dot (pad->128) ----
        cols = [xp[:, kh:kh + 2 * Ho:2, kw:kw + 2 * Wo:2, :]
                for kh in range(KH) for kw in range(KW)]
        xs = jnp.concatenate(cols, axis=-1)                      # (N, Ho, Wo, 25*Cin)
        K = KH * KW * Cin
        KL = ((K + 127) // 128) * 128
        xs = jnp.pad(xs, ((0, 0), (0, 0), (0, 0), (0, KL - K)))
        wg = jnp.pad(w.reshape(K, Cout), ((0, KL - K), (0, 0)))[None]   # (1, KL, Cout)
        offsets = ((0, 0),)
        halo = 0
    else:
        # ---- layers 2-4: stride-2 parity planes packed into the channel axis ----
        # xs[n, i, j, (ph*2+pw)*Cin + c] = xpad[n, 2i+ph, 2j+pw, c]
        Hh, Wh = Ho + 2, Wo + 2
        xs = xp.reshape(N, Hh, 2, Wh, 2, Cin).transpose(0, 1, 3, 2, 4, 5)
        xs = xs.reshape(N, Hh, Wh, 4 * Cin)
        KL = 4 * Cin
        # 5x5 kernel -> zero-padded 6x6 -> 3x3 grid of (2x2 taps x Cin): 9 dots, K=4*Cin.
        wpad = jnp.pad(w, ((0, 1), (0, 1), (0, 0), (0, 0)))      # (6, 6, Cin, Cout)
        wg = wpad.reshape(3, 2, 3, 2, Cin, Cout).transpose(0, 2, 1, 3, 4, 5)
        wg = wg.reshape(9, 4 * Cin, Cout)
        offsets = tuple((a, c) for a in range(3) for c in range(3))
        halo = 2
        # TODO(synk): fold this parity packing into the previous layer's output store
        # so the packed activation is never materialized in HBM.

    Ws = xs.shape[2]

    # ---- output-row tiling (grid axis 1); halo rows duplicated by a cheap gather ----
    TR = max(1, min(Ho, tile_pixels // max(Wo, 1)))
    RT = -(-Ho // TR)                               # ceil(Ho / TR)
    Hneed = RT * TR + halo
    xs = jnp.pad(xs, ((0, 0), (0, Hneed - xs.shape[1]), (0, 0), (0, 0)))
    row_idx = jnp.arange(RT)[:, None] * TR + jnp.arange(TR + halo)[None, :]
    xs_t = xs[:, row_idx]                           # (N, RT, TR+halo, Ws, KL)

    wg = wg.astype(jnp.bfloat16)
    b2 = b.reshape(1, Cout).astype(jnp.float32)

    in_specs = [
        pl.BlockSpec((1, 1, TR + halo, Ws, KL), lambda n, r: (n, r, 0, 0, 0)),
        pl.BlockSpec((len(offsets), KL, Cout), lambda n, r: (0, 0, 0)),
        pl.BlockSpec((1, Cout), lambda n, r: (0, 0)),
    ]
    args = [xs_t, wg, b2]
    if apply_gdn:
        in_specs += [pl.BlockSpec((Cout, Cout), lambda n, r: (0, 0)),
                     pl.BlockSpec((1, Cout), lambda n, r: (0, 0))]
        args += [gamma_t.astype(jnp.bfloat16),
                 beta.reshape(1, Cout).astype(jnp.float32)]

    kernel = _make_kernel(offsets, TR, Wo, Cout, apply_gdn)
    out = pl.pallas_call(
        kernel,
        out_shape=jax.ShapeDtypeStruct((N, RT, TR * Wo, Cout), out_dtype),
        grid=(N, RT),
        in_specs=in_specs,
        out_specs=pl.BlockSpec((1, 1, TR * Wo, Cout), lambda n, r: (n, r, 0, 0)),
        compiler_params=pltpu.CompilerParams(
            dimension_semantics=("parallel", "parallel"),
            vmem_limit_bytes=48 * 1024 * 1024),
    )(*args)

    out = out.reshape(N, RT * TR, Wo, Cout)[:, :Ho]   # drop row padding (free reshape)
    return out


def rgb_encoder_forward(params, x):
    x = conv5x5_s2_gdn(x, params["w1"], params["b1"], params["g1"], params["beta1"])
    x = conv5x5_s2_gdn(x, params["w2"], params["b2"], params["g2"], params["beta2"])
    x = conv5x5_s2_gdn(x, params["w3"], params["b3"], params["g3"], params["beta3"])
    x = conv5x5_s2_gdn(x, params["w4"], params["b4"], out_dtype=jnp.float32)
    return x


# ----------------------- deterministic parameter init -----------------------
def init_params(key, in_ch=3, ch_n=32, ch_m=64):
    ks = jax.random.split(key, 16)

    def conv_init(kw_, kb_, cin, cout):
        fan_in = cin * 5 * 5
        bound = 1.0 / math.sqrt(fan_in)
        w = jax.random.uniform(kw_, (5, 5, cin, cout), jnp.float32, -bound, bound)
        b = jax.random.uniform(kb_, (cout,), jnp.float32, -bound, bound)
        return w, b

    def gdn_init(kg, kb, ch):
        # canonical GDN init (gamma ~ 0.1*I, beta ~ 1), kept strictly positive.
        gamma = (0.1 * jnp.eye(ch, dtype=jnp.float32)
                 + 0.001 * jnp.abs(jax.random.normal(kg, (ch, ch), jnp.float32)))
        beta = 1.0 + 0.01 * jnp.abs(jax.random.normal(kb, (ch,), jnp.float32))
        return gamma.T, beta   # pass gamma transposed: [c_in, c_out]

    p = {}
    p["w1"], p["b1"] = conv_init(ks[0], ks[1], in_ch, ch_n)
    p["g1"], p["beta1"] = gdn_init(ks[2], ks[3], ch_n)
    p["w2"], p["b2"] = conv_init(ks[4], ks[5], ch_n, ch_n)
    p["g2"], p["beta2"] = gdn_init(ks[6], ks[7], ch_n)
    p["w3"], p["b3"] = conv_init(ks[8], ks[9], ch_n, ch_n)
    p["g3"], p["beta3"] = gdn_init(ks[10], ks[11], ch_n)
    p["w4"], p["b4"] = conv_init(ks[12], ks[13], ch_n, ch_m)
    return p


# --------------------------- pure-JAX f32 reference ---------------------------
def _ref_conv(x, w, b):
    y = jax.lax.conv_general_dilated(
        x, w, window_strides=(2, 2), padding=((2, 2), (2, 2)),
        dimension_numbers=("NHWC", "HWIO", "NHWC"))
    return y + b


def _ref_gdn(x, gamma_t, beta):
    norm = jnp.einsum("nhwc,co->nhwo", x * x, gamma_t) + beta
    return x / jnp.sqrt(norm)


def ref_forward(params, x):
    y = _ref_gdn(_ref_conv(x, params["w1"], params["b1"]), params["g1"], params["beta1"])
    y = _ref_gdn(_ref_conv(y, params["w2"], params["b2"]), params["g2"], params["beta2"])
    y = _ref_gdn(_ref_conv(y, params["w3"], params["b3"]), params["g3"], params["beta3"])
    y = _ref_conv(y, params["w4"], params["b4"])
    return y


if __name__ == "__main__":
    key = jax.random.PRNGKey(0)
    kx, kp = jax.random.split(key)

    # small shapes consistent with the module: batch=2, RGB 16x16 (NHWC),
    # out_channel_N scaled to 32, out_channel_M scaled to 64.
    x = jax.random.normal(kx, (2, 16, 16, 3), jnp.float32)
    params = init_params(kp, in_ch=3, ch_n=32, ch_m=64)

    fwd = jax.jit(rgb_encoder_forward)
    out = jax.block_until_ready(fwd(params, x))
    assert out.shape == (2, 1, 1, 64), out.shape

    ref = ref_forward(params, x)
    max_diff = float(jnp.max(jnp.abs(out - ref)))
    # bf16 MXU operands / bf16 inter-layer activations -> loosened tolerance vs f32 ref.
    assert jnp.allclose(out, ref, atol=2e-2, rtol=2e-2), f"max diff {max_diff}"

    print("KERNEL_OK")
</pallas_src>

<mosaic_0001>
module attributes {stable_mosaic.version = 11 : i64} {
  func.func @kernel(%arg0: i32, %arg1: i32, %arg2: memref<1x1x8x8x128xbf16, #tpu.memory_space<vmem>>, %arg3: memref<1x128x32xbf16, #tpu.memory_space<vmem>>, %arg4: memref<1x32xf32, #tpu.memory_space<vmem>>, %arg5: memref<32x32xbf16, #tpu.memory_space<vmem>>, %arg6: memref<1x32xf32, #tpu.memory_space<vmem>>, %arg7: memref<1x1x64x32xbf16, #tpu.memory_space<vmem>>) attributes {dimension_semantics = [#tpu.dimension_semantics<parallel>, #tpu.dimension_semantics<parallel>], iteration_bounds = array<i64: 2, 1>, scalar_prefetch = 0 : i64, scratch_operands = 0 : i64, tpu.core_type = #tpu.core_type<tc>, window_params = [{transform_indices = @transform_0, window_bounds = array<i64: 1, 1, 8, 8, 128>}, {pipeline_mode = #tpu.pipeline_mode<synchronous>, transform_indices = @transform_1, window_bounds = array<i64: 1, 128, 32>}, {pipeline_mode = #tpu.pipeline_mode<synchronous>, transform_indices = @transform_2, window_bounds = array<i64: 1, 32>}, {pipeline_mode = #tpu.pipeline_mode<synchronous>, transform_indices = @transform_3, window_bounds = array<i64: 32, 32>}, {pipeline_mode = #tpu.pipeline_mode<synchronous>, transform_indices = @transform_4, window_bounds = array<i64: 1, 32>}, {transform_indices = @transform_5, window_bounds = array<i64: 1, 1, 64, 32>}]} {
    %cst = arith.constant 0.000000e+00 : f32
    %0 = vector.broadcast %cst : f32 to vector<64x32xf32>
    %c0 = arith.constant 0 : index
    %c0_0 = arith.constant 0 : index
    %c0_1 = arith.constant 0 : index
    %c0_2 = arith.constant 0 : index
    %c0_3 = arith.constant 0 : index
    %1 = vector.load %arg2[%c0, %c0_0, %c0_1, %c0_2, %c0_3] : memref<1x1x8x8x128xbf16, #tpu.memory_space<vmem>>, vector<1x1x8x8x128xbf16>
    %2 = vector.shape_cast %1 : vector<1x1x8x8x128xbf16> to vector<8x8x128xbf16>
    %3 = vector.shape_cast %2 : vector<8x8x128xbf16> to vector<64x128xbf16>
    %c0_4 = arith.constant 0 : index
    %c0_5 = arith.constant 0 : index
    %c0_6 = arith.constant 0 : index
    %4 = vector.load %arg3[%c0_4, %c0_5, %c0_6] : memref<1x128x32xbf16, #tpu.memory_space<vmem>>, vector<1x128x32xbf16>
    %5 = vector.shape_cast %4 : vector<1x128x32xbf16> to vector<128x32xbf16>
    %cst_7 = arith.constant dense<0.000000e+00> : vector<64x32xf32>
    %6 = tpu.matmul %3, %5, %cst_7 {dimension_numbers = #tpu.dot_dimension_numbers<[1], [0], [0], [1], [0, 0, 1, 1], [], []>} : vector<64x128xbf16>, vector<128x32xbf16>, vector<64x32xf32> -> vector<64x32xf32>
    %7 = arith.addf %0, %6 : vector<64x32xf32>
    %c0_8 = arith.constant 0 : index
    %c0_9 = arith.constant 0 : index
    %8 = vector.load %arg4[%c0_8, %c0_9] : memref<1x32xf32, #tpu.memory_space<vmem>>, vector<1x32xf32>
    %9 = vector.broadcast %8 : vector<1x32xf32> to vector<64x32xf32>
    %10 = arith.addf %7, %9 : vector<64x32xf32>
    %11 = arith.mulf %10, %10 : vector<64x32xf32>
    %12 = arith.truncf %11 : vector<64x32xf32> to vector<64x32xbf16>
    %c0_10 = arith.constant 0 : index
    %c0_11 = arith.constant 0 : index
    %13 = vector.load %arg5[%c0_10, %c0_11] : memref<32x32xbf16, #tpu.memory_space<vmem>>, vector<32x32xbf16>
    %cst_12 = arith.constant dense<0.000000e+00> : vector<64x32xf32>
    %14 = tpu.matmul %12, %13, %cst_12 {dimension_numbers = #tpu.dot_dimension_numbers<[1], [0], [0], [1], [0, 0, 1, 1], [], []>} : vector<64x32xbf16>, vector<32x32xbf16>, vector<64x32xf32> -> vector<64x32xf32>
    %c0_13 = arith.constant 0 : index
    %c0_14 = arith.constant 0 : index
    %15 = vector.load %arg6[%c0_13, %c0_14] : memref<1x32xf32, #tpu.memory_space<vmem>>, vector<1x32xf32>
    %16 = vector.broadcast %15 : vector<1x32xf32> to vector<64x32xf32>
    %17 = arith.addf %14, %16 : vector<64x32xf32>
    %18 = math.rsqrt %17 : vector<64x32xf32>
    %19 = arith.mulf %10, %18 : vector<64x32xf32>
    %20 = vector.shape_cast %19 : vector<64x32xf32> to vector<1x1x64x32xf32>
    %21 = arith.truncf %20 : vector<1x1x64x32xf32> to vector<1x1x64x32xbf16>
    %c0_15 = arith.constant 0 : index
    %c0_16 = arith.constant 0 : index
    %c0_17 = arith.constant 0 : index
    %c0_18 = arith.constant 0 : index
    %22 = vector.load %arg7[%c0_15, %c0_16, %c0_17, %c0_18] : memref<1x1x64x32xbf16, #tpu.memory_space<vmem>>, vector<1x1x64x32xbf16>
    tpu.vector_store %arg7[%c0_15, %c0_16, %c0_17, %c0_18], %21 {strides = array<i32>} : memref<1x1x64x32xbf16, #tpu.memory_space<vmem>>, vector<1x1x64x32xbf16>,
    return
  }
  func.func @transform_0(%arg0: i32, %arg1: i32) -> (i32, i32, i32, i32, i32) {
    %c0_i32 = arith.constant 0 : i32
    %c0_i32_0 = arith.constant 0 : i32
    %c0_i32_1 = arith.constant 0 : i32
    %c0_i32_2 = arith.constant 0 : i32
    return %arg0, %arg1, %c0_i32, %c0_i32_0, %c0_i32_1 : i32, i32, i32, i32, i32
  }
  func.func @transform_1(%arg0: i32, %arg1: i32) -> (i32, i32, i32) {
    %c0_i32 = arith.constant 0 : i32
    %c0_i32_0 = arith.constant 0 : i32
    %c0_i32_1 = arith.constant 0 : i32
    %c0_i32_2 = arith.constant 0 : i32
    return %c0_i32, %c0_i32_0, %c0_i32_1 : i32, i32, i32
  }
  func.func @transform_2(%arg0: i32, %arg1: i32) -> (i32, i32) {
    %c0_i32 = arith.constant 0 : i32
    %c0_i32_0 = arith.constant 0 : i32
    %c0_i32_1 = arith.constant 0 : i32
    return %c0_i32, %c0_i32_0 : i32, i32
  }
  func.func @transform_3(%arg0: i32, %arg1: i32) -> (i32, i32) {
    %c0_i32 = arith.constant 0 : i32
    %c0_i32_0 = arith.constant 0 : i32
    %c0_i32_1 = arith.constant 0 : i32
    return %c0_i32, %c0_i32_0 : i32, i32
  }
  func.func @transform_4(%arg0: i32, %arg1: i32) -> (i32, i32) {
    %c0_i32 = arith.constant 0 : i32
    %c0_i32_0 = arith.constant 0 : i32
    %c0_i32_1 = arith.constant 0 : i32
    return %c0_i32, %c0_i32_0 : i32, i32
  }
  func.func @transform_5(%arg0: i32, %arg1: i32) -> (i32, i32, i32, i32) {
    %c0_i32 = arith.constant 0 : i32
    %c0_i32_0 = arith.constant 0 : i32
    %c0_i32_1 = arith.constant 0 : i32
    return %arg0, %arg1, %c0_i32, %c0_i32_0 : i32, i32, i32, i32
  }
}

module attributes {stable_mosaic.version = 11 : i64} {
  func.func @kernel(%arg0: i32, %arg1: i32, %arg2: memref<1x1x6x6x128xbf16, #tpu.memory_space<vmem>>, %arg3: memref<9x128x32xbf16, #tpu.memory_space<vmem>>, %arg4: memref<1x32xf32, #tpu.memory_space<vmem>>, %arg5: memref<32x32xbf16, #tpu.memory_space<vmem>>, %arg6: memref<1x32xf32, #tpu.memory_space<vmem>>, %arg7: memref<1x1x16x32xbf16, #tpu.memory_space<vmem>>) attributes {dimension_semantics = [#tpu.dimension_semantics<parallel>, #tpu.dimension_semantics<parallel>], iteration_bounds = array<i64: 2, 1>, scalar_prefetch = 0 : i64, scratch_operands = 0 : i64, tpu.core_type = #tpu.core_type<tc>, window_params = [{transform_indices = @transform_0, window_bounds = array<i64: 1, 1, 6, 6, 128>}, {pipeline_mode = #tpu.pipeline_mode<synchronous>, transform_indices = @transform_1, window_bounds = array<i64: 9, 128, 32>}, {pipeline_mode = #tpu.pipeline_mode<synchronous>, transform_indices = @transform_2, window_bounds = array<i64: 1, 32>}, {pipeline_mode = #tpu.pipeline_mode<synchronous>, transform_indices = @transform_3, window_bounds = array<i64: 32, 32>}, {pipeline_mode = #tpu.pipeline_mode<synchronous>, transform_indices = @transform_4, window_bounds = array<i64: 1, 32>}, {transform_indices = @transform_5, window_bounds = array<i64: 1, 1, 16, 32>}]} {
    %cst = arith.constant 0.000000e+00 : f32
    %0 = vector.broadcast %cst : f32 to vector<16x32xf32>
    %c0 = arith.constant 0 : index
    %c0_0 = arith.constant 0 : index
    %c0_1 = arith.constant 0 : index
    %c0_2 = arith.constant 0 : index
    %c0_3 = arith.constant 0 : index
    %1 = vector.load %arg2[%c0, %c0_0, %c0_1, %c0_2, %c0_3] : memref<1x1x6x6x128xbf16, #tpu.memory_space<vmem>>, vector<1x1x4x4x128xbf16>
    %2 = vector.shape_cast %1 : vector<1x1x4x4x128xbf16> to vector<4x4x128xbf16>
    %3 = vector.shape_cast %2 : vector<4x4x128xbf16> to vector<16x128xbf16>
    %c0_4 = arith.constant 0 : index
    %c0_5 = arith.constant 0 : index
    %c0_6 = arith.constant 0 : index
    %4 = vector.load %arg3[%c0_4, %c0_5, %c0_6] : memref<9x128x32xbf16, #tpu.memory_space<vmem>>, vector<1x128x32xbf16>
    %5 = vector.shape_cast %4 : vector<1x128x32xbf16> to vector<128x32xbf16>
    %cst_7 = arith.constant dense<0.000000e+00> : vector<16x32xf32>
    %6 = tpu.matmul %3, %5, %cst_7 {dimension_numbers = #tpu.dot_dimension_numbers<[1], [0], [0], [1], [0, 0, 1, 1], [], []>} : vector<16x128xbf16>, vector<128x32xbf16>, vector<16x32xf32> -> vector<16x32xf32>
    %7 = arith.addf %0, %6 : vector<16x32xf32>
    %c0_8 = arith.constant 0 : index
    %c0_9 = arith.constant 0 : index
    %c0_10 = arith.constant 0 : index
    %c1 = arith.constant 1 : index
    %c0_11 = arith.constant 0 : index
    %8 = vector.load %arg2[%c0_8, %c0_9, %c0_10, %c1, %c0_11] : memref<1x1x6x6x128xbf16, #tpu.memory_space<vmem>>, vector<1x1x4x4x128xbf16>
    %9 = vector.shape_cast %8 : vector<1x1x4x4x128xbf16> to vector<4x4x128xbf16>
    %10 = vector.shape_cast %9 : vector<4x4x128xbf16> to vector<16x128xbf16>
    %c1_12 = arith.constant 1 : index
    %c0_13 = arith.constant 0 : index
    %c0_14 = arith.constant 0 : index
    %11 = vector.load %arg3[%c1_12, %c0_13, %c0_14] : memref<9x128x32xbf16, #tpu.memory_space<vmem>>, vector<1x128x32xbf16>
    %12 = vector.shape_cast %11 : vector<1x128x32xbf16> to vector<128x32xbf16>
    %cst_15 = arith.constant dense<0.000000e+00> : vector<16x32xf32>
    %13 = tpu.matmul %10, %12, %cst_15 {dimension_numbers = #tpu.dot_dimension_numbers<[1], [0], [0], [1], [0, 0, 1, 1], [], []>} : vector<16x128xbf16>, vector<128x32xbf16>, vector<16x32xf32> -> vector<16x32xf32>
    %14 = arith.addf %7, %13 : vector<16x32xf32>
    %c0_16 = arith.constant 0 : index
    %c0_17 = arith.constant 0 : index
    %c0_18 = arith.constant 0 : index
    %c2 = arith.constant 2 : index
    %c0_19 = arith.constant 0 : index
    %15 = vector.load %arg2[%c0_16, %c0_17, %c0_18, %c2, %c0_19] : memref<1x1x6x6x128xbf16, #tpu.memory_space<vmem>>, vector<1x1x4x4x128xbf16>
    %16 = vector.shape_cast %15 : vector<1x1x4x4x128xbf16> to vector<4x4x128xbf16>
    %17 = vector.shape_cast %16 : vector<4x4x128xbf16> to vector<16x128xbf16>
    %c2_20 = arith.constant 2 : index
    %c0_21 = arith.constant 0 : index
    %c0_22 = arith.constant 0 : index
    %18 = vector.load %arg3[%c2_20, %c0_21, %c0_22] : memref<9x128x32xbf16, #tpu.memory_space<vmem>>, vector<1x128x32xbf16>
    %19 = vector.shape_cast %18 : vector<1x128x32xbf16> to vector<128x32xbf16>
    %cst_23 = arith.constant dense<0.000000e+00> : vector<16x32xf32>
    %20 = tpu.matmul %17, %19, %cst_23 {dimension_numbers = #tpu.dot_dimension_numbers<[1], [0], [0], [1], [0, 0, 1, 1], [], []>} : vector<16x128xbf16>, vector<128x32xbf16>, vector<16x32xf32> -> vector<16x32xf32>
    %21 = arith.addf %14, %20 : vector<16x32xf32>
    %c0_24 = arith.constant 0 : index
    %c0_25 = arith.constant 0 : index
    %c1_26 = arith.constant 1 : index
    %c0_27 = arith.constant 0 : index
    %c0_28 = arith.constant 0 : index
    %22 = vector.load %arg2[%c0_24, %c0_25, %c1_26, %c0_27, %c0_28] : memref<1x1x6x6x128xbf16, #tpu.memory_space<vmem>>, vector<1x1x4x4x128xbf16>
    %23 = vector.shape_cast %22 : vector<1x1x4x4x128xbf16> to vector<4x4x128xbf16>
    %24 = vector.shape_cast %23 : vector<4x4x128xbf16> to vector<16x128xbf16>
    %c3 = arith.constant 3 : index
    %c0_29 = arith.constant 0 : index
    %c0_30 = arith.constant 0 : index
    %25 = vector.load %arg3[%c3, %c0_29, %c0_30] : memref<9x128x32xbf16, #tpu.memory_space<vmem>>, vector<1x128x32xbf16>
    %26 = vector.shape_cast %25 : vector<1x128x32xbf16> to vector<128x32xbf16>
    %cst_31 = arith.constant dense<0.000000e+00> : vector<16x32xf32>
    %27 = tpu.matmul %24, %26, %cst_31 {dimension_numbers = #tpu.dot_dimension_numbers<[1], [0], [0], [1], [0, 0, 1, 1], [], []>} : vector<16x128xbf16>, vector<128x32xbf16>, vector<16x32xf32> -> vector<16x32xf32>
    %28 = arith.addf %21, %27 : vector<16x32xf32>
    %c0_32 = arith.constant 0 : index
    %c0_33 = arith.constant 0 : index
    %c1_34 = arith.constant 1 : index
    %c1_35 = arith.constant 1 : index
    %c0_36 = arith.constant 0 : index
    %29 = vector.load %arg2[%c0_32, %c0_33, %c1_34, %c1_35, %c0_36] : memref<1x1x6x6x128xbf16, #tpu.memory_space<vmem>>, vector<1x1x4x4x128xbf16>
    %30 = vector.shape_cast %29 : vector<1x1x4x4x128xbf16> to vector<4x4x128xbf16>
    %31 = vector.shape_cast %30 : vector<4x4x128xbf16> to vector<16x128xbf16>
    %c4 = arith.constant 4 : index
    %c0_37 = arith.constant 0 : index
    %c0_38 = arith.constant 0 : index
    %32 = vector.load %arg3[%c4, %c0_37, %c0_38] : memref<9x128x32xbf16, #tpu.memory_space<vmem>>, vector<1x128x32xbf16>
    %33 = vector.shape_cast %32 : vector<1x128x32xbf16> to vector<128x32xbf16>
    %cst_39 = arith.constant dense<0.000000e+00> : vector<16x32xf32>
    %34 = tpu.matmul %31, %33, %cst_39 {dimension_numbers = #tpu.dot_dimension_numbers<[1], [0], [0], [1], [0, 0, 1, 1], [], []>} : vector<16x128xbf16>, vector<128x32xbf16>, vector<16x32xf32> -> vector<16x32xf32>
    %35 = arith.addf %28, %34 : vector<16x32xf32>
    %c0_40 = arith.constant 0 : index
    %c0_41 = arith.constant 0 : index
    %c1_42 = arith.constant 1 : index
    %c2_43 = arith.constant 2 : index
    %c0_44 = arith.constant 0 : index
    %36 = vector.load %arg2[%c0_40, %c0_41, %c1_42, %c2_43, %c0_44] : memref<1x1x6x6x128xbf16, #tpu.memory_space<vmem>>, vector<1x1x4x4x128xbf16>
    %37 = vector.shape_cast %36 : vector<1x1x4x4x128xbf16> to vector<4x4x128xbf16>
    %38 = vector.shape_cast %37 : vector<4x4x128xbf16> to vector<16x128xbf16>
    %c5 = arith.constant 5 : index
    %c0_45 = arith.constant 0 : index
    %c0_46 = arith.constant 0 : index
    %39 = vector.load %arg3[%c5, %c0_45, %c0_46] : memref<9x128x32xbf16, #tpu.memory_space<vmem>>, vector<1x128x32xbf16>
    %40 = vector.shape_cast %39 : vector<1x128x32xbf16> to vector<128x32xbf16>
    %cst_47 = arith.constant dense<0.000000e+00> : vector<16x32xf32>
    %41 = tpu.matmul %38, %40, %cst_47 {dimension_numbers = #tpu.dot_dimension_numbers<[1], [0], [0], [1], [0, 0, 1, 1], [], []>} : vector<16x128xbf16>, vector<128x32xbf16>, vector<16x32xf32> -> vector<16x32xf32>
    %42 = arith.addf %35, %41 : vector<16x32xf32>
    %c0_48 = arith.constant 0 : index
    %c0_49 = arith.constant 0 : index
    %c2_50 = arith.constant 2 : index
    %c0_51 = arith.constant 0 : index
    %c0_52 = arith.constant 0 : index
    %43 = vector.load %arg2[%c0_48, %c0_49, %c2_50, %c0_51, %c0_52] : memref<1x1x6x6x128xbf16, #tpu.memory_space<vmem>>, vector<1x1x4x4x128xbf16>
    %44 = vector.shape_cast %43 : vector<1x1x4x4x128xbf16> to vector<4x4x128xbf16>
    %45 = vector.shape_cast %44 : vector<4x4x128xbf16> to vector<16x128xbf16>
    %c6 = arith.constant 6 : index
    %c0_53 = arith.constant 0 : index
    %c0_54 = arith.constant 0 : index
    %46 = vector.load %arg3[%c6, %c0_53, %c0_54] : memref<9x128x32xbf16, #tpu.memory_space<vmem>>, vector<1x128x32xbf16>
    %47 = vector.shape_cast %46 : vector<1x128x32xbf16> to vector<128x32xbf16>
    %cst_55 = arith.constant dense<0.000000e+00> : vector<16x32xf32>
    %48 = tpu.matmul %45, %47, %cst_55 {dimension_numbers = #tpu.dot_dimension_numbers<[1], [0], [0], [1], [0, 0, 1, 1], [], []>} : vector<16x128xbf16>, vector<128x32xbf16>, vector<16x32xf32> -> vector<16x32xf32>
    %49 = arith.addf %42, %48 : vector<16x32xf32>
    %c0_56 = arith.constant 0 : index
    %c0_57 = arith.constant 0 : index
    %c2_58 = arith.constant 2 : index
    %c1_59 = arith.constant 1 : index
    %c0_60 = arith.constant 0 : index
    %50 = vector.load %arg2[%c0_56, %c0_57, %c2_58, %c1_59, %c0_60] : memref<1x1x6x6x128xbf16, #tpu.memory_space<vmem>>, vector<1x1x4x4x128xbf16>
    %51 = vector.shape_cast %50 : vector<1x1x4x4x128xbf16> to vector<4x4x128xbf16>
    %52 = vector.shape_cast %51 : vector<4x4x128xbf16> to vector<16x128xbf16>
    %c7 = arith.constant 7 : index
    %c0_61 = arith.constant 0 : index
    %c0_62 = arith.constant 0 : index
    %53 = vector.load %arg3[%c7, %c0_61, %c0_62] : memref<9x128x32xbf16, #tpu.memory_space<vmem>>, vector<1x128x32xbf16>
    %54 = vector.shape_cast %53 : vector<1x128x32xbf16> to vector<128x32xbf16>
    %cst_63 = arith.constant dense<0.000000e+00> : vector<16x32xf32>
    %55 = tpu.matmul %52, %54, %cst_63 {dimension_numbers = #tpu.dot_dimension_numbers<[1], [0], [0], [1], [0, 0, 1, 1], [], []>} : vector<16x128xbf16>, vector<128x32xbf16>, vector<16x32xf32> -> vector<16x32xf32>
    %56 = arith.addf %49, %55 : vector<16x32xf32>
    %c0_64 = arith.constant 0 : index
    %c0_65 = arith.constant 0 : index
    %c2_66 = arith.constant 2 : index
    %c2_67 = arith.constant 2 : index
    %c0_68 = arith.constant 0 : index
    %57 = vector.load %arg2[%c0_64, %c0_65, %c2_66, %c2_67, %c0_68] : memref<1x1x6x6x128xbf16, #tpu.memory_space<vmem>>, vector<1x1x4x4x128xbf16>
    %58 = vector.shape_cast %57 : vector<1x1x4x4x128xbf16> to vector<4x4x128xbf16>
    %59 = vector.shape_cast %58 : vector<4x4x128xbf16> to vector<16x128xbf16>
    %c8 = arith.constant 8 : index
    %c0_69 = arith.constant 0 : index
    %c0_70 = arith.constant 0 : index
    %60 = vector.load %arg3[%c8, %c0_69, %c0_70] : memref<9x128x32xbf16, #tpu.memory_space<vmem>>, vector<1x128x32xbf16>
    %61 = vector.shape_cast %60 : vector<1x128x32xbf16> to vector<128x32xbf16>
    %cst_71 = arith.constant dense<0.000000e+00> : vector<16x32xf32>
    %62 = tpu.matmul %59, %61, %cst_71 {dimension_numbers = #tpu.dot_dimension_numbers<[1], [0], [0], [1], [0, 0, 1, 1], [], []>} : vector<16x128xbf16>, vector<128x32xbf16>, vector<16x32xf32> -> vector<16x32xf32>
    %63 = arith.addf %56, %62 : vector<16x32xf32>
    %c0_72 = arith.constant 0 : index
    %c0_73 = arith.constant 0 : index
    %64 = vector.load %arg4[%c0_72, %c0_73] : memref<1x32xf32, #tpu.memory_space<vmem>>, vector<1x32xf32>
    %65 = vector.broadcast %64 : vector<1x32xf32> to vector<16x32xf32>
    %66 = arith.addf %63, %65 : vector<16x32xf32>
    %67 = arith.mulf %66, %66 : vector<16x32xf32>
    %68 = arith.truncf %67 : vector<16x32xf32> to vector<16x32xbf16>
    %c0_74 = arith.constant 0 : index
    %c0_75 = arith.constant 0 : index
    %69 = vector.load %arg5[%c0_74, %c0_75] : memref<32x32xbf16, #tpu.memory_space<vmem>>, vector<32x32xbf16>
    %cst_76 = arith.constant dense<0.000000e+00> : vector<16x32xf32>
    %70 = tpu.matmul %68, %69, %cst_76 {dimension_numbers = #tpu.dot_dimension_numbers<[1], [0], [0], [1], [0, 0, 1, 1], [], []>} : vector<16x32xbf16>, vector<32x32xbf16>, vector<16x32xf32> -> vector<16x32xf32>
    %c0_77 = arith.constant 0 : index
    %c0_78 = arith.constant 0 : index
    %71 = vector.load %arg6[%c0_77, %c0_78] : memref<1x32xf32, #tpu.memory_space<vmem>>, vector<1x32xf32>
    %72 = vector.broadcast %71 : vector<1x32xf32> to vector<16x32xf32>
    %73 = arith.addf %70, %72 : vector<16x32xf32>
    %74 = math.rsqrt %73 : vector<16x32xf32>
    %75 = arith.mulf %66, %74 : vector<16x32xf32>
    %76 = vector.shape_cast %75 : vector<16x32xf32> to vector<1x1x16x32xf32>
    %77 = arith.truncf %76 : vector<1x1x16x32xf32> to vector<1x1x16x32xbf16>
    %c0_79 = arith.constant 0 : index
    %c0_80 = arith.constant 0 : index
    %c0_81 = arith.constant 0 : index
    %c0_82 = arith.constant 0 : index
    %78 = vector.load %arg7[%c0_79, %c0_80, %c0_81, %c0_82] : memref<1x1x16x32xbf16, #tpu.memory_space<vmem>>, vector<1x1x16x32xbf16>
    tpu.vector_store %arg7[%c0_79, %c0_80, %c0_81, %c0_82], %77 {strides = array<i32>} : memref<1x1x16x32xbf16, #tpu.memory_space<vmem>>, vector<1x1x16x32xbf16>,
    return
  }
  func.func @transform_0(%arg0: i32, %arg1: i32) -> (i32, i32, i32, i32, i32) {
    %c0_i32 = arith.constant 0 : i32
    %c0_i32_0 = arith.constant 0 : i32
    %c0_i32_1 = arith.constant 0 : i32
    %c0_i32_2 = arith.constant 0 : i32
    return %arg0, %arg1, %c0_i32, %c0_i32_0, %c0_i32_1 : i32, i32, i32, i32, i32
  }
  func.func @transform_1(%arg0: i32, %arg1: i32) -> (i32, i32, i32) {
    %c0_i32 = arith.constant 0 : i32
    %c0_i32_0 = arith.constant 0 : i32
    %c0_i32_1 = arith.constant 0 : i32
    %c0_i32_2 = arith.constant 0 : i32
    return %c0_i32, %c0_i32_0, %c0_i32_1 : i32, i32, i32
  }
  func.func @transform_2(%arg0: i32, %arg1: i32) -> (i32, i32) {
    %c0_i32 = arith.constant 0 : i32
    %c0_i32_0 = arith.constant 0 : i32
    %c0_i32_1 = arith.constant 0 : i32
    return %c0_i32, %c0_i32_0 : i32, i32
  }
  func.func @transform_3(%arg0: i32, %arg1: i32) -> (i32, i32) {
    %c0_i32 = arith.constant 0 : i32
    %c0_i32_0 = arith.constant 0 : i32
    %c0_i32_1 = arith.constant 0 : i32
    return %c0_i32, %c0_i32_0 : i32, i32
  }
  func.func @transform_4(%arg0: i32, %arg1: i32) -> (i32, i32) {
    %c0_i32 = arith.constant 0 : i32
    %c0_i32_0 = arith.constant 0 : i32
    %c0_i32_1 = arith.constant 0 : i32
    return %c0_i32, %c0_i32_0 : i32, i32
  }
  func.func @transform_5(%arg0: i32, %arg1: i32) -> (i32, i32, i32, i32) {
    %c0_i32 = arith.constant 0 : i32
    %c0_i32_0 = arith.constant 0 : i32
    %c0_i32_1 = arith.constant 0 : i32
    return %arg0, %arg1, %c0_i32, %c0_i32_0 : i32, i32, i32, i32
  }
}

module attributes {stable_mosaic.version = 11 : i64} {
  func.func @kernel(%arg0: i32, %arg1: i32, %arg2: memref<1x1x4x4x128xbf16, #tpu.memory_space<vmem>>, %arg3: memref<9x128x32xbf16, #tpu.memory_space<vmem>>, %arg4: memref<1x32xf32, #tpu.memory_space<vmem>>, %arg5: memref<32x32xbf16, #tpu.memory_space<vmem>>, %arg6: memref<1x32xf32, #tpu.memory_space<vmem>>, %arg7: memref<1x1x4x32xbf16, #tpu.memory_space<vmem>>) attributes {dimension_semantics = [#tpu.dimension_semantics<parallel>, #tpu.dimension_semantics<parallel>], iteration_bounds = array<i64: 2, 1>, scalar_prefetch = 0 : i64, scratch_operands = 0 : i64, tpu.core_type = #tpu.core_type<tc>, window_params = [{transform_indices = @transform_0, window_bounds = array<i64: 1, 1, 4, 4, 128>}, {pipeline_mode = #tpu.pipeline_mode<synchronous>, transform_indices = @transform_1, window_bounds = array<i64: 9, 128, 32>}, {pipeline_mode = #tpu.pipeline_mode<synchronous>, transform_indices = @transform_2, window_bounds = array<i64: 1, 32>}, {pipeline_mode = #tpu.pipeline_mode<synchronous>, transform_indices = @transform_3, window_bounds = array<i64: 32, 32>}, {pipeline_mode = #tpu.pipeline_mode<synchronous>, transform_indices = @transform_4, window_bounds = array<i64: 1, 32>}, {transform_indices = @transform_5, window_bounds = array<i64: 1, 1, 4, 32>}]} {
    %cst = arith.constant 0.000000e+00 : f32
    %0 = vector.broadcast %cst : f32 to vector<4x32xf32>
    %c0 = arith.constant 0 : index
    %c0_0 = arith.constant 0 : index
    %c0_1 = arith.constant 0 : index
    %c0_2 = arith.constant 0 : index
    %c0_3 = arith.constant 0 : index
    %1 = vector.load %arg2[%c0, %c0_0, %c0_1, %c0_2, %c0_3] : memref<1x1x4x4x128xbf16, #tpu.memory_space<vmem>>, vector<1x1x2x2x128xbf16>
    %2 = vector.shape_cast %1 : vector<1x1x2x2x128xbf16> to vector<2x2x128xbf16>
    %3 = vector.shape_cast %2 : vector<2x2x128xbf16> to vector<4x128xbf16>
    %c0_4 = arith.constant 0 : index
    %c0_5 = arith.constant 0 : index
    %c0_6 = arith.constant 0 : index
    %4 = vector.load %arg3[%c0_4, %c0_5, %c0_6] : memref<9x128x32xbf16, #tpu.memory_space<vmem>>, vector<1x128x32xbf16>
    %5 = vector.shape_cast %4 : vector<1x128x32xbf16> to vector<128x32xbf16>
    %cst_7 = arith.constant dense<0.000000e+00> : vector<4x32xf32>
    %6 = tpu.matmul %3, %5, %cst_7 {dimension_numbers = #tpu.dot_dimension_numbers<[1], [0], [0], [1], [0, 0, 1, 1], [], []>} : vector<4x128xbf16>, vector<128x32xbf16>, vector<4x32xf32> -> vector<4x32xf32>
    %7 = arith.addf %0, %6 : vector<4x32xf32>
    %c0_8 = arith.constant 0 : index
    %c0_9 = arith.constant 0 : index
    %c0_10 = arith.constant 0 : index
    %c1 = arith.constant 1 : index
    %c0_11 = arith.constant 0 : index
    %8 = vector.load %arg2[%c0_8, %c0_9, %c0_10, %c1, %c0_11] : memref<1x1x4x4x128xbf16, #tpu.memory_space<vmem>>, vector<1x1x2x2x128xbf16>
    %9 = vector.shape_cast %8 : vector<1x1x2x2x128xbf16> to vector<2x2x128xbf16>
    %10 = vector.shape_cast %9 : vector<2x2x128xbf16> to vector<4x128xbf16>
    %c1_12 = arith.constant 1 : index
    %c0_13 = arith.constant 0 : index
    %c0_14 = arith.constant 0 : index
    %11 = vector.load %arg3[%c1_12, %c0_13, %c0_14] : memref<9x128x32xbf16, #tpu.memory_space<vmem>>, vector<1x128x32xbf16>
    %12 = vector.shape_cast %11 : vector<1x128x32xbf16> to vector<128x32xbf16>
    %cst_15 = arith.constant dense<0.000000e+00> : vector<4x32xf32>
    %13 = tpu.matmul %10, %12, %cst_15 {dimension_numbers = #tpu.dot_dimension_numbers<[1], [0], [0], [1], [0, 0, 1, 1], [], []>} : vector<4x128xbf16>, vector<128x32xbf16>, vector<4x32xf32> -> vector<4x32xf32>
    %14 = arith.addf %7, %13 : vector<4x32xf32>
    %c0_16 = arith.constant 0 : index
    %c0_17 = arith.constant 0 : index
    %c0_18 = arith.constant 0 : index
    %c2 = arith.constant 2 : index
    %c0_19 = arith.constant 0 : index
    %15 = vector.load %arg2[%c0_16, %c0_17, %c0_18, %c2, %c0_19] : memref<1x1x4x4x128xbf16, #tpu.memory_space<vmem>>, vector<1x1x2x2x128xbf16>
    %16 = vector.shape_cast %15 : vector<1x1x2x2x128xbf16> to vector<2x2x128xbf16>
    %17 = vector.shape_cast %16 : vector<2x2x128xbf16> to vector<4x128xbf16>
    %c2_20 = arith.constant 2 : index
    %c0_21 = arith.constant 0 : index
    %c0_22 = arith.constant 0 : index
    %18 = vector.load %arg3[%c2_20, %c0_21, %c0_22] : memref<9x128x32xbf16, #tpu.memory_space<vmem>>, vector<1x128x32xbf16>
    %19 = vector.shape_cast %18 : vector<1x128x32xbf16> to vector<128x32xbf16>
    %cst_23 = arith.constant dense<0.000000e+00> : vector<4x32xf32>
    %20 = tpu.matmul %17, %19, %cst_23 {dimension_numbers = #tpu.dot_dimension_numbers<[1], [0], [0], [1], [0, 0, 1, 1], [], []>} : vector<4x128xbf16>, vector<128x32xbf16>, vector<4x32xf32> -> vector<4x32xf32>
    %21 = arith.addf %14, %20 : vector<4x32xf32>
    %c0_24 = arith.constant 0 : index
    %c0_25 = arith.constant 0 : index
    %c1_26 = arith.constant 1 : index
    %c0_27 = arith.constant 0 : index
    %c0_28 = arith.constant 0 : index
    %22 = vector.load %arg2[%c0_24, %c0_25, %c1_26, %c0_27, %c0_28] : memref<1x1x4x4x128xbf16, #tpu.memory_space<vmem>>, vector<1x1x2x2x128xbf16>
    %23 = vector.shape_cast %22 : vector<1x1x2x2x128xbf16> to vector<2x2x128xbf16>
    %24 = vector.shape_cast %23 : vector<2x2x128xbf16> to vector<4x128xbf16>
    %c3 = arith.constant 3 : index
    %c0_29 = arith.constant 0 : index
    %c0_30 = arith.constant 0 : index
    %25 = vector.load %arg3[%c3, %c0_29, %c0_30] : memref<9x128x32xbf16, #tpu.memory_space<vmem>>, vector<1x128x32xbf16>
    %26 = vector.shape_cast %25 : vector<1x128x32xbf16> to vector<128x32xbf16>
    %cst_31 = arith.constant dense<0.000000e+00> : vector<4x32xf32>
    %27 = tpu.matmul %24, %26, %cst_31 {dimension_numbers = #tpu.dot_dimension_numbers<[1], [0], [0], [1], [0, 0, 1, 1], [], []>} : vector<4x128xbf16>, vector<128x32xbf16>, vector<4x32xf32> -> vector<4x32xf32>
    %28 = arith.addf %21, %27 : vector<4x32xf32>
    %c0_32 = arith.constant 0 : index
    %c0_33 = arith.constant 0 : index
    %c1_34 = arith.constant 1 : index
    %c1_35 = arith.constant 1 : index
    %c0_36 = arith.constant 0 : index
    %29 = vector.load %arg2[%c0_32, %c0_33, %c1_34, %c1_35, %c0_36] : memref<1x1x4x4x128xbf16, #tpu.memory_space<vmem>>, vector<1x1x2x2x128xbf16>
    %30 = vector.shape_cast %29 : vector<1x1x2x2x128xbf16> to vector<2x2x128xbf16>
    %31 = vector.shape_cast %30 : vector<2x2x128xbf16> to vector<4x128xbf16>
    %c4 = arith.constant 4 : index
    %c0_37 = arith.constant 0 : index
    %c0_38 = arith.constant 0 : index
    %32 = vector.load %arg3[%c4, %c0_37, %c0_38] : memref<9x128x32xbf16, #tpu.memory_space<vmem>>, vector<1x128x32xbf16>
    %33 = vector.shape_cast %32 : vector<1x128x32xbf16> to vector<128x32xbf16>
    %cst_39 = arith.constant dense<0.000000e+00> : vector<4x32xf32>
    %34 = tpu.matmul %31, %33, %cst_39 {dimension_numbers = #tpu.dot_dimension_numbers<[1], [0], [0], [1], [0, 0, 1, 1], [], []>} : vector<4x128xbf16>, vector<128x32xbf16>, vector<4x32xf32> -> vector<4x32xf32>
    %35 = arith.addf %28, %34 : vector<4x32xf32>
    %c0_40 = arith.constant 0 : index
    %c0_41 = arith.constant 0 : index
    %c1_42 = arith.constant 1 : index
    %c2_43 = arith.constant 2 : index
    %c0_44 = arith.constant 0 : index
    %36 = vector.load %arg2[%c0_40, %c0_41, %c1_42, %c2_43, %c0_44] : memref<1x1x4x4x128xbf16, #tpu.memory_space<vmem>>, vector<1x1x2x2x128xbf16>
    %37 = vector.shape_cast %36 : vector<1x1x2x2x128xbf16> to vector<2x2x128xbf16>
    %38 = vector.shape_cast %37 : vector<2x2x128xbf16> to vector<4x128xbf16>
    %c5 = arith.constant 5 : index
    %c0_45 = arith.constant 0 : index
    %c0_46 = arith.constant 0 : index
    %39 = vector.load %arg3[%c5, %c0_45, %c0_46] : memref<9x128x32xbf16, #tpu.memory_space<vmem>>, vector<1x128x32xbf16>
    %40 = vector.shape_cast %39 : vector<1x128x32xbf16> to vector<128x32xbf16>
    %cst_47 = arith.constant dense<0.000000e+00> : vector<4x32xf32>
    %41 = tpu.matmul %38, %40, %cst_47 {dimension_numbers = #tpu.dot_dimension_numbers<[1], [0], [0], [1], [0, 0, 1, 1], [], []>} : vector<4x128xbf16>, vector<128x32xbf16>, vector<4x32xf32> -> vector<4x32xf32>
    %42 = arith.addf %35, %41 : vector<4x32xf32>
    %c0_48 = arith.constant 0 : index
    %c0_49 = arith.constant 0 : index
    %c2_50 = arith.constant 2 : index
    %c0_51 = arith.constant 0 : index
    %c0_52 = arith.constant 0 : index
    %43 = vector.load %arg2[%c0_48, %c0_49, %c2_50, %c0_51, %c0_52] : memref<1x1x4x4x128xbf16, #tpu.memory_space<vmem>>, vector<1x1x2x2x128xbf16>
    %44 = vector.shape_cast %43 : vector<1x1x2x2x128xbf16> to vector<2x2x128xbf16>
    %45 = vector.shape_cast %44 : vector<2x2x128xbf16> to vector<4x128xbf16>
    %c6 = arith.constant 6 : index
    %c0_53 = arith.constant 0 : index
    %c0_54 = arith.constant 0 : index
    %46 = vector.load %arg3[%c6, %c0_53, %c0_54] : memref<9x128x32xbf16, #tpu.memory_space<vmem>>, vector<1x128x32xbf16>
    %47 = vector.shape_cast %46 : vector<1x128x32xbf16> to vector<128x32xbf16>
    %cst_55 = arith.constant dense<0.000000e+00> : vector<4x32xf32>
    %48 = tpu.matmul %45, %47, %cst_55 {dimension_numbers = #tpu.dot_dimension_numbers<[1], [0], [0], [1], [0, 0, 1, 1], [], []>} : vector<4x128xbf16>, vector<128x32xbf16>, vector<4x32xf32> -> vector<4x32xf32>
    %49 = arith.addf %42, %48 : vector<4x32xf32>
    %c0_56 = arith.constant 0 : index
    %c0_57 = arith.constant 0 : index
    %c2_58 = arith.constant 2 : index
    %c1_59 = arith.constant 1 : index
    %c0_60 = arith.constant 0 : index
    %50 = vector.load %arg2[%c0_56, %c0_57, %c2_58, %c1_59, %c0_60] : memref<1x1x4x4x128xbf16, #tpu.memory_space<vmem>>, vector<1x1x2x2x128xbf16>
    %51 = vector.shape_cast %50 : vector<1x1x2x2x128xbf16> to vector<2x2x128xbf16>
    %52 = vector.shape_cast %51 : vector<2x2x128xbf16> to vector<4x128xbf16>
    %c7 = arith.constant 7 : index
    %c0_61 = arith.constant 0 : index
    %c0_62 = arith.constant 0 : index
    %53 = vector.load %arg3[%c7, %c0_61, %c0_62] : memref<9x128x32xbf16, #tpu.memory_space<vmem>>, vector<1x128x32xbf16>
    %54 = vector.shape_cast %53 : vector<1x128x32xbf16> to vector<128x32xbf16>
    %cst_63 = arith.constant dense<0.000000e+00> : vector<4x32xf32>
    %55 = tpu.matmul %52, %54, %cst_63 {dimension_numbers = #tpu.dot_dimension_numbers<[1], [0], [0], [1], [0, 0, 1, 1], [], []>} : vector<4x128xbf16>, vector<128x32xbf16>, vector<4x32xf32> -> vector<4x32xf32>
    %56 = arith.addf %49, %55 : vector<4x32xf32>
    %c0_64 = arith.constant 0 : index
    %c0_65 = arith.constant 0 : index
    %c2_66 = arith.constant 2 : index
    %c2_67 = arith.constant 2 : index
    %c0_68 = arith.constant 0 : index
    %57 = vector.load %arg2[%c0_64, %c0_65, %c2_66, %c2_67, %c0_68] : memref<1x1x4x4x128xbf16, #tpu.memory_space<vmem>>, vector<1x1x2x2x128xbf16>
    %58 = vector.shape_cast %57 : vector<1x1x2x2x128xbf16> to vector<2x2x128xbf16>
    %59 = vector.shape_cast %58 : vector<2x2x128xbf16> to vector<4x128xbf16>
    %c8 = arith.constant 8 : index
    %c0_69 = arith.constant 0 : index
    %c0_70 = arith.constant 0 : index
    %60 = vector.load %arg3[%c8, %c0_69, %c0_70] : memref<9x128x32xbf16, #tpu.memory_space<vmem>>, vector<1x128x32xbf16>
    %61 = vector.shape_cast %60 : vector<1x128x32xbf16> to vector<128x32xbf16>
    %cst_71 = arith.constant dense<0.000000e+00> : vector<4x32xf32>
    %62 = tpu.matmul %59, %61, %cst_71 {dimension_numbers = #tpu.dot_dimension_numbers<[1], [0], [0], [1], [0, 0, 1, 1], [], []>} : vector<4x128xbf16>, vector<128x32xbf16>, vector<4x32xf32> -> vector<4x32xf32>
    %63 = arith.addf %56, %62 : vector<4x32xf32>
    %c0_72 = arith.constant 0 : index
    %c0_73 = arith.constant 0 : index
    %64 = vector.load %arg4[%c0_72, %c0_73] : memref<1x32xf32, #tpu.memory_space<vmem>>, vector<1x32xf32>
    %65 = vector.broadcast %64 : vector<1x32xf32> to vector<4x32xf32>
    %66 = arith.addf %63, %65 : vector<4x32xf32>
    %67 = arith.mulf %66, %66 : vector<4x32xf32>
    %68 = arith.truncf %67 : vector<4x32xf32> to vector<4x32xbf16>
    %c0_74 = arith.constant 0 : index
    %c0_75 = arith.constant 0 : index
    %69 = vector.load %arg5[%c0_74, %c0_75] : memref<32x32xbf16, #tpu.memory_space<vmem>>, vector<32x32xbf16>
    %cst_76 = arith.constant dense<0.000000e+00> : vector<4x32xf32>
    %70 = tpu.matmul %68, %69, %cst_76 {dimension_numbers = #tpu.dot_dimension_numbers<[1], [0], [0], [1], [0, 0, 1, 1], [], []>} : vector<4x32xbf16>, vector<32x32xbf16>, vector<4x32xf32> -> vector<4x32xf32>
    %c0_77 = arith.constant 0 : index
    %c0_78 = arith.constant 0 : index
    %71 = vector.load %arg6[%c0_77, %c0_78] : memref<1x32xf32, #tpu.memory_space<vmem>>, vector<1x32xf32>
    %72 = vector.broadcast %71 : vector<1x32xf32> to vector<4x32xf32>
    %73 = arith.addf %70, %72 : vector<4x32xf32>
    %74 = math.rsqrt %73 : vector<4x32xf32>
    %75 = arith.mulf %66, %74 : vector<4x32xf32>
    %76 = vector.shape_cast %75 : vector<4x32xf32> to vector<1x1x4x32xf32>
    %77 = arith.truncf %76 : vector<1x1x4x32xf32> to vector<1x1x4x32xbf16>
    %c0_79 = arith.constant 0 : index
    %c0_80 = arith.constant 0 : index
    %c0_81 = arith.constant 0 : index
    %c0_82 = arith.constant 0 : index
    %78 = vector.load %arg7[%c0_79, %c0_80, %c0_81, %c0_82] : memref<1x1x4x32xbf16, #tpu.memory_space<vmem>>, vector<1x1x4x32xbf16>
    tpu.vector_store %arg7[%c0_79, %c0_80, %c0_81, %c0_82], %77 {strides = array<i32>} : memref<1x1x4x32xbf16, #tpu.memory_space<vmem>>, vector<1x1x4x32xbf16>,
    return
  }
  func.func @transform_0(%arg0: i32, %arg1: i32) -> (i32, i32, i32, i32, i32) {
    %c0_i32 = arith.constant 0 : i32
    %c0_i32_0 = arith.constant 0 : i32
    %c0_i32_1 = arith.constant 0 : i32
    %c0_i32_2 = arith.constant 0 : i32
    return %arg0, %arg1, %c0_i32, %c0_i32_0, %c0_i32_1 : i32, i32, i32, i32, i32
  }
  func.func @transform_1(%arg0: i32, %arg1: i32) -> (i32, i32, i32) {
    %c0_i32 = arith.constant 0 : i32
    %c0_i32_0 = arith.constant 0 : i32
    %c0_i32_1 = arith.constant 0 : i32
    %c0_i32_2 = arith.constant 0 : i32
    return %c0_i32, %c0_i32_0, %c0_i32_1 : i32, i32, i32
  }
  func.func @transform_2(%arg0: i32, %arg1: i32) -> (i32, i32) {
    %c0_i32 = arith.constant 0 : i32
    %c0_i32_0 = arith.constant 0 : i32
    %c0_i32_1 = arith.constant 0 : i32
    return %c0_i32, %c0_i32_0 : i32, i32
  }
  func.func @transform_3(%arg0: i32, %arg1: i32) -> (i32, i32) {
    %c0_i32 = arith.constant 0 : i32
    %c0_i32_0 = arith.constant 0 : i32
    %c0_i32_1 = arith.constant 0 : i32
    return %c0_i32, %c0_i32_0 : i32, i32
  }
  func.func @transform_4(%arg0: i32, %arg1: i32) -> (i32, i32) {
    %c0_i32 = arith.constant 0 : i32
    %c0_i32_0 = arith.constant 0 : i32
    %c0_i32_1 = arith.constant 0 : i32
    return %c0_i32, %c0_i32_0 : i32, i32
  }
  func.func @transform_5(%arg0: i32, %arg1: i32) -> (i32, i32, i32, i32) {
    %c0_i32 = arith.constant 0 : i32
    %c0_i32_0 = arith.constant 0 : i32
    %c0_i32_1 = arith.constant 0 : i32
    return %arg0, %arg1, %c0_i32, %c0_i32_0 : i32, i32, i32, i32
  }
}

module attributes {stable_mosaic.version = 11 : i64} {
  func.func @kernel(%arg0: i32, %arg1: i32, %arg2: memref<1x1x3x3x128xbf16, #tpu.memory_space<vmem>>, %arg3: memref<9x128x64xbf16, #tpu.memory_space<vmem>>, %arg4: memref<1x64xf32, #tpu.memory_space<vmem>>, %arg5: memref<1x1x1x64xf32, #tpu.memory_space<vmem>>) attributes {dimension_semantics = [#tpu.dimension_semantics<parallel>, #tpu.dimension_semantics<parallel>], iteration_bounds = array<i64: 2, 1>, scalar_prefetch = 0 : i64, scratch_operands = 0 : i64, tpu.core_type = #tpu.core_type<tc>, window_params = [{transform_indices = @transform_0, window_bounds = array<i64: 1, 1, 3, 3, 128>}, {pipeline_mode = #tpu.pipeline_mode<synchronous>, transform_indices = @transform_1, window_bounds = array<i64: 9, 128, 64>}, {pipeline_mode = #tpu.pipeline_mode<synchronous>, transform_indices = @transform_2, window_bounds = array<i64: 1, 64>}, {transform_indices = @transform_3, window_bounds = array<i64: 1, 1, 1, 64>}]} {
    %cst = arith.constant 0.000000e+00 : f32
    %0 = vector.broadcast %cst : f32 to vector<1x64xf32>
    %c0 = arith.constant 0 : index
    %c0_0 = arith.constant 0 : index
    %c0_1 = arith.constant 0 : index
    %c0_2 = arith.constant 0 : index
    %c0_3 = arith.constant 0 : index
    %1 = vector.load %arg2[%c0, %c0_0, %c0_1, %c0_2, %c0_3] : memref<1x1x3x3x128xbf16, #tpu.memory_space<vmem>>, vector<1x1x1x1x128xbf16>
    %2 = vector.shape_cast %1 : vector<1x1x1x1x128xbf16> to vector<1x1x128xbf16>
    %3 = vector.shape_cast %2 : vector<1x1x128xbf16> to vector<1x128xbf16>
    %c0_4 = arith.constant 0 : index
    %c0_5 = arith.constant 0 : index
    %c0_6 = arith.constant 0 : index
    %4 = vector.load %arg3[%c0_4, %c0_5, %c0_6] : memref<9x128x64xbf16, #tpu.memory_space<vmem>>, vector<1x128x64xbf16>
    %5 = vector.shape_cast %4 : vector<1x128x64xbf16> to vector<128x64xbf16>
    %cst_7 = arith.constant dense<0.000000e+00> : vector<1x64xf32>
    %6 = tpu.matmul %3, %5, %cst_7 {dimension_numbers = #tpu.dot_dimension_numbers<[1], [0], [0], [1], [0, 0, 1, 1], [], []>} : vector<1x128xbf16>, vector<128x64xbf16>, vector<1x64xf32> -> vector<1x64xf32>
    %7 = arith.addf %0, %6 : vector<1x64xf32>
    %c0_8 = arith.constant 0 : index
    %c0_9 = arith.constant 0 : index
    %c0_10 = arith.constant 0 : index
    %c1 = arith.constant 1 : index
    %c0_11 = arith.constant 0 : index
    %8 = vector.load %arg2[%c0_8, %c0_9, %c0_10, %c1, %c0_11] : memref<1x1x3x3x128xbf16, #tpu.memory_space<vmem>>, vector<1x1x1x1x128xbf16>
    %9 = vector.shape_cast %8 : vector<1x1x1x1x128xbf16> to vector<1x1x128xbf16>
    %10 = vector.shape_cast %9 : vector<1x1x128xbf16> to vector<1x128xbf16>
    %c1_12 = arith.constant 1 : index
    %c0_13 = arith.constant 0 : index
    %c0_14 = arith.constant 0 : index
    %11 = vector.load %arg3[%c1_12, %c0_13, %c0_14] : memref<9x128x64xbf16, #tpu.memory_space<vmem>>, vector<1x128x64xbf16>
    %12 = vector.shape_cast %11 : vector<1x128x64xbf16> to vector<128x64xbf16>
    %cst_15 = arith.constant dense<0.000000e+00> : vector<1x64xf32>
    %13 = tpu.matmul %10, %12, %cst_15 {dimension_numbers = #tpu.dot_dimension_numbers<[1], [0], [0], [1], [0, 0, 1, 1], [], []>} : vector<1x128xbf16>, vector<128x64xbf16>, vector<1x64xf32> -> vector<1x64xf32>
    %14 = arith.addf %7, %13 : vector<1x64xf32>
    %c0_16 = arith.constant 0 : index
    %c0_17 = arith.constant 0 : index
    %c0_18 = arith.constant 0 : index
    %c2 = arith.constant 2 : index
    %c0_19 = arith.constant 0 : index
    %15 = vector.load %arg2[%c0_16, %c0_17, %c0_18, %c2, %c0_19] : memref<1x1x3x3x128xbf16, #tpu.memory_space<vmem>>, vector<1x1x1x1x128xbf16>
    %16 = vector.shape_cast %15 : vector<1x1x1x1x128xbf16> to vector<1x1x128xbf16>
    %17 = vector.shape_cast %16 : vector<1x1x128xbf16> to vector<1x128xbf16>
    %c2_20 = arith.constant 2 : index
    %c0_21 = arith.constant 0 : index
    %c0_22 = arith.constant 0 : index
    %18 = vector.load %arg3[%c2_20, %c0_21, %c0_22] : memref<9x128x64xbf16, #tpu.memory_space<vmem>>, vector<1x128x64xbf16>
    %19 = vector.shape_cast %18 : vector<1x128x64xbf16> to vector<128x64xbf16>
    %cst_23 = arith.constant dense<0.000000e+00> : vector<1x64xf32>
    %20 = tpu.matmul %17, %19, %cst_23 {dimension_numbers = #tpu.dot_dimension_numbers<[1], [0], [0], [1], [0, 0, 1, 1], [], []>} : vector<1x128xbf16>, vector<128x64xbf16>, vector<1x64xf32> -> vector<1x64xf32>
    %21 = arith.addf %14, %20 : vector<1x64xf32>
    %c0_24 = arith.constant 0 : index
    %c0_25 = arith.constant 0 : index
    %c1_26 = arith.constant 1 : index
    %c0_27 = arith.constant 0 : index
    %c0_28 = arith.constant 0 : index
    %22 = vector.load %arg2[%c0_24, %c0_25, %c1_26, %c0_27, %c0_28] : memref<1x1x3x3x128xbf16, #tpu.memory_space<vmem>>, vector<1x1x1x1x128xbf16>
    %23 = vector.shape_cast %22 : vector<1x1x1x1x128xbf16> to vector<1x1x128xbf16>
    %24 = vector.shape_cast %23 : vector<1x1x128xbf16> to vector<1x128xbf16>
    %c3 = arith.constant 3 : index
    %c0_29 = arith.constant 0 : index
    %c0_30 = arith.constant 0 : index
    %25 = vector.load %arg3[%c3, %c0_29, %c0_30] : memref<9x128x64xbf16, #tpu.memory_space<vmem>>, vector<1x128x64xbf16>
    %26 = vector.shape_cast %25 : vector<1x128x64xbf16> to vector<128x64xbf16>
    %cst_31 = arith.constant dense<0.000000e+00> : vector<1x64xf32>
    %27 = tpu.matmul %24, %26, %cst_31 {dimension_numbers = #tpu.dot_dimension_numbers<[1], [0], [0], [1], [0, 0, 1, 1], [], []>} : vector<1x128xbf16>, vector<128x64xbf16>, vector<1x64xf32> -> vector<1x64xf32>
    %28 = arith.addf %21, %27 : vector<1x64xf32>
    %c0_32 = arith.constant 0 : index
    %c0_33 = arith.constant 0 : index
    %c1_34 = arith.constant 1 : index
    %c1_35 = arith.constant 1 : index
    %c0_36 = arith.constant 0 : index
    %29 = vector.load %arg2[%c0_32, %c0_33, %c1_34, %c1_35, %c0_36] : memref<1x1x3x3x128xbf16, #tpu.memory_space<vmem>>, vector<1x1x1x1x128xbf16>
    %30 = vector.shape_cast %29 : vector<1x1x1x1x128xbf16> to vector<1x1x128xbf16>
    %31 = vector.shape_cast %30 : vector<1x1x128xbf16> to vector<1x128xbf16>
    %c4 = arith.constant 4 : index
    %c0_37 = arith.constant 0 : index
    %c0_38 = arith.constant 0 : index
    %32 = vector.load %arg3[%c4, %c0_37, %c0_38] : memref<9x128x64xbf16, #tpu.memory_space<vmem>>, vector<1x128x64xbf16>
    %33 = vector.shape_cast %32 : vector<1x128x64xbf16> to vector<128x64xbf16>
    %cst_39 = arith.constant dense<0.000000e+00> : vector<1x64xf32>
    %34 = tpu.matmul %31, %33, %cst_39 {dimension_numbers = #tpu.dot_dimension_numbers<[1], [0], [0], [1], [0, 0, 1, 1], [], []>} : vector<1x128xbf16>, vector<128x64xbf16>, vector<1x64xf32> -> vector<1x64xf32>
    %35 = arith.addf %28, %34 : vector<1x64xf32>
    %c0_40 = arith.constant 0 : index
    %c0_41 = arith.constant 0 : index
    %c1_42 = arith.constant 1 : index
    %c2_43 = arith.constant 2 : index
    %c0_44 = arith.constant 0 : index
    %36 = vector.load %arg2[%c0_40, %c0_41, %c1_42, %c2_43, %c0_44] : memref<1x1x3x3x128xbf16, #tpu.memory_space<vmem>>, vector<1x1x1x1x128xbf16>
    %37 = vector.shape_cast %36 : vector<1x1x1x1x128xbf16> to vector<1x1x128xbf16>
    %38 = vector.shape_cast %37 : vector<1x1x128xbf16> to vector<1x128xbf16>
    %c5 = arith.constant 5 : index
    %c0_45 = arith.constant 0 : index
    %c0_46 = arith.constant 0 : index
    %39 = vector.load %arg3[%c5, %c0_45, %c0_46] : memref<9x128x64xbf16, #tpu.memory_space<vmem>>, vector<1x128x64xbf16>
    %40 = vector.shape_cast %39 : vector<1x128x64xbf16> to vector<128x64xbf16>
    %cst_47 = arith.constant dense<0.000000e+00> : vector<1x64xf32>
    %41 = tpu.matmul %38, %40, %cst_47 {dimension_numbers = #tpu.dot_dimension_numbers<[1], [0], [0], [1], [0, 0, 1, 1], [], []>} : vector<1x128xbf16>, vector<128x64xbf16>, vector<1x64xf32> -> vector<1x64xf32>
    %42 = arith.addf %35, %41 : vector<1x64xf32>
    %c0_48 = arith.constant 0 : index
    %c0_49 = arith.constant 0 : index
    %c2_50 = arith.constant 2 : index
    %c0_51 = arith.constant 0 : index
    %c0_52 = arith.constant 0 : index
    %43 = vector.load %arg2[%c0_48, %c0_49, %c2_50, %c0_51, %c0_52] : memref<1x1x3x3x128xbf16, #tpu.memory_space<vmem>>, vector<1x1x1x1x128xbf16>
    %44 = vector.shape_cast %43 : vector<1x1x1x1x128xbf16> to vector<1x1x128xbf16>
    %45 = vector.shape_cast %44 : vector<1x1x128xbf16> to vector<1x128xbf16>
    %c6 = arith.constant 6 : index
    %c0_53 = arith.constant 0 : index
    %c0_54 = arith.constant 0 : index
    %46 = vector.load %arg3[%c6, %c0_53, %c0_54] : memref<9x128x64xbf16, #tpu.memory_space<vmem>>, vector<1x128x64xbf16>
    %47 = vector.shape_cast %46 : vector<1x128x64xbf16> to vector<128x64xbf16>
    %cst_55 = arith.constant dense<0.000000e+00> : vector<1x64xf32>
    %48 = tpu.matmul %45, %47, %cst_55 {dimension_numbers = #tpu.dot_dimension_numbers<[1], [0], [0], [1], [0, 0, 1, 1], [], []>} : vector<1x128xbf16>, vector<128x64xbf16>, vector<1x64xf32> -> vector<1x64xf32>
    %49 = arith.addf %42, %48 : vector<1x64xf32>
    %c0_56 = arith.constant 0 : index
    %c0_57 = arith.constant 0 : index
    %c2_58 = arith.constant 2 : index
    %c1_59 = arith.constant 1 : index
    %c0_60 = arith.constant 0 : index
    %50 = vector.load %arg2[%c0_56, %c0_57, %c2_58, %c1_59, %c0_60] : memref<1x1x3x3x128xbf16, #tpu.memory_space<vmem>>, vector<1x1x1x1x128xbf16>
    %51 = vector.shape_cast %50 : vector<1x1x1x1x128xbf16> to vector<1x1x128xbf16>
    %52 = vector.shape_cast %51 : vector<1x1x128xbf16> to vector<1x128xbf16>
    %c7 = arith.constant 7 : index
    %c0_61 = arith.constant 0 : index
    %c0_62 = arith.constant 0 : index
    %53 = vector.load %arg3[%c7, %c0_61, %c0_62] : memref<9x128x64xbf16, #tpu.memory_space<vmem>>, vector<1x128x64xbf16>
    %54 = vector.shape_cast %53 : vector<1x128x64xbf16> to vector<128x64xbf16>
    %cst_63 = arith.constant dense<0.000000e+00> : vector<1x64xf32>
    %55 = tpu.matmul %52, %54, %cst_63 {dimension_numbers = #tpu.dot_dimension_numbers<[1], [0], [0], [1], [0, 0, 1, 1], [], []>} : vector<1x128xbf16>, vector<128x64xbf16>, vector<1x64xf32> -> vector<1x64xf32>
    %56 = arith.addf %49, %55 : vector<1x64xf32>
    %c0_64 = arith.constant 0 : index
    %c0_65 = arith.constant 0 : index
    %c2_66 = arith.constant 2 : index
    %c2_67 = arith.constant 2 : index
    %c0_68 = arith.constant 0 : index
    %57 = vector.load %arg2[%c0_64, %c0_65, %c2_66, %c2_67, %c0_68] : memref<1x1x3x3x128xbf16, #tpu.memory_space<vmem>>, vector<1x1x1x1x128xbf16>
    %58 = vector.shape_cast %57 : vector<1x1x1x1x128xbf16> to vector<1x1x128xbf16>
    %59 = vector.shape_cast %58 : vector<1x1x128xbf16> to vector<1x128xbf16>
    %c8 = arith.constant 8 : index
    %c0_69 = arith.constant 0 : index
    %c0_70 = arith.constant 0 : index
    %60 = vector.load %arg3[%c8, %c0_69, %c0_70] : memref<9x128x64xbf16, #tpu.memory_space<vmem>>, vector<1x128x64xbf16>
    %61 = vector.shape_cast %60 : vector<1x128x64xbf16> to vector<128x64xbf16>
    %cst_71 = arith.constant dense<0.000000e+00> : vector<1x64xf32>
    %62 = tpu.matmul %59, %61, %cst_71 {dimension_numbers = #tpu.dot_dimension_numbers<[1], [0], [0], [1], [0, 0, 1, 1], [], []>} : vector<1x128xbf16>, vector<128x64xbf16>, vector<1x64xf32> -> vector<1x64xf32>
    %63 = arith.addf %56, %62 : vector<1x64xf32>
    %c0_72 = arith.constant 0 : index
    %c0_73 = arith.constant 0 : index
    %64 = vector.load %arg4[%c0_72, %c0_73] : memref<1x64xf32, #tpu.memory_space<vmem>>, vector<1x64xf32>
    %65 = arith.addf %63, %64 : vector<1x64xf32>
    %66 = vector.shape_cast %65 : vector<1x64xf32> to vector<1x1x1x64xf32>
    %c0_74 = arith.constant 0 : index
    %c0_75 = arith.constant 0 : index
    %c0_76 = arith.constant 0 : index
    %c0_77 = arith.constant 0 : index
    %67 = vector.load %arg5[%c0_74, %c0_75, %c0_76, %c0_77] : memref<1x1x1x64xf32, #tpu.memory_space<vmem>>, vector<1x1x1x64xf32>
    tpu.vector_store %arg5[%c0_74, %c0_75, %c0_76, %c0_77], %66 {strides = array<i32>} : memref<1x1x1x64xf32, #tpu.memory_space<vmem>>, vector<1x1x1x64xf32>,
    return
  }
  func.func @transform_0(%arg0: i32, %arg1: i32) -> (i32, i32, i32, i32, i32) {
    %c0_i32 = arith.constant 0 : i32
    %c0_i32_0 = arith.constant 0 : i32
    %c0_i32_1 = arith.constant 0 : i32
    %c0_i32_2 = arith.constant 0 : i32
    return %arg0, %arg1, %c0_i32, %c0_i32_0, %c0_i32_1 : i32, i32, i32, i32, i32
  }
  func.func @transform_1(%arg0: i32, %arg1: i32) -> (i32, i32, i32) {
    %c0_i32 = arith.constant 0 : i32
    %c0_i32_0 = arith.constant 0 : i32
    %c0_i32_1 = arith.constant 0 : i32
    %c0_i32_2 = arith.constant 0 : i32
    return %c0_i32, %c0_i32_0, %c0_i32_1 : i32, i32, i32
  }
  func.func @transform_2(%arg0: i32, %arg1: i32) -> (i32, i32) {
    %c0_i32 = arith.constant 0 : i32
    %c0_i32_0 = arith.constant 0 : i32
    %c0_i32_1 = arith.constant 0 : i32
    return %c0_i32, %c0_i32_0 : i32, i32
  }
  func.func @transform_3(%arg0: i32, %arg1: i32) -> (i32, i32, i32, i32) {
    %c0_i32 = arith.constant 0 : i32
    %c0_i32_0 = arith.constant 0 : i32
    %c0_i32_1 = arith.constant 0 : i32
    return %arg0, %arg1, %c0_i32, %c0_i32_0 : i32, i32, i32, i32
  }
}

</mosaic_0001>

<llo_original>
// kernel: rgb_encoder_forward.4
$region0: #{rgb_encoder_forward.4}
  #allocation0 [shape = 'u32[]', space=smem, size = 0x4, offset = 0x4, fixed_abs, tag = 'smem constant byte address 0x4 - core index']
  #allocation1 [shape = 'u32[144,128]{1,0:T(1,128)}', space=vmem, size = 0x12000, scoped, tag = 'internal scratch']
  %s0 = inlined_call_operand.vmem [shape: bf16[2,1,8,8,128], index: 0, kind: input, shape index: {}]
  %s1 = inlined_call_operand.vmem [shape: bf16[1,128,32], index: 1, kind: input, shape index: {}]
  %s2 = inlined_call_operand.vmem [shape: f32[1,32], index: 2, kind: input, shape index: {}]
  %s3 = inlined_call_operand.vmem [shape: bf16[32,32], index: 3, kind: input, shape index: {}]
  %s4 = inlined_call_operand.vmem [shape: f32[1,32], index: 4, kind: input, shape index: {}]
  %s5 = inlined_call_operand.vmem [shape: bf16[2,1,64,32], index: 5, kind: output, shape index: {}]
  %s6 = sld [smem:[#allocation0]]
  $region53: #{rgb_encoder_forward.4} parent=0
    _
  %s8 = ssub.s32 1, %s6
  %s9 = scalar_select 0, %s8, %s6
  loop: start=0, step=1, limit=4
  $region2: #{rgb_encoder_forward.4} parent=0 // loop_pre_header
    _
  $region3: #{rgb_encoder_forward.4} parent=0 // loop_header
    %s11 = sphi 0, %s15
    %p12 = scmp.ge.s32.totalorder %s11, 4
    %s18 = sphi 0, %s30
    %s19 = sphi 0, %s26
    %s20 = sphi 0, %s18
    %s21 = sphi 0, %s19
    %s22 = sphi 0, %s20
    %s23 = sphi 0, %s21
    %s35 = sphi 0, %s37
    %s38 = sphi 0, %s35
    %s39 = sphi 0, %s38
    %s55 = sphi 0, %s39
    %s59 = sphi 0, %s59
    %s61 = sphi 0, %s59
    %s62 = sphi 0, %s61
    %s76 = sphi 0, %s62
    %s80 = sphi 0, %s80
    %s82 = sphi 0, %s80
    %s83 = sphi 0, %s82
    %s97 = sphi 0, %s83
    %s101 = sphi 0, %s101
    %s103 = sphi 0, %s101
    %s104 = sphi 0, %s103
    %s118 = sphi 0, %s104
    %s122 = sphi 0, %s122
    %s124 = sphi 0, %s122
    %s125 = sphi 0, %s124
    %s139 = sphi 0, %s125
    %s147 = sphi 0, %s149
    %s150 = sphi 0, %s147
    %s151 = sphi 0, %s150
    %s167 = sphi 0, %s151
  $region4: #{rgb_encoder_forward.4} parent=0 // loop_header_branch
    %14 = sbr.rel (%p12) target = $region8
  $region5: #{rgb_encoder_forward.4} parent=0 // loop_body
    %s16 = ssub.s32 %s11, 1
    %s17 = ssub.s32 %s11, 2
    %s24 = sadd.s32 1, %s19
    %p25 = scmp.ge.s32.totalorder %s24, 1
    %s26 = scalar_select %p25, 0, %s24
    %s27 = sadd.s32 1, %s18
    %s28 = scalar_select %p25, %s27, %s18
    %p29 = scmp.ge.s32.totalorder %s28, 2
    %s30 = scalar_select %p29, 0, %s28
    %s31 = ssub.s32 %s18, %s30
    %s32 = ssub.s32 %s19, %s26
    %s33 = sor.u32 %s31, %s32
    %p34 = scmp.eq.s32.totalorder %s33, 0
    %s36 = sadd.s32 %s35, 1
    %s37 = scalar_select %p34, %s35, %s36
    %p40 = pneg %p34
    %p41 = scmp.eq.s32.totalorder %s11, 1
    %p42 = por %p40, %p41
    %p43 = scmp.ne.s32.totalorder %s35, %s38
    %p44 = scmp.eq.s32.totalorder %s11, 0
    %p45 = por %p43, %p44
    %p46 = scmp.ne.s32.totalorder %s35, %s38
    %p47 = scmp.eq.s32.totalorder %s16, 1
    %p48 = por %p46, %p47
    %p49 = scmp.ne.s32.totalorder %s38, %s39
    %p50 = scmp.eq.s32.totalorder %s16, 0
    %p51 = por %p49, %p50
    %p52 = scmp.ne.s32.totalorder %s38, %s39
    %p53 = scmp.eq.s32.totalorder %s17, 1
    %p54 = por %p52, %p53
    %p56 = scmp.ne.s32.totalorder %s39, %s55
    %p57 = scmp.eq.s32.totalorder %s17, 0
    %p58 = por %p56, %p57
    %s60 = sadd.s32 %s59, 1
    %p63 = scmp.eq.s32.totalorder %s11, 1
    %p64 = scmp.ne.s32.totalorder %s59, %s61
    %p65 = scmp.eq.s32.totalorder %s11, 0
    %p66 = por %p64, %p65
    %p67 = scmp.ne.s32.totalorder %s59, %s61
    %p68 = scmp.eq.s32.totalorder %s16, 1
    %p69 = por %p67, %p68
    %p70 = scmp.ne.s32.totalorder %s61, %s62
    %p71 = scmp.eq.s32.totalorder %s16, 0
    %p72 = por %p70, %p71
    %p73 = scmp.ne.s32.totalorder %s61, %s62
    %p74 = scmp.eq.s32.totalorder %s17, 1
    %p75 = por %p73, %p74
    %p77 = scmp.ne.s32.totalorder %s62, %s76
    %p78 = scmp.eq.s32.totalorder %s17, 0
    %p79 = por %p77, %p78
    %s81 = sadd.s32 %s80, 1
    %p84 = scmp.eq.s32.totalorder %s11, 1
    %p85 = scmp.ne.s32.totalorder %s80, %s82
    %p86 = scmp.eq.s32.totalorder %s11, 0
    %p87 = por %p85, %p86
    %p88 = scmp.ne.s32.totalorder %s80, %s82
    %p89 = scmp.eq.s32.totalorder %s16, 1
    %p90 = por %p88, %p89
    %p91 = scmp.ne.s32.totalorder %s82, %s83
    %p92 = scmp.eq.s32.totalorder %s16, 0
    %p93 = por %p91, %p92
    %p94 = scmp.ne.s32.totalorder %s82, %s83
    %p95 = scmp.eq.s32.totalorder %s17, 1
    %p96 = por %p94, %p95
    %p98 = scmp.ne.s32.totalorder %s83, %s97
    %p99 = scmp.eq.s32.totalorder %s17, 0
    %p100 = por %p98, %p99
    %s102 = sadd.s32 %s101, 1
    %p105 = scmp.eq.s32.totalorder %s11, 1
    %p106 = scmp.ne.s32.totalorder %s101, %s103
    %p107 = scmp.eq.s32.totalorder %s11, 0
    %p108 = por %p106, %p107
    %p109 = scmp.ne.s32.totalorder %s101, %s103
    %p110 = scmp.eq.s32.totalorder %s16, 1
    %p111 = por %p109, %p110
    %p112 = scmp.ne.s32.totalorder %s103, %s104
    %p113 = scmp.eq.s32.totalorder %s16, 0
    %p114 = por %p112, %p113
    %p115 = scmp.ne.s32.totalorder %s103, %s104
    %p116 = scmp.eq.s32.totalorder %s17, 1
    %p117 = por %p115, %p116
    %p119 = scmp.ne.s32.totalorder %s104, %s118
    %p120 = scmp.eq.s32.totalorder %s17, 0
    %p121 = por %p119, %p120
    %s123 = sadd.s32 %s122, 1
    %p126 = scmp.eq.s32.totalorder %s11, 1
    %p127 = scmp.ne.s32.totalorder %s122, %s124
    %p128 = scmp.eq.s32.totalorder %s11, 0
    %p129 = por %p127, %p128
    %p130 = scmp.ne.s32.totalorder %s122, %s124
    %p131 = scmp.eq.s32.totalorder %s16, 1
    %p132 = por %p130, %p131
    %p133 = scmp.ne.s32.totalorder %s124, %s125
    %p134 = scmp.eq.s32.totalorder %s16, 0
    %p135 = por %p133, %p134
    %p136 = scmp.ne.s32.totalorder %s124, %s125
    %p137 = scmp.eq.s32.totalorder %s17, 1
    %p138 = por %p136, %p137
    %p140 = scmp.ne.s32.totalorder %s125, %s139
    %p141 = scmp.eq.s32.totalorder %s17, 0
    %p142 = por %p140, %p141
    %s143 = ssub.s32 %s18, %s30
    %s144 = ssub.s32 %s19, %s26
    %s145 = sor.u32 %s143, %s144
    %p146 = scmp.eq.s32.totalorder %s145, 0
    %s148 = sadd.s32 %s147, 1
    %s149 = scalar_select %p146, %s147, %s148
    %p152 = pneg %p146
    %p153 = scmp.eq.s32.totalorder %s11, 1
    %p154 = por %p152, %p153
    %p155 = scmp.ne.s32.totalorder %s147, %s150
    %p156 = scmp.eq.s32.totalorder %s11, 0
    %p157 = por %p155, %p156
    %p158 = scmp.ne.s32.totalorder %s147, %s150
    %p159 = scmp.eq.s32.totalorder %s16, 1
    %p160 = por %p158, %p159
    %p161 = scmp.ne.s32.totalorder %s150, %s151
    %p162 = scmp.eq.s32.totalorder %s16, 0
    %p163 = por %p161, %p162
    %p164 = scmp.ne.s32.totalorder %s150, %s151
    %p165 = scmp.eq.s32.totalorder %s17, 1
    %p166 = por %p164, %p165
    %p168 = scmp.ne.s32.totalorder %s151, %s167
    %p169 = scmp.eq.s32.totalorder %s17, 0
    %p170 = por %p168, %p169
    %p171 = scmp.le.s32.totalorder 1, %s11
    %p172 = scmp.lt.s32.totalorder %s11, 3
    %p173 = pnand %p171, %p172
    %p174 = pneg %p173
    // Predicated region
    $region9: #{rgb_encoder_forward.4} parent=5 // pred_check
      _
    $region10: #{rgb_encoder_forward.4} parent=5 // pred_check_branch
      %176 = sbr.rel (%p173) target = $region12
    $region11: #{rgb_encoder_forward.4} parent=5 // pred_region
      %s177 = ssub.s32 %s11, 1
      // Predicated region
      $region13: #{rgb_encoder_forward.4} parent=11 // pred_check
        %p178 = pneg %p72
      $region14: #{rgb_encoder_forward.4} parent=11 // pred_check_branch
        %180 = sbr.rel (%p178) target = $region16
      $region15: #{rgb_encoder_forward.4} parent=11 // pred_region
        _
      $region16: #{rgb_encoder_forward.4} parent=11 // pred_fallthru
        _
      // Predicated region
      $region17: #{rgb_encoder_forward.4} parent=11 // pred_check
        %p181 = pneg %p93
      $region18: #{rgb_encoder_forward.4} parent=11 // pred_check_branch
        %183 = sbr.rel (%p181) target = $region20
      $region19: #{rgb_encoder_forward.4} parent=11 // pred_region
        _
      $region20: #{rgb_encoder_forward.4} parent=11 // pred_fallthru
        _
      // Predicated region
      $region21: #{rgb_encoder_forward.4} parent=11 // pred_check
        %p184 = pneg %p114
      $region22: #{rgb_encoder_forward.4} parent=11 // pred_check_branch
        %186 = sbr.rel (%p184) target = $region24
      $region23: #{rgb_encoder_forward.4} parent=11 // pred_region
        _
      $region24: #{rgb_encoder_forward.4} parent=11 // pred_fallthru
        _
      // Predicated region
      $region25: #{rgb_encoder_forward.4} parent=11 // pred_check
        %p187 = pneg %p135
      $region26: #{rgb_encoder_forward.4} parent=11 // pred_check_branch
        %189 = sbr.rel (%p187) target = $region28
      $region27: #{rgb_encoder_forward.4} parent=11 // pred_region
        _
      $region28: #{rgb_encoder_forward.4} parent=11 // pred_fallthru
        _
    $region12: #{rgb_encoder_forward.4} parent=5 // pred_fallthru
      _
    %p190 = scmp.lt.s32.totalorder %s11, 2
    // Predicated region
    $region29: #{rgb_encoder_forward.4} parent=5 // pred_check
      %p191 = pneg %p190
    $region30: #{rgb_encoder_forward.4} parent=5 // pred_check_branch
      %193 = sbr.rel (%p191) target = $region32
    $region31: #{rgb_encoder_forward.4} parent=5 // pred_region
      // Predicated region
      $region33: #{rgb_encoder_forward.4} parent=31 // pred_check
        %p194 = pneg %p45
      $region34: #{rgb_encoder_forward.4} parent=31 // pred_check_branch
        %196 = sbr.rel (%p194) target = $region36
      $region35: #{rgb_encoder_forward.4} parent=31 // pred_region
        %p197 = scmp.lt.s32.totalorder %s18, 1
        %s198 = scalar_select %p197, %s18, 1
        %p199 = scmp.lt.s32.totalorder %s19, 0
        %s200 = scalar_select %p199, %s19, 0
        %s201 = smul.addr %s200, 8
        %s202 = smul.addr %s198, 8
        %s203 = sadd.s32 %s201, %s202
        %s204 = smul.addr %s203, 4
        %s205 = scalar_lea.vmem %s0, %s204
      $region36: #{rgb_encoder_forward.4} parent=31 // pred_fallthru
        _
    $region32: #{rgb_encoder_forward.4} parent=5 // pred_fallthru
      _
    %p206 = scmp.le.s32.totalorder 1, %s11
    %p207 = scmp.lt.s32.totalorder %s11, 3
    %p208 = pnand %p206, %p207
    %p209 = pneg %p208
    // Predicated region
    $region37: #{rgb_encoder_forward.4} parent=5 // pred_check
      _
    $region38: #{rgb_encoder_forward.4} parent=5 // pred_check_branch
      %211 = sbr.rel (%p208) target = $region40
    $region39: #{rgb_encoder_forward.4} parent=5 // pred_region
      %s212 = ssub.s32 %s11, 1
      %p213 = scmp.lt.s32.totalorder %s20, 1
      %s214 = scalar_select %p213, %s20, 1
      %p215 = scmp.lt.s32.totalorder %s21, 0
      %s216 = scalar_select %p215, %s21, 0
      %s217 = smul.addr %s216, 8
      %s218 = smul.addr %s214, 8
      %s219 = sadd.s32 %s217, %s218
      %s220 = smul.addr %s219, 4
      %s221 = scalar_lea.vmem %s0, %s220
      %p222 = pneg %p51
      %p223 = pneg %p48
      %p224 = pneg %p72
      %p225 = pneg %p69
      %p226 = pneg %p93
      %p227 = pneg %p90
      %p228 = pneg %p114
      %p229 = pneg %p111
      %p230 = pneg %p135
      %p231 = pneg %p132
      %p232 = pneg %p163
      %p233 = pneg %p160
      %p234 = scmp.lt.s32.totalorder %s20, 1
      %s235 = scalar_select %p234, %s20, 1
      %p236 = scmp.lt.s32.totalorder %s21, 0
      %s237 = scalar_select %p236, %s21, 0
      %s238 = smul.addr %s237, 8
      %s239 = smul.addr %s235, 8
      %s240 = sadd.s32 %s238, %s239
      %s241 = smul.addr %s240, 4
      %s242 = scalar_lea.vmem %s5, %s241
      %p243 = scmp.lt.s32.totalorder %s20, 1
      %s244 = scalar_select %p243, %s20, 1
      %p245 = scmp.lt.s32.totalorder %s21, 0
      %s246 = scalar_select %p245, %s21, 0
      %s247 = smul.addr %s246, 8
      %s248 = smul.addr %s244, 8
      %s249 = sadd.s32 %s247, %s248
      %s250 = smul.addr %s249, 4
      %s251 = scalar_lea.vmem %s0, %s250
      %p252 = scmp.lt.s32.totalorder %s20, 1
      %s253 = scalar_select %p252, %s20, 1
      %p254 = scmp.lt.s32.totalorder %s21, 0
      %s255 = scalar_select %p254, %s21, 0
      %s256 = smul.addr %s255, 8
      %s257 = smul.addr %s253, 8
      %s258 = sadd.s32 %s256, %s257
      %s259 = smul.addr %s258, 4
      %s260 = scalar_lea.vmem %s5, %s259
      %v262 = vld [vmem:[%s251] sm:$0xf]
      %v263 = vld [vmem:[%s251 + $0x4] sm:$0xf]
      %v264 = vld [vmem:[%s251 + $0x8] sm:$0xf]
      %v265 = vld [vmem:[%s251 + $0xc] sm:$0xf]
      %v266 = vld [vmem:[%s251 + $0x10] sm:$0xf]
      %v267 = vld [vmem:[%s251 + $0x14] sm:$0xf]
      %v268 = vld [vmem:[%s251 + $0x18] sm:$0xf]
      %v269 = vld [vmem:[%s251 + $0x1c] sm:$0xf]
      %v270 = vld [vmem:[%s1] sm:$0xf]
      %v271 = vld [vmem:[%s1 + $0x4] sm:$0xf]
      %v272 = vld [vmem:[%s1 + $0x8] sm:$0xf]
      %v273 = vld [vmem:[%s1 + $0xc] sm:$0xf]
      %v274 = vld [vmem:[%s1 + $0x10] sm:$0xf]
      %v275 = vld [vmem:[%s1 + $0x14] sm:$0xf]
      %v276 = vld [vmem:[%s1 + $0x18] sm:$0xf]
      %v277 = vld [vmem:[%s1 + $0x1c] sm:$0xf]
      %v278 = vld [vmem:[%s1 + $0x20] sm:$0xf]
      %v279 = vld [vmem:[%s1 + $0x24] sm:$0xf]
      %v280 = vld [vmem:[%s1 + $0x28] sm:$0xf]
      %v281 = vld [vmem:[%s1 + $0x2c] sm:$0xf]
      %v282 = vld [vmem:[%s1 + $0x30] sm:$0xf]
      %v283 = vld [vmem:[%s1 + $0x34] sm:$0xf]
      %v284 = vld [vmem:[%s1 + $0x38] sm:$0xf]
      %v285 = vld [vmem:[%s1 + $0x3c] sm:$0xf]
      %v286 = vld [vmem:[%s2] sm:$0x1]
      %v288 = vlaneseq
      %v289 = vshrl.u32 %v288, 7
      %v290 = vsub.s32 0, %v289
      %v291 = vrot.slane %v286, %v290
      %v301 = vunpack.c.l.b16 %v262
      %v302 = vunpack.c.l.b16 %v263
      %v303 = vunpack.c.l.b16 %v264
      %v304 = vunpack.c.l.b16 %v265
      %v305 = vunpack.c.l.b16 %v266
      %v306 = vunpack.c.l.b16 %v267
      %v307 = vunpack.c.l.b16 %v268
      %v308 = vunpack.c.l.b16 %v269
      %v309 = vpack.c.b16 %v302, %v301
      %v310 = vpack.c.b16 %v304, %v303
      %v311 = vpack.c.b16 %v306, %v305
      %v312 = vpack.c.b16 %v308, %v307
      %v333 = vunpack.c.l.b16 %v270
      %v334 = vunpack.c.l.b16 %v271
      %v335 = vunpack.c.l.b16 %v272
      %v336 = vunpack.c.l.b16 %v273
      %v337 = vunpack.c.l.b16 %v274
      %v338 = vunpack.c.l.b16 %v275
      %v339 = vunpack.c.l.b16 %v276
      %v340 = vunpack.c.l.b16 %v277
      %v341 = vunpack.c.l.b16 %v278
      %v342 = vunpack.c.l.b16 %v279
      %v343 = vunpack.c.l.b16 %v280
      %v344 = vunpack.c.l.b16 %v281
      %v345 = vunpack.c.l.b16 %v282
      %v346 = vunpack.c.l.b16 %v283
      %v347 = vunpack.c.l.b16 %v284
      %v348 = vunpack.c.l.b16 %v285
      %v349 = vpack.c.b16 %v334, %v333
      %v350 = vpack.c.b16 %v336, %v335
      %v351 = vpack.c.b16 %v338, %v337
      %v352 = vpack.c.b16 %v340, %v339
      %v353 = vpack.c.b16 %v342, %v341
      %v354 = vpack.c.b16 %v344, %v343
      %v355 = vpack.c.b16 %v346, %v345
      %v356 = vpack.c.b16 %v348, %v347
      %365 = vmatprep.subr.bf16.mxu0 0
      %366 = vmatpush1.bf16.msra.mxu0 %v349
      %367 = vmatprep.subr.bf16.mxu0 0
      %368 = vmatpush1.bf16.msra.mxu0 %v350
      %369 = vmatprep.subr.bf16.mxu0 0
      %370 = vmatpush1.bf16.msra.mxu0 %v351
      %371 = vmatprep.subr.bf16.mxu0 0
      %372 = vmatpush1.bf16.msra.mxu0 %v352
      %373 = vmatprep.subr.bf16.mxu0 0
      %374 = vmatpush1.bf16.msra.mxu0 %v353
      %375 = vmatprep.subr.bf16.mxu0 0
      %376 = vmatpush1.bf16.msra.mxu0 %v354
      %377 = vmatprep.subr.bf16.mxu0 0
      %378 = vmatpush1.bf16.msra.mxu0 %v355
      %379 = vmatprep.subr.bf16.mxu0 0
      %380 = vmatpush1.bf16.msra.mxu0 %v356
      %381 = vmatprep.subr.bf16.mxu0 0
      %382 = vmatpush1.bf16.msra.mxu0 0
      %383 = vmatprep.subr.bf16.mxu0 0
      %384 = vmatpush1.bf16.msra.mxu0 0
      %385 = vmatprep.subr.bf16.mxu0 0
      %386 = vmatpush1.bf16.msra.mxu0 0
      %387 = vmatprep.subr.bf16.mxu0 0
      %388 = vmatpush1.bf16.msra.mxu0 0
      %389 = vmatprep.subr.bf16.mxu0 0
      %390 = vmatpush1.bf16.msra.mxu0 0
      %391 = vmatprep.subr.bf16.mxu0 0
      %392 = vmatpush1.bf16.msra.mxu0 0
      %393 = vmatprep.subr.bf16.mxu0 0
      %394 = vmatpush1.bf16.msra.mxu0 0
      %395 = vmatprep.subr.bf16.mxu0 0
      %396 = vmatpush1.bf16.msra.mxu0 0
      %397 = vmatprep.mubr.bf16.mxu0 0
      %398 = vmatmul.mubr.bf16.gmra.mrb[0].mxu0 %v309
      %v399 = vpop.f32.mrb[0].mxu0
      %v400 = vadd.f32 %v291, %v399
      %v401 = vpop.f32.mrb[0].mxu0
      %v402 = vpop.f32.mrb[0].mxu0
      %v403 = vadd.f32 %v291, %v402
      %v404 = vpop.f32.mrb[0].mxu0
      %405 = vmatprep.mubr.bf16.mxu0 0
      %406 = vmatmul.mubr.bf16.gmra.mrb[0].mxu0 %v310
      %v407 = vpop.f32.mrb[0].mxu0
      %v408 = vadd.f32 %v291, %v407
      %v409 = vpop.f32.mrb[0].mxu0
      %v410 = vpop.f32.mrb[0].mxu0
      %v411 = vadd.f32 %v291, %v410
      %v412 = vpop.f32.mrb[0].mxu0
      %413 = vmatprep.mubr.bf16.mxu0 0
      %414 = vmatmul.mubr.bf16.gmra.mrb[0].mxu0 %v311
      %v415 = vpop.f32.mrb[0].mxu0
      %v416 = vadd.f32 %v291, %v415
      %v417 = vpop.f32.mrb[0].mxu0
      %v418 = vpop.f32.mrb[0].mxu0
      %v419 = vadd.f32 %v291, %v418
      %v420 = vpop.f32.mrb[0].mxu0
      %421 = vmatprep.mubr.bf16.mxu0 0
      %422 = vmatmul.mubr.bf16.gmra.mrb[0].mxu0 %v312
      %v423 = vpop.f32.mrb[0].mxu0
      %v424 = vadd.f32 %v291, %v423
      %v425 = vpop.f32.mrb[0].mxu0
      %v426 = vpop.f32.mrb[0].mxu0
      %v427 = vadd.f32 %v291, %v426
      %v428 = vpop.f32.mrb[0].mxu0
      %429 = vdwg.mxu0
      %v430 = vmul.f32 %v400, %v400
      %v431 = vmul.f32 %v403, %v403
      %v432 = vmul.f32 %v408, %v408
      %v433 = vmul.f32 %v411, %v411
      %v434 = vmul.f32 %v416, %v416
      %v435 = vmul.f32 %v419, %v419
      %v436 = vmul.f32 %v424, %v424
      %v437 = vmul.f32 %v427, %v427
      %v438 = vpack.c.bf16 %v431, %v430
      %v439 = vpack.c.bf16 %v433, %v432
      %v440 = vpack.c.bf16 %v435, %v434
      %v441 = vpack.c.bf16 %v437, %v436
      %v442 = vld [vmem:[%s3] sm:$0xf]
      %v443 = vld [vmem:[%s3 + $0x4] sm:$0xf]
      %v444 = vld [vmem:[%s3 + $0x8] sm:$0xf]
      %v445 = vld [vmem:[%s3 + $0xc] sm:$0xf]
      %v446 = vld [vmem:[%s4] sm:$0x1]
      %v448 = vlaneseq
      %v449 = vshrl.u32 %v448, 7
      %v450 = vsub.s32 0, %v449
      %v451 = vrot.slane %v446, %v450
      %v457 = vunpack.c.l.b16 %v442
      %v458 = vunpack.c.l.b16 %v443
      %v459 = vunpack.c.l.b16 %v444
      %v460 = vunpack.c.l.b16 %v445
      %v461 = vpack.c.b16 %v458, %v457
      %v462 = vpack.c.b16 %v460, %v459
      %vm465 = vcmask 261120
      %v467 = vsel %vm465, %v438, 0
      %v470 = vsel %vm465, %v439, 0
      %v473 = vsel %vm465, %v440, 0
      %v476 = vsel %vm465, %v441, 0
      %478 = vmatprep.subr.bf16.mxu0 0
      %479 = vmatpush1.bf16.msra.mxu0 %v461
      %480 = vmatprep.subr.bf16.mxu0 0
      %481 = vmatpush1.bf16.msra.mxu0 %v462
      %482 = vmatprep.subr.bf16.mxu0 0
      %483 = vmatpush1.bf16.msra.mxu0 0
      %484 = vmatprep.subr.bf16.mxu0 0
      %485 = vmatpush1.bf16.msra.mxu0 0
      %486 = vmatprep.subr.bf16.mxu0 0
      %487 = vmatpush1.bf16.msra.mxu0 0
      %488 = vmatprep.subr.bf16.mxu0 0
      %489 = vmatpush1.bf16.msra.mxu0 0
      %490 = vmatprep.subr.bf16.mxu0 0
      %491 = vmatpush1.bf16.msra.mxu0 0
      %492 = vmatprep.subr.bf16.mxu0 0
      %493 = vmatpush1.bf16.msra.mxu0 0
      %494 = vmatprep.subr.bf16.mxu0 0
      %495 = vmatpush1.bf16.msra.mxu0 0
      %496 = vmatprep.subr.bf16.mxu0 0
      %497 = vmatpush1.bf16.msra.mxu0 0
      %498 = vmatprep.subr.bf16.mxu0 0
      %499 = vmatpush1.bf16.msra.mxu0 0
      %500 = vmatprep.subr.bf16.mxu0 0
      %501 = vmatpush1.bf16.msra.mxu0 0
      %502 = vmatprep.subr.bf16.mxu0 0
      %503 = vmatpush1.bf16.msra.mxu0 0
      %504 = vmatprep.subr.bf16.mxu0 0
      %505 = vmatpush1.bf16.msra.mxu0 0
      %506 = vmatprep.subr.bf16.mxu0 0
      %507 = vmatpush1.bf16.msra.mxu0 0
      %508 = vmatprep.subr.bf16.mxu0 0
      %509 = vmatpush1.bf16.msra.mxu0 0
      %510 = vmatprep.mubr.bf16.mxu0 0
      %511 = vmatmul.mubr.bf16.gmra.mrb[0].mxu0 %v467
      %v512 = vpop.f32.mrb[0].mxu0
      %v513 = vadd.f32 %v451, %v512
      %v514 = vpop.f32.mrb[0].mxu0
      %v515 = vpop.f32.mrb[0].mxu0
      %v516 = vadd.f32 %v451, %v515
      %v517 = vpop.f32.mrb[0].mxu0
      %518 = vmatprep.mubr.bf16.mxu0 0
      %519 = vmatmul.mubr.bf16.gmra.mrb[0].mxu0 %v470
      %v520 = vpop.f32.mrb[0].mxu0
      %v521 = vadd.f32 %v451, %v520
      %v522 = vpop.f32.mrb[0].mxu0
      %v523 = vpop.f32.mrb[0].mxu0
      %v524 = vadd.f32 %v451, %v523
      %v525 = vpop.f32.mrb[0].mxu0
      %526 = vmatprep.mubr.bf16.mxu0 0
      %527 = vmatmul.mubr.bf16.gmra.mrb[0].mxu0 %v473
      %v528 = vpop.f32.mrb[0].mxu0
      %v529 = vadd.f32 %v451, %v528
      %v530 = vpop.f32.mrb[0].mxu0
      %v531 = vpop.f32.mrb[0].mxu0
      %v532 = vadd.f32 %v451, %v531
      %v533 = vpop.f32.mrb[0].mxu0
      %534 = vmatprep.mubr.bf16.mxu0 0
      %535 = vmatmul.mubr.bf16.gmra.mrb[0].mxu0 %v476
      %v536 = vpop.f32.mrb[0].mxu0
      %v537 = vadd.f32 %v451, %v536
      %v538 = vpop.f32.mrb[0].mxu0
      %v539 = vpop.f32.mrb[0].mxu0
      %v540 = vadd.f32 %v451, %v539
      %v541 = vpop.f32.mrb[0].mxu0
      %542 = vdwg.mxu0
      %v543 = vrsqrt.pop %v513
      %v544 = vrsqrt.pop %v516
      %v545 = vrsqrt.pop %v521
      %v546 = vrsqrt.pop %v524
      %v547 = vrsqrt.pop %v529
      %v548 = vrsqrt.pop %v532
      %v549 = vrsqrt.pop %v537
      %v550 = vrsqrt.pop %v540
      %v551 = vmul.f32 %v400, %v543
      %v552 = vmul.f32 %v403, %v544
      %v553 = vmul.f32 %v408, %v545
      %v554 = vmul.f32 %v411, %v546
      %v555 = vmul.f32 %v416, %v547
      %v556 = vmul.f32 %v419, %v548
      %v557 = vmul.f32 %v424, %v549
      %v558 = vmul.f32 %v427, %v550
      %v559 = vpack.c.bf16 %v552, %v551
      %v560 = vpack.c.bf16 %v554, %v553
      %v561 = vpack.c.bf16 %v556, %v555
      %v562 = vpack.c.bf16 %v558, %v557
      %v567 = vunpack.c.l.b16 %v559
      %v568 = vunpack.c.h.b16 %v559
      %v569 = vunpack.c.l.b16 %v560
      %v570 = vunpack.c.h.b16 %v560
      %v571 = vunpack.c.l.b16 %v561
      %v572 = vunpack.c.h.b16 %v561
      %v573 = vunpack.c.l.b16 %v562
      %v574 = vunpack.c.h.b16 %v562
      %v575 = vpack.c.b16 %v567, %v567
      %v576 = vpack.c.b16 %v568, %v568
      %v577 = vpack.c.b16 %v569, %v569
      %v578 = vpack.c.b16 %v570, %v570
      %v579 = vpack.c.b16 %v571, %v571
      %v580 = vpack.c.b16 %v572, %v572
      %v581 = vpack.c.b16 %v573, %v573
      %v582 = vpack.c.b16 %v574, %v574
      %vm591 = vcmask 257024
      %592 = vst.msk [vmem:[%s260] sm:$0xf] %vm591, %v575
      %593 = vst.msk [vmem:[%s260 + $0x4] sm:$0xf] %vm591, %v576
      %594 = vst.msk [vmem:[%s260 + $0x8] sm:$0xf] %vm591, %v577
      %595 = vst.msk [vmem:[%s260 + $0xc] sm:$0xf] %vm591, %v578
      %596 = vst.msk [vmem:[%s260 + $0x10] sm:$0xf] %vm591, %v579
      %597 = vst.msk [vmem:[%s260 + $0x14] sm:$0xf] %vm591, %v580
      %598 = vst.msk [vmem:[%s260 + $0x18] sm:$0xf] %vm591, %v581
      %599 = vst.msk [vmem:[%s260 + $0x1c] sm:$0xf] %vm591, %v582
      %p600 = scmp.lt.s32.totalorder %s20, 1
      %s601 = scalar_select %p600, %s20, 1
      %p602 = scmp.lt.s32.totalorder %s21, 0
      %s603 = scalar_select %p602, %s21, 0
      %s604 = smul.addr %s603, 8
      %s605 = smul.addr %s601, 8
      %s606 = sadd.s32 %s604, %s605
      %s607 = smul.addr %s606, 4
      %s608 = scalar_lea.vmem %s5, %s607
      // Predicated region
      $region41: #{rgb_encoder_forward.4} parent=39 // pred_check
        %p609 = pneg %p160
      $region42: #{rgb_encoder_forward.4} parent=39 // pred_check_branch
        %611 = sbr.rel (%p609) target = $region44
      $region43: #{rgb_encoder_forward.4} parent=39 // pred_region
        _
      $region44: #{rgb_encoder_forward.4} parent=39 // pred_fallthru
        _
    $region40: #{rgb_encoder_forward.4} parent=5 // pred_fallthru
      _
    %p612 = scmp.le.s32.totalorder 2, %s11
    // Predicated region
    $region45: #{rgb_encoder_forward.4} parent=5 // pred_check
      %p613 = pneg %p612
    $region46: #{rgb_encoder_forward.4} parent=5 // pred_check_branch
      %615 = sbr.rel (%p613) target = $region48
    $region47: #{rgb_encoder_forward.4} parent=5 // pred_region
      %s616 = ssub.s32 %s11, 2
      // Predicated region
      $region49: #{rgb_encoder_forward.4} parent=47 // pred_check
        %p617 = pneg %p166
      $region50: #{rgb_encoder_forward.4} parent=47 // pred_check_branch
        %619 = sbr.rel (%p617) target = $region52
      $region51: #{rgb_encoder_forward.4} parent=47 // pred_region
        %p620 = scmp.lt.s32.totalorder %s22, 1
        %s621 = scalar_select %p620, %s22, 1
        %p622 = scmp.lt.s32.totalorder %s23, 0
        %s623 = scalar_select %p622, %s23, 0
        %s624 = smul.addr %s623, 8
        %s625 = smul.addr %s621, 8
        %s626 = sadd.s32 %s624, %s625
        %s627 = smul.addr %s626, 4
        %s628 = scalar_lea.vmem %s5, %s627
      $region52: #{rgb_encoder_forward.4} parent=47 // pred_fallthru
        _
    $region48: #{rgb_encoder_forward.4} parent=5 // pred_fallthru
      _
  $region6: #{rgb_encoder_forward.4} parent=0 // loop_footer
    %s15 = sadd.s32 1, %s11
  $region7: #{rgb_encoder_forward.4} parent=0 // loop_footer_branch
    %10 = sbr.rel target = $region3
  $region8: #{rgb_encoder_forward.4} parent=0 // loop_exit
    _

// kernel: rgb_encoder_forward.5
$region0: #{rgb_encoder_forward.5}
  #allocation0 [shape = 'u32[]', space=smem, size = 0x4, offset = 0x4, fixed_abs, tag = 'smem constant byte address 0x4 - core index']
  #allocation1 [shape = 'u32[144,128]{1,0:T(1,128)}', space=vmem, size = 0x12000, scoped, tag = 'internal scratch']
  %s0 = inlined_call_operand.vmem [shape: bf16[2,1,6,6,128], index: 0, kind: input, shape index: {}]
  %s1 = inlined_call_operand.vmem [shape: bf16[9,128,32], index: 1, kind: input, shape index: {}]
  %s2 = inlined_call_operand.vmem [shape: f32[1,32], index: 2, kind: input, shape index: {}]
  %s3 = inlined_call_operand.vmem [shape: bf16[32,32], index: 3, kind: input, shape index: {}]
  %s4 = inlined_call_operand.vmem [shape: f32[1,32], index: 4, kind: input, shape index: {}]
  %s5 = inlined_call_operand.vmem [shape: bf16[2,1,16,32], index: 5, kind: output, shape index: {}]
  %s6 = sld [smem:[#allocation0]]
  $region53: #{rgb_encoder_forward.5} parent=0
    _
  %s8 = ssub.s32 1, %s6
  %s9 = scalar_select 0, %s8, %s6
  loop: start=0, step=1, limit=4
  $region2: #{rgb_encoder_forward.5} parent=0 // loop_pre_header
    _
  $region3: #{rgb_encoder_forward.5} parent=0 // loop_header
    %s11 = sphi 0, %s15
    %p12 = scmp.ge.s32.totalorder %s11, 4
    %s18 = sphi 0, %s30
    %s19 = sphi 0, %s26
    %s20 = sphi 0, %s18
    %s21 = sphi 0, %s19
    %s22 = sphi 0, %s20
    %s23 = sphi 0, %s21
    %s35 = sphi 0, %s37
    %s38 = sphi 0, %s35
    %s39 = sphi 0, %s38
    %s55 = sphi 0, %s39
    %s59 = sphi 0, %s59
    %s61 = sphi 0, %s59
    %s62 = sphi 0, %s61
    %s76 = sphi 0, %s62
    %s80 = sphi 0, %s80
    %s82 = sphi 0, %s80
    %s83 = sphi 0, %s82
    %s97 = sphi 0, %s83
    %s101 = sphi 0, %s101
    %s103 = sphi 0, %s101
    %s104 = sphi 0, %s103
    %s118 = sphi 0, %s104
    %s122 = sphi 0, %s122
    %s124 = sphi 0, %s122
    %s125 = sphi 0, %s124
    %s139 = sphi 0, %s125
    %s147 = sphi 0, %s149
    %s150 = sphi 0, %s147
    %s151 = sphi 0, %s150
    %s167 = sphi 0, %s151
  $region4: #{rgb_encoder_forward.5} parent=0 // loop_header_branch
    %14 = sbr.rel (%p12) target = $region8
  $region5: #{rgb_encoder_forward.5} parent=0 // loop_body
    %s16 = ssub.s32 %s11, 1
    %s17 = ssub.s32 %s11, 2
    %s24 = sadd.s32 1, %s19
    %p25 = scmp.ge.s32.totalorder %s24, 1
    %s26 = scalar_select %p25, 0, %s24
    %s27 = sadd.s32 1, %s18
    %s28 = scalar_select %p25, %s27, %s18
    %p29 = scmp.ge.s32.totalorder %s28, 2
    %s30 = scalar_select %p29, 0, %s28
    %s31 = ssub.s32 %s18, %s30
    %s32 = ssub.s32 %s19, %s26
    %s33 = sor.u32 %s31, %s32
    %p34 = scmp.eq.s32.totalorder %s33, 0
    %s36 = sadd.s32 %s35, 1
    %s37 = scalar_select %p34, %s35, %s36
    %p40 = pneg %p34
    %p41 = scmp.eq.s32.totalorder %s11, 1
    %p42 = por %p40, %p41
    %p43 = scmp.ne.s32.totalorder %s35, %s38
    %p44 = scmp.eq.s32.totalorder %s11, 0
    %p45 = por %p43, %p44
    %p46 = scmp.ne.s32.totalorder %s35, %s38
    %p47 = scmp.eq.s32.totalorder %s16, 1
    %p48 = por %p46, %p47
    %p49 = scmp.ne.s32.totalorder %s38, %s39
    %p50 = scmp.eq.s32.totalorder %s16, 0
    %p51 = por %p49, %p50
    %p52 = scmp.ne.s32.totalorder %s38, %s39
    %p53 = scmp.eq.s32.totalorder %s17, 1
    %p54 = por %p52, %p53
    %p56 = scmp.ne.s32.totalorder %s39, %s55
    %p57 = scmp.eq.s32.totalorder %s17, 0
    %p58 = por %p56, %p57
    %s60 = sadd.s32 %s59, 1
    %p63 = scmp.eq.s32.totalorder %s11, 1
    %p64 = scmp.ne.s32.totalorder %s59, %s61
    %p65 = scmp.eq.s32.totalorder %s11, 0
    %p66 = por %p64, %p65
    %p67 = scmp.ne.s32.totalorder %s59, %s61
    %p68 = scmp.eq.s32.totalorder %s16, 1
    %p69 = por %p67, %p68
    %p70 = scmp.ne.s32.totalorder %s61, %s62
    %p71 = scmp.eq.s32.totalorder %s16, 0
    %p72 = por %p70, %p71
    %p73 = scmp.ne.s32.totalorder %s61, %s62
    %p74 = scmp.eq.s32.totalorder %s17, 1
    %p75 = por %p73, %p74
    %p77 = scmp.ne.s32.totalorder %s62, %s76
    %p78 = scmp.eq.s32.totalorder %s17, 0
    %p79 = por %p77, %p78
    %s81 = sadd.s32 %s80, 1
    %p84 = scmp.eq.s32.totalorder %s11, 1
    %p85 = scmp.ne.s32.totalorder %s80, %s82
    %p86 = scmp.eq.s32.totalorder %s11, 0
    %p87 = por %p85, %p86
    %p88 = scmp.ne.s32.totalorder %s80, %s82
    %p89 = scmp.eq.s32.totalorder %s16, 1
    %p90 = por %p88, %p89
    %p91 = scmp.ne.s32.totalorder %s82, %s83
    %p92 = scmp.eq.s32.totalorder %s16, 0
    %p93 = por %p91, %p92
    %p94 = scmp.ne.s32.totalorder %s82, %s83
    %p95 = scmp.eq.s32.totalorder %s17, 1
    %p96 = por %p94, %p95
    %p98 = scmp.ne.s32.totalorder %s83, %s97
    %p99 = scmp.eq.s32.totalorder %s17, 0
    %p100 = por %p98, %p99
    %s102 = sadd.s32 %s101, 1
    %p105 = scmp.eq.s32.totalorder %s11, 1
    %p106 = scmp.ne.s32.totalorder %s101, %s103
    %p107 = scmp.eq.s32.totalorder %s11, 0
    %p108 = por %p106, %p107
    %p109 = scmp.ne.s32.totalorder %s101, %s103
    %p110 = scmp.eq.s32.totalorder %s16, 1
    %p111 = por %p109, %p110
    %p112 = scmp.ne.s32.totalorder %s103, %s104
    %p113 = scmp.eq.s32.totalorder %s16, 0
    %p114 = por %p112, %p113
    %p115 = scmp.ne.s32.totalorder %s103, %s104
    %p116 = scmp.eq.s32.totalorder %s17, 1
    %p117 = por %p115, %p116
    %p119 = scmp.ne.s32.totalorder %s104, %s118
    %p120 = scmp.eq.s32.totalorder %s17, 0
    %p121 = por %p119, %p120
    %s123 = sadd.s32 %s122, 1
    %p126 = scmp.eq.s32.totalorder %s11, 1
    %p127 = scmp.ne.s32.totalorder %s122, %s124
    %p128 = scmp.eq.s32.totalorder %s11, 0
    %p129 = por %p127, %p128
    %p130 = scmp.ne.s32.totalorder %s122, %s124
    %p131 = scmp.eq.s32.totalorder %s16, 1
    %p132 = por %p130, %p131
    %p133 = scmp.ne.s32.totalorder %s124, %s125
    %p134 = scmp.eq.s32.totalorder %s16, 0
    %p135 = por %p133, %p134
    %p136 = scmp.ne.s32.totalorder %s124, %s125
    %p137 = scmp.eq.s32.totalorder %s17, 1
    %p138 = por %p136, %p137
    %p140 = scmp.ne.s32.totalorder %s125, %s139
    %p141 = scmp.eq.s32.totalorder %s17, 0
    %p142 = por %p140, %p141
    %s143 = ssub.s32 %s18, %s30
    %s144 = ssub.s32 %s19, %s26
    %s145 = sor.u32 %s143, %s144
    %p146 = scmp.eq.s32.totalorder %s145, 0
    %s148 = sadd.s32 %s147, 1
    %s149 = scalar_select %p146, %s147, %s148
    %p152 = pneg %p146
    %p153 = scmp.eq.s32.totalorder %s11, 1
    %p154 = por %p152, %p153
    %p155 = scmp.ne.s32.totalorder %s147, %s150
    %p156 = scmp.eq.s32.totalorder %s11, 0
    %p157 = por %p155, %p156
    %p158 = scmp.ne.s32.totalorder %s147, %s150
    %p159 = scmp.eq.s32.totalorder %s16, 1
    %p160 = por %p158, %p159
    %p161 = scmp.ne.s32.totalorder %s150, %s151
    %p162 = scmp.eq.s32.totalorder %s16, 0
    %p163 = por %p161, %p162
    %p164 = scmp.ne.s32.totalorder %s150, %s151
    %p165 = scmp.eq.s32.totalorder %s17, 1
    %p166 = por %p164, %p165
    %p168 = scmp.ne.s32.totalorder %s151, %s167
    %p169 = scmp.eq.s32.totalorder %s17, 0
    %p170 = por %p168, %p169
    %p171 = scmp.le.s32.totalorder 1, %s11
    %p172 = scmp.lt.s32.totalorder %s11, 3
    %p173 = pnand %p171, %p172
    %p174 = pneg %p173
    // Predicated region
    $region9: #{rgb_encoder_forward.5} parent=5 // pred_check
      _
    $region10: #{rgb_encoder_forward.5} parent=5 // pred_check_branch
      %176 = sbr.rel (%p173) target = $region12
    $region11: #{rgb_encoder_forward.5} parent=5 // pred_region
      %s177 = ssub.s32 %s11, 1
      // Predicated region
      $region13: #{rgb_encoder_forward.5} parent=11 // pred_check
        %p178 = pneg %p72
      $region14: #{rgb_encoder_forward.5} parent=11 // pred_check_branch
        %180 = sbr.rel (%p178) target = $region16
      $region15: #{rgb_encoder_forward.5} parent=11 // pred_region
        _
      $region16: #{rgb_encoder_forward.5} parent=11 // pred_fallthru
        _
      // Predicated region
      $region17: #{rgb_encoder_forward.5} parent=11 // pred_check
        %p181 = pneg %p93
      $region18: #{rgb_encoder_forward.5} parent=11 // pred_check_branch
        %183 = sbr.rel (%p181) target = $region20
      $region19: #{rgb_encoder_forward.5} parent=11 // pred_region
        _
      $region20: #{rgb_encoder_forward.5} parent=11 // pred_fallthru
        _
      // Predicated region
      $region21: #{rgb_encoder_forward.5} parent=11 // pred_check
        %p184 = pneg %p114
      $region22: #{rgb_encoder_forward.5} parent=11 // pred_check_branch
        %186 = sbr.rel (%p184) target = $region24
      $region23: #{rgb_encoder_forward.5} parent=11 // pred_region
        _
      $region24: #{rgb_encoder_forward.5} parent=11 // pred_fallthru
        _
      // Predicated region
      $region25: #{rgb_encoder_forward.5} parent=11 // pred_check
        %p187 = pneg %p135
      $region26: #{rgb_encoder_forward.5} parent=11 // pred_check_branch
        %189 = sbr.rel (%p187) target = $region28
      $region27: #{rgb_encoder_forward.5} parent=11 // pred_region
        _
      $region28: #{rgb_encoder_forward.5} parent=11 // pred_fallthru
        _
    $region12: #{rgb_encoder_forward.5} parent=5 // pred_fallthru
      _
    %p190 = scmp.lt.s32.totalorder %s11, 2
    // Predicated region
    $region29: #{rgb_encoder_forward.5} parent=5 // pred_check
      %p191 = pneg %p190
    $region30: #{rgb_encoder_forward.5} parent=5 // pred_check_branch
      %193 = sbr.rel (%p191) target = $region32
    $region31: #{rgb_encoder_forward.5} parent=5 // pred_region
      // Predicated region
      $region33: #{rgb_encoder_forward.5} parent=31 // pred_check
        %p194 = pneg %p45
      $region34: #{rgb_encoder_forward.5} parent=31 // pred_check_branch
        %196 = sbr.rel (%p194) target = $region36
      $region35: #{rgb_encoder_forward.5} parent=31 // pred_region
        %p197 = scmp.lt.s32.totalorder %s18, 1
        %s198 = scalar_select %p197, %s18, 1
        %p199 = scmp.lt.s32.totalorder %s19, 0
        %s200 = scalar_select %p199, %s19, 0
        %s201 = smul.addr %s200, 6
        %s202 = smul.addr %s198, 6
        %s203 = sadd.s32 %s201, %s202
        %s204 = smul.addr %s203, 4
        %s205 = scalar_lea.vmem %s0, %s204
      $region36: #{rgb_encoder_forward.5} parent=31 // pred_fallthru
        _
    $region32: #{rgb_encoder_forward.5} parent=5 // pred_fallthru
      _
    %p206 = scmp.le.s32.totalorder 1, %s11
    %p207 = scmp.lt.s32.totalorder %s11, 3
    %p208 = pnand %p206, %p207
    %p209 = pneg %p208
    // Predicated region
    $region37: #{rgb_encoder_forward.5} parent=5 // pred_check
      _
    $region38: #{rgb_encoder_forward.5} parent=5 // pred_check_branch
      %211 = sbr.rel (%p208) target = $region40
    $region39: #{rgb_encoder_forward.5} parent=5 // pred_region
      %s212 = ssub.s32 %s11, 1
      %p213 = scmp.lt.s32.totalorder %s20, 1
      %s214 = scalar_select %p213, %s20, 1
      %p215 = scmp.lt.s32.totalorder %s21, 0
      %s216 = scalar_select %p215, %s21, 0
      %s217 = smul.addr %s216, 6
      %s218 = smul.addr %s214, 6
      %s219 = sadd.s32 %s217, %s218
      %s220 = smul.addr %s219, 4
      %s221 = scalar_lea.vmem %s0, %s220
      %p222 = pneg %p51
      %p223 = pneg %p48
      %p224 = pneg %p72
      %p225 = pneg %p69
      %p226 = pneg %p93
      %p227 = pneg %p90
      %p228 = pneg %p114
      %p229 = pneg %p111
      %p230 = pneg %p135
      %p231 = pneg %p132
      %p232 = pneg %p163
      %p233 = pneg %p160
      %p234 = scmp.lt.s32.totalorder %s20, 1
      %s235 = scalar_select %p234, %s20, 1
      %p236 = scmp.lt.s32.totalorder %s21, 0
      %s237 = scalar_select %p236, %s21, 0
      %s238 = smul.addr %s237, 2
      %s239 = smul.addr %s235, 2
      %s240 = sadd.s32 %s238, %s239
      %s241 = smul.addr %s240, 4
      %s242 = scalar_lea.vmem %s5, %s241
      %p243 = scmp.lt.s32.totalorder %s20, 1
      %s244 = scalar_select %p243, %s20, 1
      %p245 = scmp.lt.s32.totalorder %s21, 0
      %s246 = scalar_select %p245, %s21, 0
      %s247 = smul.addr %s246, 6
      %s248 = smul.addr %s244, 6
      %s249 = sadd.s32 %s247, %s248
      %s250 = smul.addr %s249, 4
      %s251 = scalar_lea.vmem %s0, %s250
      %p252 = scmp.lt.s32.totalorder %s20, 1
      %s253 = scalar_select %p252, %s20, 1
      %p254 = scmp.lt.s32.totalorder %s21, 0
      %s255 = scalar_select %p254, %s21, 0
      %s256 = smul.addr %s255, 2
      %s257 = smul.addr %s253, 2
      %s258 = sadd.s32 %s256, %s257
      %s259 = smul.addr %s258, 4
      %s260 = scalar_lea.vmem %s5, %s259
      %v262 = vld [vmem:[%s251] sm:$0x3]
      %v263 = vld [vmem:[%s251 + $0x4] sm:$0x3]
      %v264 = vld [vmem:[%s251 + $0x8] sm:$0x3]
      %v265 = vld [vmem:[%s251 + $0xc] sm:$0x3]
      %v266 = vld [vmem:[%s1] sm:$0xf]
      %v267 = vld [vmem:[%s1 + $0x4] sm:$0xf]
      %v268 = vld [vmem:[%s1 + $0x8] sm:$0xf]
      %v269 = vld [vmem:[%s1 + $0xc] sm:$0xf]
      %v270 = vld [vmem:[%s1 + $0x10] sm:$0xf]
      %v271 = vld [vmem:[%s1 + $0x14] sm:$0xf]
      %v272 = vld [vmem:[%s1 + $0x18] sm:$0xf]
      %v273 = vld [vmem:[%s1 + $0x1c] sm:$0xf]
      %v274 = vld [vmem:[%s1 + $0x20] sm:$0xf]
      %v275 = vld [vmem:[%s1 + $0x24] sm:$0xf]
      %v276 = vld [vmem:[%s1 + $0x28] sm:$0xf]
      %v277 = vld [vmem:[%s1 + $0x2c] sm:$0xf]
      %v278 = vld [vmem:[%s1 + $0x30] sm:$0xf]
      %v279 = vld [vmem:[%s1 + $0x34] sm:$0xf]
      %v280 = vld [vmem:[%s1 + $0x38] sm:$0xf]
      %v281 = vld [vmem:[%s1 + $0x3c] sm:$0xf]
      %v282 = vld [vmem:[%s251] sm:$0x7]
      %v283 = vld [vmem:[%s251 + $0x4] sm:$0x7]
      %v284 = vld [vmem:[%s251 + $0x8] sm:$0x7]
      %v285 = vld [vmem:[%s251 + $0xc] sm:$0x7]
      %v291 = vunpack.c.l.s4 1983009808
      %v292 = vunpack.c.0.s8 %v291
      %v293 = vlaneseq
      %v294 = vshrl.u32 %v293, 7
      %v295 = vsub.s32 %v292, %v294
      %v296 = vrot.slane %v282, %v295
      %v297 = vcombine.high %v296, %v296
      %v299 = vunpack.c.l.s4 1983009808
      %v300 = vunpack.c.0.s8 %v299
      %v301 = vlaneseq
      %v302 = vshrl.u32 %v301, 7
      %v303 = vsub.s32 %v300, %v302
      %v304 = vrot.slane %v283, %v303
      %v305 = vcombine.high %v304, %v304
      %v307 = vunpack.c.l.s4 1983009808
      %v308 = vunpack.c.0.s8 %v307
      %v309 = vlaneseq
      %v310 = vshrl.u32 %v309, 7
      %v311 = vsub.s32 %v308, %v310
      %v312 = vrot.slane %v284, %v311
      %v313 = vcombine.high %v312, %v312
      %v315 = vunpack.c.l.s4 1983009808
      %v316 = vunpack.c.0.s8 %v315
      %v317 = vlaneseq
      %v318 = vshrl.u32 %v317, 7
      %v319 = vsub.s32 %v316, %v318
      %v320 = vrot.slane %v285, %v319
      %v321 = vcombine.high %v320, %v320
      %vm322 = vsmask.f32 1280
      %vm323 = vsmask.f32 3336
      %vm324 = vmor %vm322, %vm323
      %vm325 = vsmask.f32 5392
      %vm326 = vmor %vm324, %vm325
      %vm327 = vsmask.f32 7448
      %vm328 = vmor %vm326, %vm327
      %v330 = vshrl.u32 %v296, 16
      %v332 = vrot.slane %v330, 6
      %v333 = vshll.u32 %v296, 16
      %v335 = vrot.slane %v333, 7
      %v336 = vor.u32 %v332, %v335
      %v337 = vrot.slane %v336, 2
      %v339 = vshll.u32 %v297, 16
      %v341 = vrot.slane %v339, 7
      %v342 = vsel %vm328, %v337, %v341
      %v344 = vshrl.u32 %v304, 16
      %v346 = vrot.slane %v344, 6
      %v347 = vshll.u32 %v304, 16
      %v349 = vrot.slane %v347, 7
      %v350 = vor.u32 %v346, %v349
      %v351 = vrot.slane %v350, 2
      %v353 = vshll.u32 %v305, 16
      %v355 = vrot.slane %v353, 7
      %v356 = vsel %vm328, %v351, %v355
      %v358 = vshrl.u32 %v312, 16
      %v360 = vrot.slane %v358, 6
      %v361 = vshll.u32 %v312, 16
      %v363 = vrot.slane %v361, 7
      %v364 = vor.u32 %v360, %v363
      %v365 = vrot.slane %v364, 2
      %v367 = vshll.u32 %v313, 16
      %v369 = vrot.slane %v367, 7
      %v370 = vsel %vm328, %v365, %v369
      %v372 = vshrl.u32 %v320, 16
      %v374 = vrot.slane %v372, 6
      %v375 = vshll.u32 %v320, 16
      %v377 = vrot.slane %v375, 7
      %v378 = vor.u32 %v374, %v377
      %v379 = vrot.slane %v378, 2
      %v381 = vshll.u32 %v321, 16
      %v383 = vrot.slane %v381, 7
      %v384 = vsel %vm328, %v379, %v383
      %s385 = scalar_lea.vmem %s1, 64
      %v386 = vld [vmem:[%s385] sm:$0xf]
      %v387 = vld [vmem:[%s385 + $0x4] sm:$0xf]
      %v388 = vld [vmem:[%s385 + $0x8] sm:$0xf]
      %v389 = vld [vmem:[%s385 + $0xc] sm:$0xf]
      %v390 = vld [vmem:[%s385 + $0x10] sm:$0xf]
      %v391 = vld [vmem:[%s385 + $0x14] sm:$0xf]
      %v392 = vld [vmem:[%s385 + $0x18] sm:$0xf]
      %v393 = vld [vmem:[%s385 + $0x1c] sm:$0xf]
      %v394 = vld [vmem:[%s385 + $0x20] sm:$0xf]
      %v395 = vld [vmem:[%s385 + $0x24] sm:$0xf]
      %v396 = vld [vmem:[%s385 + $0x28] sm:$0xf]
      %v397 = vld [vmem:[%s385 + $0x2c] sm:$0xf]
      %v398 = vld [vmem:[%s385 + $0x30] sm:$0xf]
      %v399 = vld [vmem:[%s385 + $0x34] sm:$0xf]
      %v400 = vld [vmem:[%s385 + $0x38] sm:$0xf]
      %v401 = vld [vmem:[%s385 + $0x3c] sm:$0xf]
      %v402 = vcombine.low %v342, %v356
      %v403 = vcombine.low %v370, %v384
      %v405 = vunpack.c.l.s4 1983009808
      %v406 = vunpack.c.0.s8 %v405
      %v407 = vlaneseq
      %v408 = vshrl.u32 %v407, 7
      %v409 = vsub.s32 %v406, %v408
      %v410 = vrot.slane %v402, %v409
      %v412 = vunpack.c.l.s4 1983009808
      %v413 = vunpack.c.0.s8 %v412
      %v414 = vlaneseq
      %v415 = vshrl.u32 %v414, 7
      %v416 = vsub.s32 %v413, %v415
      %v417 = vrot.slane %v403, %v416
      %v418 = vcombine.low %v410, %v417
      %v436 = vunpack.c.l.b16 %v386
      %v437 = vunpack.c.l.b16 %v387
      %v438 = vunpack.c.l.b16 %v388
      %v439 = vunpack.c.l.b16 %v389
      %v440 = vunpack.c.l.b16 %v390
      %v441 = vunpack.c.l.b16 %v391
      %v442 = vunpack.c.l.b16 %v392
      %v443 = vunpack.c.l.b16 %v393
      %v444 = vunpack.c.l.b16 %v394
      %v445 = vunpack.c.l.b16 %v395
      %v446 = vunpack.c.l.b16 %v396
      %v447 = vunpack.c.l.b16 %v397
      %v448 = vunpack.c.l.b16 %v398
      %v449 = vunpack.c.l.b16 %v399
      %v450 = vunpack.c.l.b16 %v400
      %v451 = vunpack.c.l.b16 %v401
      %v452 = vpack.c.b16 %v437, %v436
      %v453 = vpack.c.b16 %v439, %v438
      %v454 = vpack.c.b16 %v441, %v440
      %v455 = vpack.c.b16 %v443, %v442
      %v456 = vpack.c.b16 %v445, %v444
      %v457 = vpack.c.b16 %v447, %v446
      %v458 = vpack.c.b16 %v449, %v448
      %v459 = vpack.c.b16 %v451, %v450
      %468 = vmatprep.subr.bf16.mxu0 0
      %469 = vmatpush1.bf16.msra.mxu0 %v452
      %470 = vmatprep.subr.bf16.mxu0 0
      %471 = vmatpush1.bf16.msra.mxu0 %v453
      %472 = vmatprep.subr.bf16.mxu0 0
      %473 = vmatpush1.bf16.msra.mxu0 %v454
      %474 = vmatprep.subr.bf16.mxu0 0
      %475 = vmatpush1.bf16.msra.mxu0 %v455
      %476 = vmatprep.subr.bf16.mxu0 0
      %477 = vmatpush1.bf16.msra.mxu0 %v456
      %478 = vmatprep.subr.bf16.mxu0 0
      %479 = vmatpush1.bf16.msra.mxu0 %v457
      %480 = vmatprep.subr.bf16.mxu0 0
      %481 = vmatpush1.bf16.msra.mxu0 %v458
      %482 = vmatprep.subr.bf16.mxu0 0
      %483 = vmatpush1.bf16.msra.mxu0 %v459
      %484 = vmatprep.subr.bf16.mxu0 0
      %485 = vmatpush1.bf16.msra.mxu0 0
      %486 = vmatprep.subr.bf16.mxu0 0
      %487 = vmatpush1.bf16.msra.mxu0 0
      %488 = vmatprep.subr.bf16.mxu0 0
      %489 = vmatpush1.bf16.msra.mxu0 0
      %490 = vmatprep.subr.bf16.mxu0 0
      %491 = vmatpush1.bf16.msra.mxu0 0
      %492 = vmatprep.subr.bf16.mxu0 0
      %493 = vmatpush1.bf16.msra.mxu0 0
      %494 = vmatprep.subr.bf16.mxu0 0
      %495 = vmatpush1.bf16.msra.mxu0 0
      %496 = vmatprep.subr.bf16.mxu0 0
      %497 = vmatpush1.bf16.msra.mxu0 0
      %498 = vmatprep.subr.bf16.mxu0 0
      %499 = vmatpush1.bf16.msra.mxu0 0
      %500 = vmatprep.mubr.bf16.mxu0 0
      %501 = vmatmul.mubr.bf16.gmra.mrb[0].mxu0 %v418
      %v502 = vpop.f32.mrb[0].mxu0
      %v503 = vadd.f32 0.0, %v502
      %v504 = vpop.f32.mrb[0].mxu0
      %v505 = vpop.f32.mrb[0].mxu0
      %v506 = vadd.f32 0.0, %v505
      %v507 = vpop.f32.mrb[0].mxu0
      %508 = vdwg.mxu0
      %v513 = vcombine.low %v262, %v263
      %v514 = vcombine.low %v264, %v265
      %v516 = vunpack.c.l.s4 1983009808
      %v517 = vunpack.c.0.s8 %v516
      %v518 = vlaneseq
      %v519 = vshrl.u32 %v518, 7
      %v520 = vsub.s32 %v517, %v519
      %v521 = vrot.slane %v513, %v520
      %v523 = vunpack.c.l.s4 1983009808
      %v524 = vunpack.c.0.s8 %v523
      %v525 = vlaneseq
      %v526 = vshrl.u32 %v525, 7
      %v527 = vsub.s32 %v524, %v526
      %v528 = vrot.slane %v514, %v527
      %v529 = vcombine.low %v521, %v528
      %v547 = vunpack.c.l.b16 %v266
      %v548 = vunpack.c.l.b16 %v267
      %v549 = vunpack.c.l.b16 %v268
      %v550 = vunpack.c.l.b16 %v269
      %v551 = vunpack.c.l.b16 %v270
      %v552 = vunpack.c.l.b16 %v271
      %v553 = vunpack.c.l.b16 %v272
      %v554 = vunpack.c.l.b16 %v273
      %v555 = vunpack.c.l.b16 %v274
      %v556 = vunpack.c.l.b16 %v275
      %v557 = vunpack.c.l.b16 %v276
      %v558 = vunpack.c.l.b16 %v277
      %v559 = vunpack.c.l.b16 %v278
      %v560 = vunpack.c.l.b16 %v279
      %v561 = vunpack.c.l.b16 %v280
      %v562 = vunpack.c.l.b16 %v281
      %v563 = vpack.c.b16 %v548, %v547
      %v564 = vpack.c.b16 %v550, %v549
      %v565 = vpack.c.b16 %v552, %v551
      %v566 = vpack.c.b16 %v554, %v553
      %v567 = vpack.c.b16 %v556, %v555
      %v568 = vpack.c.b16 %v558, %v557
      %v569 = vpack.c.b16 %v560, %v559
      %v570 = vpack.c.b16 %v562, %v561
      %579 = vmatprep.subr.bf16.mxu0 0
      %580 = vmatpush1.bf16.msra.mxu0 %v563
      %581 = vmatprep.subr.bf16.mxu0 0
      %582 = vmatpush1.bf16.msra.mxu0 %v564
      %583 = vmatprep.subr.bf16.mxu0 0
      %584 = vmatpush1.bf16.msra.mxu0 %v565
      %585 = vmatprep.subr.bf16.mxu0 0
      %586 = vmatpush1.bf16.msra.mxu0 %v566
      %587 = vmatprep.subr.bf16.mxu0 0
      %588 = vmatpush1.bf16.msra.mxu0 %v567
      %589 = vmatprep.subr.bf16.mxu0 0
      %590 = vmatpush1.bf16.msra.mxu0 %v568
      %591 = vmatprep.subr.bf16.mxu0 0
      %592 = vmatpush1.bf16.msra.mxu0 %v569
      %593 = vmatprep.subr.bf16.mxu0 0
      %594 = vmatpush1.bf16.msra.mxu0 %v570
      %595 = vmatprep.subr.bf16.mxu0 0
      %596 = vmatpush1.bf16.msra.mxu0 0
      %597 = vmatprep.subr.bf16.mxu0 0
      %598 = vmatpush1.bf16.msra.mxu0 0
      %599 = vmatprep.subr.bf16.mxu0 0
      %600 = vmatpush1.bf16.msra.mxu0 0
      %601 = vmatprep.subr.bf16.mxu0 0
      %602 = vmatpush1.bf16.msra.mxu0 0
      %603 = vmatprep.subr.bf16.mxu0 0
      %604 = vmatpush1.bf16.msra.mxu0 0
      %605 = vmatprep.subr.bf16.mxu0 0
      %606 = vmatpush1.bf16.msra.mxu0 0
      %607 = vmatprep.subr.bf16.mxu0 0
      %608 = vmatpush1.bf16.msra.mxu0 0
      %609 = vmatprep.subr.bf16.mxu0 0
      %610 = vmatpush1.bf16.msra.mxu0 0
      %611 = vmatprep.mubr.bf16.mxu0 0
      %612 = vmatmul.mubr.bf16.gmra.mrb[0].mxu0 %v529
      %v613 = vpop.f32.mrb[0].mxu0
      %v614 = vadd.f32 %v503, %v613
      %v615 = vpop.f32.mrb[0].mxu0
      %v616 = vpop.f32.mrb[0].mxu0
      %v617 = vadd.f32 %v506, %v616
      %v618 = vpop.f32.mrb[0].mxu0
      %619 = vdwg.mxu0
      %v620 = vld [vmem:[%s251] sm:$0x6]
      %v621 = vld [vmem:[%s251 + $0x4] sm:$0x6]
      %v622 = vld [vmem:[%s251 + $0x8] sm:$0x6]
      %v623 = vld [vmem:[%s251 + $0xc] sm:$0x6]
      %v629 = vunpack.c.l.s4 1983009808
      %v630 = vunpack.c.0.s8 %v629
      %v631 = vlaneseq
      %v632 = vshrl.u32 %v631, 7
      %v633 = vsub.s32 %v630, %v632
      %v634 = vrot.slane %v620, %v633
      %v635 = vcombine.high %v634, %v634
      %v637 = vunpack.c.l.s4 1983009808
      %v638 = vunpack.c.0.s8 %v637
      %v639 = vlaneseq
      %v640 = vshrl.u32 %v639, 7
      %v641 = vsub.s32 %v638, %v640
      %v642 = vrot.slane %v621, %v641
      %v643 = vcombine.high %v642, %v642
      %v645 = vunpack.c.l.s4 1983009808
      %v646 = vunpack.c.0.s8 %v645
      %v647 = vlaneseq
      %v648 = vshrl.u32 %v647, 7
      %v649 = vsub.s32 %v646, %v648
      %v650 = vrot.slane %v622, %v649
      %v651 = vcombine.high %v650, %v650
      %v653 = vunpack.c.l.s4 1983009808
      %v654 = vunpack.c.0.s8 %v653
      %v655 = vlaneseq
      %v656 = vshrl.u32 %v655, 7
      %v657 = vsub.s32 %v654, %v656
      %v658 = vrot.slane %v623, %v657
      %v659 = vcombine.high %v658, %v658
      %vm660 = vcmask 1040384
      %vm661 = vcmask 1042434
      %vm662 = vmor %vm660, %vm661
      %vm663 = vcmask 1044484
      %vm664 = vmor %vm662, %vm663
      %vm665 = vcmask 1046534
      %vm666 = vmor %vm664, %vm665
      %v667 = vrot.slane %v634, 7
      %v668 = vrot.slane %v667, 2
      %v669 = vrot.slane %v635, 7
      %v670 = vsel %vm666, %v668, %v669
      %v671 = vrot.slane %v642, 7
      %v672 = vrot.slane %v671, 2
      %v673 = vrot.slane %v643, 7
      %v674 = vsel %vm666, %v672, %v673
      %v675 = vrot.slane %v650, 7
      %v676 = vrot.slane %v675, 2
      %v677 = vrot.slane %v651, 7
      %v678 = vsel %vm666, %v676, %v677
      %v679 = vrot.slane %v658, 7
      %v680 = vrot.slane %v679, 2
      %v681 = vrot.slane %v659, 7
      %v682 = vsel %vm666, %v680, %v681
      %s683 = scalar_lea.vmem %s1, 128
      %v684 = vld [vmem:[%s683] sm:$0xf]
      %v685 = vld [vmem:[%s683 + $0x4] sm:$0xf]
      %v686 = vld [vmem:[%s683 + $0x8] sm:$0xf]
      %v687 = vld [vmem:[%s683 + $0xc] sm:$0xf]
      %v688 = vld [vmem:[%s683 + $0x10] sm:$0xf]
      %v689 = vld [vmem:[%s683 + $0x14] sm:$0xf]
      %v690 = vld [vmem:[%s683 + $0x18] sm:$0xf]
      %v691 = vld [vmem:[%s683 + $0x1c] sm:$0xf]
      %v692 = vld [vmem:[%s683 + $0x20] sm:$0xf]
      %v693 = vld [vmem:[%s683 + $0x24] sm:$0xf]
      %v694 = vld [vmem:[%s683 + $0x28] sm:$0xf]
      %v695 = vld [vmem:[%s683 + $0x2c] sm:$0xf]
      %v696 = vld [vmem:[%s683 + $0x30] sm:$0xf]
      %v697 = vld [vmem:[%s683 + $0x34] sm:$0xf]
      %v698 = vld [vmem:[%s683 + $0x38] sm:$0xf]
      %v699 = vld [vmem:[%s683 + $0x3c] sm:$0xf]
      %v700 = vcombine.low %v670, %v674
      %v701 = vcombine.low %v678, %v682
      %v703 = vunpack.c.l.s4 1983009808
      %v704 = vunpack.c.0.s8 %v703
      %v705 = vlaneseq
      %v706 = vshrl.u32 %v705, 7
      %v707 = vsub.s32 %v704, %v706
      %v708 = vrot.slane %v700, %v707
      %v710 = vunpack.c.l.s4 1983009808
      %v711 = vunpack.c.0.s8 %v710
      %v712 = vlaneseq
      %v713 = vshrl.u32 %v712, 7
      %v714 = vsub.s32 %v711, %v713
      %v715 = vrot.slane %v701, %v714
      %v716 = vcombine.low %v708, %v715
      %v734 = vunpack.c.l.b16 %v684
      %v735 = vunpack.c.l.b16 %v685
      %v736 = vunpack.c.l.b16 %v686
      %v737 = vunpack.c.l.b16 %v687
      %v738 = vunpack.c.l.b16 %v688
      %v739 = vunpack.c.l.b16 %v689
      %v740 = vunpack.c.l.b16 %v690
      %v741 = vunpack.c.l.b16 %v691
      %v742 = vunpack.c.l.b16 %v692
      %v743 = vunpack.c.l.b16 %v693
      %v744 = vunpack.c.l.b16 %v694
      %v745 = vunpack.c.l.b16 %v695
      %v746 = vunpack.c.l.b16 %v696
      %v747 = vunpack.c.l.b16 %v697
      %v748 = vunpack.c.l.b16 %v698
      %v749 = vunpack.c.l.b16 %v699
      %v750 = vpack.c.b16 %v735, %v734
      %v751 = vpack.c.b16 %v737, %v736
      %v752 = vpack.c.b16 %v739, %v738
      %v753 = vpack.c.b16 %v741, %v740
      %v754 = vpack.c.b16 %v743, %v742
      %v755 = vpack.c.b16 %v745, %v744
      %v756 = vpack.c.b16 %v747, %v746
      %v757 = vpack.c.b16 %v749, %v748
      %766 = vmatprep.subr.bf16.mxu0 0
      %767 = vmatpush1.bf16.msra.mxu0 %v750
      %768 = vmatprep.subr.bf16.mxu0 0
      %769 = vmatpush1.bf16.msra.mxu0 %v751
      %770 = vmatprep.subr.bf16.mxu0 0
      %771 = vmatpush1.bf16.msra.mxu0 %v752
      %772 = vmatprep.subr.bf16.mxu0 0
      %773 = vmatpush1.bf16.msra.mxu0 %v753
      %774 = vmatprep.subr.bf16.mxu0 0
      %775 = vmatpush1.bf16.msra.mxu0 %v754
      %776 = vmatprep.subr.bf16.mxu0 0
      %777 = vmatpush1.bf16.msra.mxu0 %v755
      %778 = vmatprep.subr.bf16.mxu0 0
      %779 = vmatpush1.bf16.msra.mxu0 %v756
      %780 = vmatprep.subr.bf16.mxu0 0
      %781 = vmatpush1.bf16.msra.mxu0 %v757
      %782 = vmatprep.subr.bf16.mxu0 0
      %783 = vmatpush1.bf16.msra.mxu0 0
      %784 = vmatprep.subr.bf16.mxu0 0
      %785 = vmatpush1.bf16.msra.mxu0 0
      %786 = vmatprep.subr.bf16.mxu0 0
      %787 = vmatpush1.bf16.msra.mxu0 0
      %788 = vmatprep.subr.bf16.mxu0 0
      %789 = vmatpush1.bf16.msra.mxu0 0
      %790 = vmatprep.subr.bf16.mxu0 0
      %791 = vmatpush1.bf16.msra.mxu0 0
      %792 = vmatprep.subr.bf16.mxu0 0
      %793 = vmatpush1.bf16.msra.mxu0 0
      %794 = vmatprep.subr.bf16.mxu0 0
      %795 = vmatpush1.bf16.msra.mxu0 0
      %796 = vmatprep.subr.bf16.mxu0 0
      %797 = vmatpush1.bf16.msra.mxu0 0
      %798 = vmatprep.mubr.bf16.mxu0 0
      %799 = vmatmul.mubr.bf16.gmra.mrb[0].mxu0 %v716
      %v800 = vpop.f32.mrb[0].mxu0
      %v801 = vadd.f32 0.0, %v800
      %v802 = vpop.f32.mrb[0].mxu0
      %v803 = vpop.f32.mrb[0].mxu0
      %v804 = vadd.f32 0.0, %v803
      %v805 = vpop.f32.mrb[0].mxu0
      %806 = vdwg.mxu0
      %v807 = vadd.f32 %v614, %v801
      %v808 = vadd.f32 %v617, %v804
      %s809 = scalar_lea.vmem %s251, 4
      %v810 = vld [vmem:[%s809] sm:$0x3]
      %v811 = vld [vmem:[%s809 + $0x4] sm:$0x3]
      %v812 = vld [vmem:[%s809 + $0x8] sm:$0x3]
      %v813 = vld [vmem:[%s809 + $0xc] sm:$0x3]
      %s814 = scalar_lea.vmem %s1, 192
      %v815 = vld [vmem:[%s814] sm:$0xf]
      %v816 = vld [vmem:[%s814 + $0x4] sm:$0xf]
      %v817 = vld [vmem:[%s814 + $0x8] sm:$0xf]
      %v818 = vld [vmem:[%s814 + $0xc] sm:$0xf]
      %v819 = vld [vmem:[%s814 + $0x10] sm:$0xf]
      %v820 = vld [vmem:[%s814 + $0x14] sm:$0xf]
      %v821 = vld [vmem:[%s814 + $0x18] sm:$0xf]
      %v822 = vld [vmem:[%s814 + $0x1c] sm:$0xf]
      %v823 = vld [vmem:[%s814 + $0x20] sm:$0xf]
      %v824 = vld [vmem:[%s814 + $0x24] sm:$0xf]
      %v825 = vld [vmem:[%s814 + $0x28] sm:$0xf]
      %v826 = vld [vmem:[%s814 + $0x2c] sm:$0xf]
      %v827 = vld [vmem:[%s814 + $0x30] sm:$0xf]
      %v828 = vld [vmem:[%s814 + $0x34] sm:$0xf]
      %v829 = vld [vmem:[%s814 + $0x38] sm:$0xf]
      %v830 = vld [vmem:[%s814 + $0x3c] sm:$0xf]
      %v835 = vcombine.low %v810, %v811
      %v836 = vcombine.low %v812, %v813
      %v838 = vunpack.c.l.s4 1983009808
      %v839 = vunpack.c.0.s8 %v838
      %v840 = vlaneseq
      %v841 = vshrl.u32 %v840, 7
      %v842 = vsub.s32 %v839, %v841
      %v843 = vrot.slane %v835, %v842
      %v845 = vunpack.c.l.s4 1983009808
      %v846 = vunpack.c.0.s8 %v845
      %v847 = vlaneseq
      %v848 = vshrl.u32 %v847, 7
      %v849 = vsub.s32 %v846, %v848
      %v850 = vrot.slane %v836, %v849
      %v851 = vcombine.low %v843, %v850
      %v869 = vunpack.c.l.b16 %v815
      %v870 = vunpack.c.l.b16 %v816
      %v871 = vunpack.c.l.b16 %v817
      %v872 = vunpack.c.l.b16 %v818
      %v873 = vunpack.c.l.b16 %v819
      %v874 = vunpack.c.l.b16 %v820
      %v875 = vunpack.c.l.b16 %v821
      %v876 = vunpack.c.l.b16 %v822
      %v877 = vunpack.c.l.b16 %v823
      %v878 = vunpack.c.l.b16 %v824
      %v879 = vunpack.c.l.b16 %v825
      %v880 = vunpack.c.l.b16 %v826
      %v881 = vunpack.c.l.b16 %v827
      %v882 = vunpack.c.l.b16 %v828
      %v883 = vunpack.c.l.b16 %v829
      %v884 = vunpack.c.l.b16 %v830
      %v885 = vpack.c.b16 %v870, %v869
      %v886 = vpack.c.b16 %v872, %v871
      %v887 = vpack.c.b16 %v874, %v873
      %v888 = vpack.c.b16 %v876, %v875
      %v889 = vpack.c.b16 %v878, %v877
      %v890 = vpack.c.b16 %v880, %v879
      %v891 = vpack.c.b16 %v882, %v881
      %v892 = vpack.c.b16 %v884, %v883
      %901 = vmatprep.subr.bf16.mxu0 0
      %902 = vmatpush1.bf16.msra.mxu0 %v885
      %903 = vmatprep.subr.bf16.mxu0 0
      %904 = vmatpush1.bf16.msra.mxu0 %v886
      %905 = vmatprep.subr.bf16.mxu0 0
      %906 = vmatpush1.bf16.msra.mxu0 %v887
      %907 = vmatprep.subr.bf16.mxu0 0
      %908 = vmatpush1.bf16.msra.mxu0 %v888
      %909 = vmatprep.subr.bf16.mxu0 0
      %910 = vmatpush1.bf16.msra.mxu0 %v889
      %911 = vmatprep.subr.bf16.mxu0 0
      %912 = vmatpush1.bf16.msra.mxu0 %v890
      %913 = vmatprep.subr.bf16.mxu0 0
      %914 = vmatpush1.bf16.msra.mxu0 %v891
      %915 = vmatprep.subr.bf16.mxu0 0
      %916 = vmatpush1.bf16.msra.mxu0 %v892
      %917 = vmatprep.subr.bf16.mxu0 0
      %918 = vmatpush1.bf16.msra.mxu0 0
      %919 = vmatprep.subr.bf16.mxu0 0
      %920 = vmatpush1.bf16.msra.mxu0 0
      %921 = vmatprep.subr.bf16.mxu0 0
      %922 = vmatpush1.bf16.msra.mxu0 0
      %923 = vmatprep.subr.bf16.mxu0 0
      %924 = vmatpush1.bf16.msra.mxu0 0
      %925 = vmatprep.subr.bf16.mxu0 0
      %926 = vmatpush1.bf16.msra.mxu0 0
      %927 = vmatprep.subr.bf16.mxu0 0
      %928 = vmatpush1.bf16.msra.mxu0 0
      %929 = vmatprep.subr.bf16.mxu0 0
      %930 = vmatpush1.bf16.msra.mxu0 0
      %931 = vmatprep.subr.bf16.mxu0 0
      %932 = vmatpush1.bf16.msra.mxu0 0
      %933 = vmatprep.mubr.bf16.mxu0 0
      %934 = vmatmul.mubr.bf16.gmra.mrb[0].mxu0 %v851
      %v935 = vpop.f32.mrb[0].mxu0
      %v936 = vadd.f32 0.0, %v935
      %v937 = vpop.f32.mrb[0].mxu0
      %v938 = vpop.f32.mrb[0].mxu0
      %v939 = vadd.f32 0.0, %v938
      %v940 = vpop.f32.mrb[0].mxu0
      %941 = vdwg.mxu0
      %v942 = vadd.f32 %v807, %v936
      %v943 = vadd.f32 %v808, %v939
      %v944 = vld [vmem:[%s809] sm:$0x7]
      %v945 = vld [vmem:[%s809 + $0x4] sm:$0x7]
      %v946 = vld [vmem:[%s809 + $0x8] sm:$0x7]
      %v947 = vld [vmem:[%s809 + $0xc] sm:$0x7]
      %v953 = vunpack.c.l.s4 1983009808
      %v954 = vunpack.c.0.s8 %v953
      %v955 = vlaneseq
      %v956 = vshrl.u32 %v955, 7
      %v957 = vsub.s32 %v954, %v956
      %v958 = vrot.slane %v944, %v957
      %v959 = vcombine.high %v958, %v958
      %v961 = vunpack.c.l.s4 1983009808
      %v962 = vunpack.c.0.s8 %v961
      %v963 = vlaneseq
      %v964 = vshrl.u32 %v963, 7
      %v965 = vsub.s32 %v962, %v964
      %v966 = vrot.slane %v945, %v965
      %v967 = vcombine.high %v966, %v966
      %v969 = vunpack.c.l.s4 1983009808
      %v970 = vunpack.c.0.s8 %v969
      %v971 = vlaneseq
      %v972 = vshrl.u32 %v971, 7
      %v973 = vsub.s32 %v970, %v972
      %v974 = vrot.slane %v946, %v973
      %v975 = vcombine.high %v974, %v974
      %v977 = vunpack.c.l.s4 1983009808
      %v978 = vunpack.c.0.s8 %v977
      %v979 = vlaneseq
      %v980 = vshrl.u32 %v979, 7
      %v981 = vsub.s32 %v978, %v980
      %v982 = vrot.slane %v947, %v981
      %v983 = vcombine.high %v982, %v982
      %v985 = vshrl.u32 %v958, 16
      %v987 = vrot.slane %v985, 6
      %v988 = vshll.u32 %v958, 16
      %v990 = vrot.slane %v988, 7
      %v991 = vor.u32 %v987, %v990
      %v992 = vrot.slane %v991, 2
      %v994 = vshll.u32 %v959, 16
      %v996 = vrot.slane %v994, 7
      %v997 = vsel %vm328, %v992, %v996
      %v999 = vshrl.u32 %v966, 16
      %v1001 = vrot.slane %v999, 6
      %v1002 = vshll.u32 %v966, 16
      %v1004 = vrot.slane %v1002, 7
      %v1005 = vor.u32 %v1001, %v1004
      %v1006 = vrot.slane %v1005, 2
      %v1008 = vshll.u32 %v967, 16
      %v1010 = vrot.slane %v1008, 7
      %v1011 = vsel %vm328, %v1006, %v1010
      %v1013 = vshrl.u32 %v974, 16
      %v1015 = vrot.slane %v1013, 6
      %v1016 = vshll.u32 %v974, 16
      %v1018 = vrot.slane %v1016, 7
      %v1019 = vor.u32 %v1015, %v1018
      %v1020 = vrot.slane %v1019, 2
      %v1022 = vshll.u32 %v975, 16
      %v1024 = vrot.slane %v1022, 7
      %v1025 = vsel %vm328, %v1020, %v1024
      %v1027 = vshrl.u32 %v982, 16
      %v1029 = vrot.slane %v1027, 6
      %v1030 = vshll.u32 %v982, 16
      %v1032 = vrot.slane %v1030, 7
      %v1033 = vor.u32 %v1029, %v1032
      %v1034 = vrot.slane %v1033, 2
      %v1036 = vshll.u32 %v983, 16
      %v1038 = vrot.slane %v1036, 7
      %v1039 = vsel %vm328, %v1034, %v1038
      %s1040 = scalar_lea.vmem %s1, 256
      %v1041 = vld [vmem:[%s1040] sm:$0xf]
      %v1042 = vld [vmem:[%s1040 + $0x4] sm:$0xf]
      %v1043 = vld [vmem:[%s1040 + $0x8] sm:$0xf]
      %v1044 = vld [vmem:[%s1040 + $0xc] sm:$0xf]
      %v1045 = vld [vmem:[%s1040 + $0x10] sm:$0xf]
      %v1046 = vld [vmem:[%s1040 + $0x14] sm:$0xf]
      %v1047 = vld [vmem:[%s1040 + $0x18] sm:$0xf]
      %v1048 = vld [vmem:[%s1040 + $0x1c] sm:$0xf]
      %v1049 = vld [vmem:[%s1040 + $0x20] sm:$0xf]
      %v1050 = vld [vmem:[%s1040 + $0x24] sm:$0xf]
      %v1051 = vld [vmem:[%s1040 + $0x28] sm:$0xf]
      %v1052 = vld [vmem:[%s1040 + $0x2c] sm:$0xf]
      %v1053 = vld [vmem:[%s1040 + $0x30] sm:$0xf]
      %v1054 = vld [vmem:[%s1040 + $0x34] sm:$0xf]
      %v1055 = vld [vmem:[%s1040 + $0x38] sm:$0xf]
      %v1056 = vld [vmem:[%s1040 + $0x3c] sm:$0xf]
      %v1057 = vcombine.low %v997, %v1011
      %v1058 = vcombine.low %v1025, %v1039
      %v1060 = vunpack.c.l.s4 1983009808
      %v1061 = vunpack.c.0.s8 %v1060
      %v1062 = vlaneseq
      %v1063 = vshrl.u32 %v1062, 7
      %v1064 = vsub.s32 %v1061, %v1063
      %v1065 = vrot.slane %v1057, %v1064
      %v1067 = vunpack.c.l.s4 1983009808
      %v1068 = vunpack.c.0.s8 %v1067
      %v1069 = vlaneseq
      %v1070 = vshrl.u32 %v1069, 7
      %v1071 = vsub.s32 %v1068, %v1070
      %v1072 = vrot.slane %v1058, %v1071
      %v1073 = vcombine.low %v1065, %v1072
      %v1091 = vunpack.c.l.b16 %v1041
      %v1092 = vunpack.c.l.b16 %v1042
      %v1093 = vunpack.c.l.b16 %v1043
      %v1094 = vunpack.c.l.b16 %v1044
      %v1095 = vunpack.c.l.b16 %v1045
      %v1096 = vunpack.c.l.b16 %v1046
      %v1097 = vunpack.c.l.b16 %v1047
      %v1098 = vunpack.c.l.b16 %v1048
      %v1099 = vunpack.c.l.b16 %v1049
      %v1100 = vunpack.c.l.b16 %v1050
      %v1101 = vunpack.c.l.b16 %v1051
      %v1102 = vunpack.c.l.b16 %v1052
      %v1103 = vunpack.c.l.b16 %v1053
      %v1104 = vunpack.c.l.b16 %v1054
      %v1105 = vunpack.c.l.b16 %v1055
      %v1106 = vunpack.c.l.b16 %v1056
      %v1107 = vpack.c.b16 %v1092, %v1091
      %v1108 = vpack.c.b16 %v1094, %v1093
      %v1109 = vpack.c.b16 %v1096, %v1095
      %v1110 = vpack.c.b16 %v1098, %v1097
      %v1111 = vpack.c.b16 %v1100, %v1099
      %v1112 = vpack.c.b16 %v1102, %v1101
      %v1113 = vpack.c.b16 %v1104, %v1103
      %v1114 = vpack.c.b16 %v1106, %v1105
      %1123 = vmatprep.subr.bf16.mxu0 0
      %1124 = vmatpush1.bf16.msra.mxu0 %v1107
      %1125 = vmatprep.subr.bf16.mxu0 0
      %1126 = vmatpush1.bf16.msra.mxu0 %v1108
      %1127 = vmatprep.subr.bf16.mxu0 0
      %1128 = vmatpush1.bf16.msra.mxu0 %v1109
      %1129 = vmatprep.subr.bf16.mxu0 0
      %1130 = vmatpush1.bf16.msra.mxu0 %v1110
      %1131 = vmatprep.subr.bf16.mxu0 0
      %1132 = vmatpush1.bf16.msra.mxu0 %v1111
      %1133 = vmatprep.subr.bf16.mxu0 0
      %1134 = vmatpush1.bf16.msra.mxu0 %v1112
      %1135 = vmatprep.subr.bf16.mxu0 0
      %1136 = vmatpush1.bf16.msra.mxu0 %v1113
      %1137 = vmatprep.subr.bf16.mxu0 0
      %1138 = vmatpush1.bf16.msra.mxu0 %v1114
      %1139 = vmatprep.subr.bf16.mxu0 0
      %1140 = vmatpush1.bf16.msra.mxu0 0
      %1141 = vmatprep.subr.bf16.mxu0 0
      %1142 = vmatpush1.bf16.msra.mxu0 0
      %1143 = vmatprep.subr.bf16.mxu0 0
      %1144 = vmatpush1.bf16.msra.mxu0 0
      %1145 = vmatprep.subr.bf16.mxu0 0
      %1146 = vmatpush1.bf16.msra.mxu0 0
      %1147 = vmatprep.subr.bf16.mxu0 0
      %1148 = vmatpush1.bf16.msra.mxu0 0
      %1149 = vmatprep.subr.bf16.mxu0 0
      %1150 = vmatpush1.bf16.msra.mxu0 0
      %1151 = vmatprep.subr.bf16.mxu0 0
      %1152 = vmatpush1.bf16.msra.mxu0 0
      %1153 = vmatprep.subr.bf16.mxu0 0
      %1154 = vmatpush1.bf16.msra.mxu0 0
      %1155 = vmatprep.mubr.bf16.mxu0 0
      %1156 = vmatmul.mubr.bf16.gmra.mrb[0].mxu0 %v1073
      %v1157 = vpop.f32.mrb[0].mxu0
      %v1158 = vadd.f32 0.0, %v1157
      %v1159 = vpop.f32.mrb[0].mxu0
      %v1160 = vpop.f32.mrb[0].mxu0
      %v1161 = vadd.f32 0.0, %v1160
      %v1162 = vpop.f32.mrb[0].mxu0
      %1163 = vdwg.mxu0
      %v1164 = vadd.f32 %v942, %v1158
      %v1165 = vadd.f32 %v943, %v1161
      %v1166 = vld [vmem:[%s809] sm:$0x6]
      %v1167 = vld [vmem:[%s809 + $0x4] sm:$0x6]
      %v1168 = vld [vmem:[%s809 + $0x8] sm:$0x6]
      %v1169 = vld [vmem:[%s809 + $0xc] sm:$0x6]
      %v1175 = vunpack.c.l.s4 1983009808
      %v1176 = vunpack.c.0.s8 %v1175
      %v1177 = vlaneseq
      %v1178 = vshrl.u32 %v1177, 7
      %v1179 = vsub.s32 %v1176, %v1178
      %v1180 = vrot.slane %v1166, %v1179
      %v1181 = vcombine.high %v1180, %v1180
      %v1183 = vunpack.c.l.s4 1983009808
      %v1184 = vunpack.c.0.s8 %v1183
      %v1185 = vlaneseq
      %v1186 = vshrl.u32 %v1185, 7
      %v1187 = vsub.s32 %v1184, %v1186
      %v1188 = vrot.slane %v1167, %v1187
      %v1189 = vcombine.high %v1188, %v1188
      %v1191 = vunpack.c.l.s4 1983009808
      %v1192 = vunpack.c.0.s8 %v1191
      %v1193 = vlaneseq
      %v1194 = vshrl.u32 %v1193, 7
      %v1195 = vsub.s32 %v1192, %v1194
      %v1196 = vrot.slane %v1168, %v1195
      %v1197 = vcombine.high %v1196, %v1196
      %v1199 = vunpack.c.l.s4 1983009808
      %v1200 = vunpack.c.0.s8 %v1199
      %v1201 = vlaneseq
      %v1202 = vshrl.u32 %v1201, 7
      %v1203 = vsub.s32 %v1200, %v1202
      %v1204 = vrot.slane %v1169, %v1203
      %v1205 = vcombine.high %v1204, %v1204
      %v1206 = vrot.slane %v1180, 7
      %v1207 = vrot.slane %v1206, 2
      %v1208 = vrot.slane %v1181, 7
      %v1209 = vsel %vm666, %v1207, %v1208
      %v1210 = vrot.slane %v1188, 7
      %v1211 = vrot.slane %v1210, 2
      %v1212 = vrot.slane %v1189, 7
      %v1213 = vsel %vm666, %v1211, %v1212
      %v1214 = vrot.slane %v1196, 7
      %v1215 = vrot.slane %v1214, 2
      %v1216 = vrot.slane %v1197, 7
      %v1217 = vsel %vm666, %v1215, %v1216
      %v1218 = vrot.slane %v1204, 7
      %v1219 = vrot.slane %v1218, 2
      %v1220 = vrot.slane %v1205, 7
      %v1221 = vsel %vm666, %v1219, %v1220
      %s1222 = scalar_lea.vmem %s1, 320
      %v1223 = vld [vmem:[%s1222] sm:$0xf]
      %v1224 = vld [vmem:[%s1222 + $0x4] sm:$0xf]
      %v1225 = vld [vmem:[%s1222 + $0x8] sm:$0xf]
      %v1226 = vld [vmem:[%s1222 + $0xc] sm:$0xf]
      %v1227 = vld [vmem:[%s1222 + $0x10] sm:$0xf]
      %v1228 = vld [vmem:[%s1222 + $0x14] sm:$0xf]
      %v1229 = vld [vmem:[%s1222 + $0x18] sm:$0xf]
      %v1230 = vld [vmem:[%s1222 + $0x1c] sm:$0xf]
      %v1231 = vld [vmem:[%s1222 + $0x20] sm:$0xf]
      %v1232 = vld [vmem:[%s1222 + $0x24] sm:$0xf]
      %v1233 = vld [vmem:[%s1222 + $0x28] sm:$0xf]
      %v1234 = vld [vmem:[%s1222 + $0x2c] sm:$0xf]
      %v1235 = vld [vmem:[%s1222 + $0x30] sm:$0xf]
      %v1236 = vld [vmem:[%s1222 + $0x34] sm:$0xf]
      %v1237 = vld [vmem:[%s1222 + $0x38] sm:$0xf]
      %v1238 = vld [vmem:[%s1222 + $0x3c] sm:$0xf]
      %v1239 = vcombine.low %v1209, %v1213
      %v1240 = vcombine.low %v1217, %v1221
      %v1242 = vunpack.c.l.s4 1983009808
      %v1243 = vunpack.c.0.s8 %v1242
      %v1244 = vlaneseq
      %v1245 = vshrl.u32 %v1244, 7
      %v1246 = vsub.s32 %v1243, %v1245
      %v1247 = vrot.slane %v1239, %v1246
      %v1249 = vunpack.c.l.s4 1983009808
      %v1250 = vunpack.c.0.s8 %v1249
      %v1251 = vlaneseq
      %v1252 = vshrl.u32 %v1251, 7
      %v1253 = vsub.s32 %v1250, %v1252
      %v1254 = vrot.slane %v1240, %v1253
      %v1255 = vcombine.low %v1247, %v1254
      %v1273 = vunpack.c.l.b16 %v1223
      %v1274 = vunpack.c.l.b16 %v1224
      %v1275 = vunpack.c.l.b16 %v1225
      %v1276 = vunpack.c.l.b16 %v1226
      %v1277 = vunpack.c.l.b16 %v1227
      %v1278 = vunpack.c.l.b16 %v1228
      %v1279 = vunpack.c.l.b16 %v1229
      %v1280 = vunpack.c.l.b16 %v1230
      %v1281 = vunpack.c.l.b16 %v1231
      %v1282 = vunpack.c.l.b16 %v1232
      %v1283 = vunpack.c.l.b16 %v1233
      %v1284 = vunpack.c.l.b16 %v1234
      %v1285 = vunpack.c.l.b16 %v1235
      %v1286 = vunpack.c.l.b16 %v1236
      %v1287 = vunpack.c.l.b16 %v1237
      %v1288 = vunpack.c.l.b16 %v1238
      %v1289 = vpack.c.b16 %v1274, %v1273
      %v1290 = vpack.c.b16 %v1276, %v1275
      %v1291 = vpack.c.b16 %v1278, %v1277
      %v1292 = vpack.c.b16 %v1280, %v1279
      %v1293 = vpack.c.b16 %v1282, %v1281
      %v1294 = vpack.c.b16 %v1284, %v1283
      %v1295 = vpack.c.b16 %v1286, %v1285
      %v1296 = vpack.c.b16 %v1288, %v1287
      %1305 = vmatprep.subr.bf16.mxu0 0
      %1306 = vmatpush1.bf16.msra.mxu0 %v1289
      %1307 = vmatprep.subr.bf16.mxu0 0
      %1308 = vmatpush1.bf16.msra.mxu0 %v1290
      %1309 = vmatprep.subr.bf16.mxu0 0
      %1310 = vmatpush1.bf16.msra.mxu0 %v1291
      %1311 = vmatprep.subr.bf16.mxu0 0
      %1312 = vmatpush1.bf16.msra.mxu0 %v1292
      %1313 = vmatprep.subr.bf16.mxu0 0
      %1314 = vmatpush1.bf16.msra.mxu0 %v1293
      %1315 = vmatprep.subr.bf16.mxu0 0
      %1316 = vmatpush1.bf16.msra.mxu0 %v1294
      %1317 = vmatprep.subr.bf16.mxu0 0
      %1318 = vmatpush1.bf16.msra.mxu0 %v1295
      %1319 = vmatprep.subr.bf16.mxu0 0
      %1320 = vmatpush1.bf16.msra.mxu0 %v1296
      %1321 = vmatprep.subr.bf16.mxu0 0
      %1322 = vmatpush1.bf16.msra.mxu0 0
      %1323 = vmatprep.subr.bf16.mxu0 0
      %1324 = vmatpush1.bf16.msra.mxu0 0
      %1325 = vmatprep.subr.bf16.mxu0 0
      %1326 = vmatpush1.bf16.msra.mxu0 0
      %1327 = vmatprep.subr.bf16.mxu0 0
      %1328 = vmatpush1.bf16.msra.mxu0 0
      %1329 = vmatprep.subr.bf16.mxu0 0
      %1330 = vmatpush1.bf16.msra.mxu0 0
      %1331 = vmatprep.subr.bf16.mxu0 0
      %1332 = vmatpush1.bf16.msra.mxu0 0
      %1333 = vmatprep.subr.bf16.mxu0 0
      %1334 = vmatpush1.bf16.msra.mxu0 0
      %1335 = vmatprep.subr.bf16.mxu0 0
      %1336 = vmatpush1.bf16.msra.mxu0 0
      %1337 = vmatprep.mubr.bf16.mxu0 0
      %1338 = vmatmul.mubr.bf16.gmra.mrb[0].mxu0 %v1255
      %v1339 = vpop.f32.mrb[0].mxu0
      %v1340 = vadd.f32 0.0, %v1339
      %v1341 = vpop.f32.mrb[0].mxu0
      %v1342 = vpop.f32.mrb[0].mxu0
      %v1343 = vadd.f32 0.0, %v1342
      %v1344 = vpop.f32.mrb[0].mxu0
      %1345 = vdwg.mxu0
      %v1346 = vadd.f32 %v1164, %v1340
      %v1347 = vadd.f32 %v1165, %v1343
      %s1348 = scalar_lea.vmem %s251, 8
      %v1349 = vld [vmem:[%s1348] sm:$0x3]
      %v1350 = vld [vmem:[%s1348 + $0x4] sm:$0x3]
      %v1351 = vld [vmem:[%s1348 + $0x8] sm:$0x3]
      %v1352 = vld [vmem:[%s1348 + $0xc] sm:$0x3]
      %s1353 = scalar_lea.vmem %s1, 384
      %v1354 = vld [vmem:[%s1353] sm:$0xf]
      %v1355 = vld [vmem:[%s1353 + $0x4] sm:$0xf]
      %v1356 = vld [vmem:[%s1353 + $0x8] sm:$0xf]
      %v1357 = vld [vmem:[%s1353 + $0xc] sm:$0xf]
      %v1358 = vld [vmem:[%s1353 + $0x10] sm:$0xf]
      %v1359 = vld [vmem:[%s1353 + $0x14] sm:$0xf]
      %v1360 = vld [vmem:[%s1353 + $0x18] sm:$0xf]
      %v1361 = vld [vmem:[%s1353 + $0x1c] sm:$0xf]
      %v1362 = vld [vmem:[%s1353 + $0x20] sm:$0xf]
      %v1363 = vld [vmem:[%s1353 + $0x24] sm:$0xf]
      %v1364 = vld [vmem:[%s1353 + $0x28] sm:$0xf]
      %v1365 = vld [vmem:[%s1353 + $0x2c] sm:$0xf]
      %v1366 = vld [vmem:[%s1353 + $0x30] sm:$0xf]
      %v1367 = vld [vmem:[%s1353 + $0x34] sm:$0xf]
      %v1368 = vld [vmem:[%s1353 + $0x38] sm:$0xf]
      %v1369 = vld [vmem:[%s1353 + $0x3c] sm:$0xf]
      %v1374 = vcombine.low %v1349, %v1350
      %v1375 = vcombine.low %v1351, %v1352
      %v1377 = vunpack.c.l.s4 1983009808
      %v1378 = vunpack.c.0.s8 %v1377
      %v1379 = vlaneseq
      %v1380 = vshrl.u32 %v1379, 7
      %v1381 = vsub.s32 %v1378, %v1380
      %v1382 = vrot.slane %v1374, %v1381
      %v1384 = vunpack.c.l.s4 1983009808
      %v1385 = vunpack.c.0.s8 %v1384
      %v1386 = vlaneseq
      %v1387 = vshrl.u32 %v1386, 7
      %v1388 = vsub.s32 %v1385, %v1387
      %v1389 = vrot.slane %v1375, %v1388
      %v1390 = vcombine.low %v1382, %v1389
      %v1408 = vunpack.c.l.b16 %v1354
      %v1409 = vunpack.c.l.b16 %v1355
      %v1410 = vunpack.c.l.b16 %v1356
      %v1411 = vunpack.c.l.b16 %v1357
      %v1412 = vunpack.c.l.b16 %v1358
      %v1413 = vunpack.c.l.b16 %v1359
      %v1414 = vunpack.c.l.b16 %v1360
      %v1415 = vunpack.c.l.b16 %v1361
      %v1416 = vunpack.c.l.b16 %v1362
      %v1417 = vunpack.c.l.b16 %v1363
      %v1418 = vunpack.c.l.b16 %v1364
      %v1419 = vunpack.c.l.b16 %v1365
      %v1420 = vunpack.c.l.b16 %v1366
      %v1421 = vunpack.c.l.b16 %v1367
      %v1422 = vunpack.c.l.b16 %v1368
      %v1423 = vunpack.c.l.b16 %v1369
      %v1424 = vpack.c.b16 %v1409, %v1408
      %v1425 = vpack.c.b16 %v1411, %v1410
      %v1426 = vpack.c.b16 %v1413, %v1412
      %v1427 = vpack.c.b16 %v1415, %v1414
      %v1428 = vpack.c.b16 %v1417, %v1416
      %v1429 = vpack.c.b16 %v1419, %v1418
      %v1430 = vpack.c.b16 %v1421, %v1420
      %v1431 = vpack.c.b16 %v1423, %v1422
      %1440 = vmatprep.subr.bf16.mxu0 0
      %1441 = vmatpush1.bf16.msra.mxu0 %v1424
      %1442 = vmatprep.subr.bf16.mxu0 0
      %1443 = vmatpush1.bf16.msra.mxu0 %v1425
      %1444 = vmatprep.subr.bf16.mxu0 0
      %1445 = vmatpush1.bf16.msra.mxu0 %v1426
      %1446 = vmatprep.subr.bf16.mxu0 0
      %1447 = vmatpush1.bf16.msra.mxu0 %v1427
      %1448 = vmatprep.subr.bf16.mxu0 0
      %1449 = vmatpush1.bf16.msra.mxu0 %v1428
      %1450 = vmatprep.subr.bf16.mxu0 0
      %1451 = vmatpush1.bf16.msra.mxu0 %v1429
      %1452 = vmatprep.subr.bf16.mxu0 0
      %1453 = vmatpush1.bf16.msra.mxu0 %v1430
      %1454 = vmatprep.subr.bf16.mxu0 0
      %1455 = vmatpush1.bf16.msra.mxu0 %v1431
      %1456 = vmatprep.subr.bf16.mxu0 0
      %1457 = vmatpush1.bf16.msra.mxu0 0
      %1458 = vmatprep.subr.bf16.mxu0 0
      %1459 = vmatpush1.bf16.msra.mxu0 0
      %1460 = vmatprep.subr.bf16.mxu0 0
      %1461 = vmatpush1.bf16.msra.mxu0 0
      %1462 = vmatprep.subr.bf16.mxu0 0
      %1463 = vmatpush1.bf16.msra.mxu0 0
      %1464 = vmatprep.subr.bf16.mxu0 0
      %1465 = vmatpush1.bf16.msra.mxu0 0
      %1466 = vmatprep.subr.bf16.mxu0 0
      %1467 = vmatpush1.bf16.msra.mxu0 0
      %1468 = vmatprep.subr.bf16.mxu0 0
      %1469 = vmatpush1.bf16.msra.mxu0 0
      %1470 = vmatprep.subr.bf16.mxu0 0
      %1471 = vmatpush1.bf16.msra.mxu0 0
      %1472 = vmatprep.mubr.bf16.mxu0 0
      %1473 = vmatmul.mubr.bf16.gmra.mrb[0].mxu0 %v1390
      %v1474 = vpop.f32.mrb[0].mxu0
      %v1475 = vadd.f32 0.0, %v1474
      %v1476 = vpop.f32.mrb[0].mxu0
      %v1477 = vpop.f32.mrb[0].mxu0
      %v1478 = vadd.f32 0.0, %v1477
      %v1479 = vpop.f32.mrb[0].mxu0
      %1480 = vdwg.mxu0
      %v1481 = vadd.f32 %v1346, %v1475
      %v1482 = vadd.f32 %v1347, %v1478
      %v1483 = vld [vmem:[%s1348] sm:$0x7]
      %v1484 = vld [vmem:[%s1348 + $0x4] sm:$0x7]
      %v1485 = vld [vmem:[%s1348 + $0x8] sm:$0x7]
      %v1486 = vld [vmem:[%s1348 + $0xc] sm:$0x7]
      %v1492 = vunpack.c.l.s4 1983009808
      %v1493 = vunpack.c.0.s8 %v1492
      %v1494 = vlaneseq
      %v1495 = vshrl.u32 %v1494, 7
      %v1496 = vsub.s32 %v1493, %v1495
      %v1497 = vrot.slane %v1483, %v1496
      %v1498 = vcombine.high %v1497, %v1497
      %v1500 = vunpack.c.l.s4 1983009808
      %v1501 = vunpack.c.0.s8 %v1500
      %v1502 = vlaneseq
      %v1503 = vshrl.u32 %v1502, 7
      %v1504 = vsub.s32 %v1501, %v1503
      %v1505 = vrot.slane %v1484, %v1504
      %v1506 = vcombine.high %v1505, %v1505
      %v1508 = vunpack.c.l.s4 1983009808
      %v1509 = vunpack.c.0.s8 %v1508
      %v1510 = vlaneseq
      %v1511 = vshrl.u32 %v1510, 7
      %v1512 = vsub.s32 %v1509, %v1511
      %v1513 = vrot.slane %v1485, %v1512
      %v1514 = vcombine.high %v1513, %v1513
      %v1516 = vunpack.c.l.s4 1983009808
      %v1517 = vunpack.c.0.s8 %v1516
      %v1518 = vlaneseq
      %v1519 = vshrl.u32 %v1518, 7
      %v1520 = vsub.s32 %v1517, %v1519
      %v1521 = vrot.slane %v1486, %v1520
      %v1522 = vcombine.high %v1521, %v1521
      %v1524 = vshrl.u32 %v1497, 16
      %v1526 = vrot.slane %v1524, 6
      %v1527 = vshll.u32 %v1497, 16
      %v1529 = vrot.slane %v1527, 7
      %v1530 = vor.u32 %v1526, %v1529
      %v1531 = vrot.slane %v1530, 2
      %v1533 = vshll.u32 %v1498, 16
      %v1535 = vrot.slane %v1533, 7
      %v1536 = vsel %vm328, %v1531, %v1535
      %v1538 = vshrl.u32 %v1505, 16
      %v1540 = vrot.slane %v1538, 6
      %v1541 = vshll.u32 %v1505, 16
      %v1543 = vrot.slane %v1541, 7
      %v1544 = vor.u32 %v1540, %v1543
      %v1545 = vrot.slane %v1544, 2
      %v1547 = vshll.u32 %v1506, 16
      %v1549 = vrot.slane %v1547, 7
      %v1550 = vsel %vm328, %v1545, %v1549
      %v1552 = vshrl.u32 %v1513, 16
      %v1554 = vrot.slane %v1552, 6
      %v1555 = vshll.u32 %v1513, 16
      %v1557 = vrot.slane %v1555, 7
      %v1558 = vor.u32 %v1554, %v1557
      %v1559 = vrot.slane %v1558, 2
      %v1561 = vshll.u32 %v1514, 16
      %v1563 = vrot.slane %v1561, 7
      %v1564 = vsel %vm328, %v1559, %v1563
      %v1566 = vshrl.u32 %v1521, 16
      %v1568 = vrot.slane %v1566, 6
      %v1569 = vshll.u32 %v1521, 16
      %v1571 = vrot.slane %v1569, 7
      %v1572 = vor.u32 %v1568, %v1571
      %v1573 = vrot.slane %v1572, 2
      %v1575 = vshll.u32 %v1522, 16
      %v1577 = vrot.slane %v1575, 7
      %v1578 = vsel %vm328, %v1573, %v1577
      %s1579 = scalar_lea.vmem %s1, 448
      %v1580 = vld [vmem:[%s1579] sm:$0xf]
      %v1581 = vld [vmem:[%s1579 + $0x4] sm:$0xf]
      %v1582 = vld [vmem:[%s1579 + $0x8] sm:$0xf]
      %v1583 = vld [vmem:[%s1579 + $0xc] sm:$0xf]
      %v1584 = vld [vmem:[%s1579 + $0x10] sm:$0xf]
      %v1585 = vld [vmem:[%s1579 + $0x14] sm:$0xf]
      %v1586 = vld [vmem:[%s1579 + $0x18] sm:$0xf]
      %v1587 = vld [vmem:[%s1579 + $0x1c] sm:$0xf]
      %v1588 = vld [vmem:[%s1579 + $0x20] sm:$0xf]
      %v1589 = vld [vmem:[%s1579 + $0x24] sm:$0xf]
      %v1590 = vld [vmem:[%s1579 + $0x28] sm:$0xf]
      %v1591 = vld [vmem:[%s1579 + $0x2c] sm:$0xf]
      %v1592 = vld [vmem:[%s1579 + $0x30] sm:$0xf]
      %v1593 = vld [vmem:[%s1579 + $0x34] sm:$0xf]
      %v1594 = vld [vmem:[%s1579 + $0x38] sm:$0xf]
      %v1595 = vld [vmem:[%s1579 + $0x3c] sm:$0xf]
      %v1596 = vcombine.low %v1536, %v1550
      %v1597 = vcombine.low %v1564, %v1578
      %v1599 = vunpack.c.l.s4 1983009808
      %v1600 = vunpack.c.0.s8 %v1599
      %v1601 = vlaneseq
      %v1602 = vshrl.u32 %v1601, 7
      %v1603 = vsub.s32 %v1600, %v1602
      %v1604 = vrot.slane %v1596, %v1603
      %v1606 = vunpack.c.l.s4 1983009808
      %v1607 = vunpack.c.0.s8 %v1606
      %v1608 = vlaneseq
      %v1609 = vshrl.u32 %v1608, 7
      %v1610 = vsub.s32 %v1607, %v1609
      %v1611 = vrot.slane %v1597, %v1610
      %v1612 = vcombine.low %v1604, %v1611
      %v1630 = vunpack.c.l.b16 %v1580
      %v1631 = vunpack.c.l.b16 %v1581
      %v1632 = vunpack.c.l.b16 %v1582
      %v1633 = vunpack.c.l.b16 %v1583
      %v1634 = vunpack.c.l.b16 %v1584
      %v1635 = vunpack.c.l.b16 %v1585
      %v1636 = vunpack.c.l.b16 %v1586
      %v1637 = vunpack.c.l.b16 %v1587
      %v1638 = vunpack.c.l.b16 %v1588
      %v1639 = vunpack.c.l.b16 %v1589
      %v1640 = vunpack.c.l.b16 %v1590
      %v1641 = vunpack.c.l.b16 %v1591
      %v1642 = vunpack.c.l.b16 %v1592
      %v1643 = vunpack.c.l.b16 %v1593
      %v1644 = vunpack.c.l.b16 %v1594
      %v1645 = vunpack.c.l.b16 %v1595
      %v1646 = vpack.c.b16 %v1631, %v1630
      %v1647 = vpack.c.b16 %v1633, %v1632
      %v1648 = vpack.c.b16 %v1635, %v1634
      %v1649 = vpack.c.b16 %v1637, %v1636
      %v1650 = vpack.c.b16 %v1639, %v1638
      %v1651 = vpack.c.b16 %v1641, %v1640
      %v1652 = vpack.c.b16 %v1643, %v1642
      %v1653 = vpack.c.b16 %v1645, %v1644
      %1662 = vmatprep.subr.bf16.mxu0 0
      %1663 = vmatpush1.bf16.msra.mxu0 %v1646
      %1664 = vmatprep.subr.bf16.mxu0 0
      %1665 = vmatpush1.bf16.msra.mxu0 %v1647
      %1666 = vmatprep.subr.bf16.mxu0 0
      %1667 = vmatpush1.bf16.msra.mxu0 %v1648
      %1668 = vmatprep.subr.bf16.mxu0 0
      %1669 = vmatpush1.bf16.msra.mxu0 %v1649
      %1670 = vmatprep.subr.bf16.mxu0 0
      %1671 = vmatpush1.bf16.msra.mxu0 %v1650
      %1672 = vmatprep.subr.bf16.mxu0 0
      %1673 = vmatpush1.bf16.msra.mxu0 %v1651
      %1674 = vmatprep.subr.bf16.mxu0 0
      %1675 = vmatpush1.bf16.msra.mxu0 %v1652
      %1676 = vmatprep.subr.bf16.mxu0 0
      %1677 = vmatpush1.bf16.msra.mxu0 %v1653
      %1678 = vmatprep.subr.bf16.mxu0 0
      %1679 = vmatpush1.bf16.msra.mxu0 0
      %1680 = vmatprep.subr.bf16.mxu0 0
      %1681 = vmatpush1.bf16.msra.mxu0 0
      %1682 = vmatprep.subr.bf16.mxu0 0
      %1683 = vmatpush1.bf16.msra.mxu0 0
      %1684 = vmatprep.subr.bf16.mxu0 0
      %1685 = vmatpush1.bf16.msra.mxu0 0
      %1686 = vmatprep.subr.bf16.mxu0 0
      %1687 = vmatpush1.bf16.msra.mxu0 0
      %1688 = vmatprep.subr.bf16.mxu0 0
      %1689 = vmatpush1.bf16.msra.mxu0 0
      %1690 = vmatprep.subr.bf16.mxu0 0
      %1691 = vmatpush1.bf16.msra.mxu0 0
      %1692 = vmatprep.subr.bf16.mxu0 0
      %1693 = vmatpush1.bf16.msra.mxu0 0
      %1694 = vmatprep.mubr.bf16.mxu0 0
      %1695 = vmatmul.mubr.bf16.gmra.mrb[0].mxu0 %v1612
      %v1696 = vpop.f32.mrb[0].mxu0
      %v1697 = vadd.f32 0.0, %v1696
      %v1698 = vpop.f32.mrb[0].mxu0
      %v1699 = vpop.f32.mrb[0].mxu0
      %v1700 = vadd.f32 0.0, %v1699
      %v1701 = vpop.f32.mrb[0].mxu0
      %1702 = vdwg.mxu0
      %v1703 = vadd.f32 %v1481, %v1697
      %v1704 = vadd.f32 %v1482, %v1700
      %v1705 = vld [vmem:[%s1348] sm:$0x6]
      %v1706 = vld [vmem:[%s1348 + $0x4] sm:$0x6]
      %v1707 = vld [vmem:[%s1348 + $0x8] sm:$0x6]
      %v1708 = vld [vmem:[%s1348 + $0xc] sm:$0x6]
      %v1714 = vunpack.c.l.s4 1983009808
      %v1715 = vunpack.c.0.s8 %v1714
      %v1716 = vlaneseq
      %v1717 = vshrl.u32 %v1716, 7
      %v1718 = vsub.s32 %v1715, %v1717
      %v1719 = vrot.slane %v1705, %v1718
      %v1720 = vcombine.high %v1719, %v1719
      %v1722 = vunpack.c.l.s4 1983009808
      %v1723 = vunpack.c.0.s8 %v1722
      %v1724 = vlaneseq
      %v1725 = vshrl.u32 %v1724, 7
      %v1726 = vsub.s32 %v1723, %v1725
      %v1727 = vrot.slane %v1706, %v1726
      %v1728 = vcombine.high %v1727, %v1727
      %v1730 = vunpack.c.l.s4 1983009808
      %v1731 = vunpack.c.0.s8 %v1730
      %v1732 = vlaneseq
      %v1733 = vshrl.u32 %v1732, 7
      %v1734 = vsub.s32 %v1731, %v1733
      %v1735 = vrot.slane %v1707, %v1734
      %v1736 = vcombine.high %v1735, %v1735
      %v1738 = vunpack.c.l.s4 1983009808
      %v1739 = vunpack.c.0.s8 %v1738
      %v1740 = vlaneseq
      %v1741 = vshrl.u32 %v1740, 7
      %v1742 = vsub.s32 %v1739, %v1741
      %v1743 = vrot.slane %v1708, %v1742
      %v1744 = vcombine.high %v1743, %v1743
      %v1745 = vrot.slane %v1719, 7
      %v1746 = vrot.slane %v1745, 2
      %v1747 = vrot.slane %v1720, 7
      %v1748 = vsel %vm666, %v1746, %v1747
      %v1749 = vrot.slane %v1727, 7
      %v1750 = vrot.slane %v1749, 2
      %v1751 = vrot.slane %v1728, 7
      %v1752 = vsel %vm666, %v1750, %v1751
      %v1753 = vrot.slane %v1735, 7
      %v1754 = vrot.slane %v1753, 2
      %v1755 = vrot.slane %v1736, 7
      %v1756 = vsel %vm666, %v1754, %v1755
      %v1757 = vrot.slane %v1743, 7
      %v1758 = vrot.slane %v1757, 2
      %v1759 = vrot.slane %v1744, 7
      %v1760 = vsel %vm666, %v1758, %v1759
      %s1761 = scalar_lea.vmem %s1, 512
      %v1762 = vld [vmem:[%s1761] sm:$0xf]
      %v1763 = vld [vmem:[%s1761 + $0x4] sm:$0xf]
      %v1764 = vld [vmem:[%s1761 + $0x8] sm:$0xf]
      %v1765 = vld [vmem:[%s1761 + $0xc] sm:$0xf]
      %v1766 = vld [vmem:[%s1761 + $0x10] sm:$0xf]
      %v1767 = vld [vmem:[%s1761 + $0x14] sm:$0xf]
      %v1768 = vld [vmem:[%s1761 + $0x18] sm:$0xf]
      %v1769 = vld [vmem:[%s1761 + $0x1c] sm:$0xf]
      %v1770 = vld [vmem:[%s1761 + $0x20] sm:$0xf]
      %v1771 = vld [vmem:[%s1761 + $0x24] sm:$0xf]
      %v1772 = vld [vmem:[%s1761 + $0x28] sm:$0xf]
      %v1773 = vld [vmem:[%s1761 + $0x2c] sm:$0xf]
      %v1774 = vld [vmem:[%s1761 + $0x30] sm:$0xf]
      %v1775 = vld [vmem:[%s1761 + $0x34] sm:$0xf]
      %v1776 = vld [vmem:[%s1761 + $0x38] sm:$0xf]
      %v1777 = vld [vmem:[%s1761 + $0x3c] sm:$0xf]
      %v1778 = vcombine.low %v1748, %v1752
      %v1779 = vcombine.low %v1756, %v1760
      %v1781 = vunpack.c.l.s4 1983009808
      %v1782 = vunpack.c.0.s8 %v1781
      %v1783 = vlaneseq
      %v1784 = vshrl.u32 %v1783, 7
      %v1785 = vsub.s32 %v1782, %v1784
      %v1786 = vrot.slane %v1778, %v1785
      %v1788 = vunpack.c.l.s4 1983009808
      %v1789 = vunpack.c.0.s8 %v1788
      %v1790 = vlaneseq
      %v1791 = vshrl.u32 %v1790, 7
      %v1792 = vsub.s32 %v1789, %v1791
      %v1793 = vrot.slane %v1779, %v1792
      %v1794 = vcombine.low %v1786, %v1793
      %v1812 = vunpack.c.l.b16 %v1762
      %v1813 = vunpack.c.l.b16 %v1763
      %v1814 = vunpack.c.l.b16 %v1764
      %v1815 = vunpack.c.l.b16 %v1765
      %v1816 = vunpack.c.l.b16 %v1766
      %v1817 = vunpack.c.l.b16 %v1767
      %v1818 = vunpack.c.l.b16 %v1768
      %v1819 = vunpack.c.l.b16 %v1769
      %v1820 = vunpack.c.l.b16 %v1770
      %v1821 = vunpack.c.l.b16 %v1771
      %v1822 = vunpack.c.l.b16 %v1772
      %v1823 = vunpack.c.l.b16 %v1773
      %v1824 = vunpack.c.l.b16 %v1774
      %v1825 = vunpack.c.l.b16 %v1775
      %v1826 = vunpack.c.l.b16 %v1776
      %v1827 = vunpack.c.l.b16 %v1777
      %v1828 = vpack.c.b16 %v1813, %v1812
      %v1829 = vpack.c.b16 %v1815, %v1814
      %v1830 = vpack.c.b16 %v1817, %v1816
      %v1831 = vpack.c.b16 %v1819, %v1818
      %v1832 = vpack.c.b16 %v1821, %v1820
      %v1833 = vpack.c.b16 %v1823, %v1822
      %v1834 = vpack.c.b16 %v1825, %v1824
      %v1835 = vpack.c.b16 %v1827, %v1826
      %1844 = vmatprep.subr.bf16.mxu0 0
      %1845 = vmatpush1.bf16.msra.mxu0 %v1828
      %1846 = vmatprep.subr.bf16.mxu0 0
      %1847 = vmatpush1.bf16.msra.mxu0 %v1829
      %1848 = vmatprep.subr.bf16.mxu0 0
      %1849 = vmatpush1.bf16.msra.mxu0 %v1830
      %1850 = vmatprep.subr.bf16.mxu0 0
      %1851 = vmatpush1.bf16.msra.mxu0 %v1831
      %1852 = vmatprep.subr.bf16.mxu0 0
      %1853 = vmatpush1.bf16.msra.mxu0 %v1832
      %1854 = vmatprep.subr.bf16.mxu0 0
      %1855 = vmatpush1.bf16.msra.mxu0 %v1833
      %1856 = vmatprep.subr.bf16.mxu0 0
      %1857 = vmatpush1.bf16.msra.mxu0 %v1834
      %1858 = vmatprep.subr.bf16.mxu0 0
      %1859 = vmatpush1.bf16.msra.mxu0 %v1835
      %1860 = vmatprep.subr.bf16.mxu0 0
      %1861 = vmatpush1.bf16.msra.mxu0 0
      %1862 = vmatprep.subr.bf16.mxu0 0
      %1863 = vmatpush1.bf16.msra.mxu0 0
      %1864 = vmatprep.subr.bf16.mxu0 0
      %1865 = vmatpush1.bf16.msra.mxu0 0
      %1866 = vmatprep.subr.bf16.mxu0 0
      %1867 = vmatpush1.bf16.msra.mxu0 0
      %1868 = vmatprep.subr.bf16.mxu0 0
      %1869 = vmatpush1.bf16.msra.mxu0 0
      %1870 = vmatprep.subr.bf16.mxu0 0
      %1871 = vmatpush1.bf16.msra.mxu0 0
      %1872 = vmatprep.subr.bf16.mxu0 0
      %1873 = vmatpush1.bf16.msra.mxu0 0
      %1874 = vmatprep.subr.bf16.mxu0 0
      %1875 = vmatpush1.bf16.msra.mxu0 0
      %1876 = vmatprep.mubr.bf16.mxu0 0
      %1877 = vmatmul.mubr.bf16.gmra.mrb[0].mxu0 %v1794
      %v1878 = vpop.f32.mrb[0].mxu0
      %v1879 = vadd.f32 0.0, %v1878
      %v1880 = vpop.f32.mrb[0].mxu0
      %v1881 = vpop.f32.mrb[0].mxu0
      %v1882 = vadd.f32 0.0, %v1881
      %v1883 = vpop.f32.mrb[0].mxu0
      %1884 = vdwg.mxu0
      %v1885 = vadd.f32 %v1703, %v1879
      %v1886 = vadd.f32 %v1704, %v1882
      %v1887 = vld [vmem:[%s2] sm:$0x1]
      %v1889 = vlaneseq
      %v1890 = vshrl.u32 %v1889, 7
      %v1891 = vsub.s32 0, %v1890
      %v1892 = vrot.slane %v1887, %v1891
      %v1894 = vadd.f32 %v1885, %v1892
      %v1895 = vadd.f32 %v1886, %v1892
      %v1896 = vmul.f32 %v1894, %v1894
      %v1897 = vmul.f32 %v1895, %v1895
      %v1898 = vpack.c.bf16 %v1897, %v1896
      %v1899 = vld [vmem:[%s3] sm:$0xf]
      %v1900 = vld [vmem:[%s3 + $0x4] sm:$0xf]
      %v1901 = vld [vmem:[%s3 + $0x8] sm:$0xf]
      %v1902 = vld [vmem:[%s3 + $0xc] sm:$0xf]
      %v1903 = vld [vmem:[%s4] sm:$0x1]
      %v1905 = vlaneseq
      %v1906 = vshrl.u32 %v1905, 7
      %v1907 = vsub.s32 0, %v1906
      %v1908 = vrot.slane %v1903, %v1907
      %v1914 = vunpack.c.l.b16 %v1899
      %v1915 = vunpack.c.l.b16 %v1900
      %v1916 = vunpack.c.l.b16 %v1901
      %v1917 = vunpack.c.l.b16 %v1902
      %v1918 = vpack.c.b16 %v1915, %v1914
      %v1919 = vpack.c.b16 %v1917, %v1916
      %vm1922 = vcmask 261120
      %v1924 = vsel %vm1922, %v1898, 0
      %1926 = vmatprep.subr.bf16.mxu0 0
      %1927 = vmatpush1.bf16.msra.mxu0 %v1918
      %1928 = vmatprep.subr.bf16.mxu0 0
      %1929 = vmatpush1.bf16.msra.mxu0 %v1919
      %1930 = vmatprep.subr.bf16.mxu0 0
      %1931 = vmatpush1.bf16.msra.mxu0 0
      %1932 = vmatprep.subr.bf16.mxu0 0
      %1933 = vmatpush1.bf16.msra.mxu0 0
      %1934 = vmatprep.subr.bf16.mxu0 0
      %1935 = vmatpush1.bf16.msra.mxu0 0
      %1936 = vmatprep.subr.bf16.mxu0 0
      %1937 = vmatpush1.bf16.msra.mxu0 0
      %1938 = vmatprep.subr.bf16.mxu0 0
      %1939 = vmatpush1.bf16.msra.mxu0 0
      %1940 = vmatprep.subr.bf16.mxu0 0
      %1941 = vmatpush1.bf16.msra.mxu0 0
      %1942 = vmatprep.subr.bf16.mxu0 0
      %1943 = vmatpush1.bf16.msra.mxu0 0
      %1944 = vmatprep.subr.bf16.mxu0 0
      %1945 = vmatpush1.bf16.msra.mxu0 0
      %1946 = vmatprep.subr.bf16.mxu0 0
      %1947 = vmatpush1.bf16.msra.mxu0 0
      %1948 = vmatprep.subr.bf16.mxu0 0
      %1949 = vmatpush1.bf16.msra.mxu0 0
      %1950 = vmatprep.subr.bf16.mxu0 0
      %1951 = vmatpush1.bf16.msra.mxu0 0
      %1952 = vmatprep.subr.bf16.mxu0 0
      %1953 = vmatpush1.bf16.msra.mxu0 0
      %1954 = vmatprep.subr.bf16.mxu0 0
      %1955 = vmatpush1.bf16.msra.mxu0 0
      %1956 = vmatprep.subr.bf16.mxu0 0
      %1957 = vmatpush1.bf16.msra.mxu0 0
      %1958 = vmatprep.mubr.bf16.mxu0 0
      %1959 = vmatmul.mubr.bf16.gmra.mrb[0].mxu0 %v1924
      %v1960 = vpop.f32.mrb[0].mxu0
      %v1961 = vadd.f32 %v1908, %v1960
      %v1962 = vpop.f32.mrb[0].mxu0
      %v1963 = vpop.f32.mrb[0].mxu0
      %v1964 = vadd.f32 %v1908, %v1963
      %v1965 = vpop.f32.mrb[0].mxu0
      %1966 = vdwg.mxu0
      %v1967 = vrsqrt.pop %v1961
      %v1968 = vrsqrt.pop %v1964
      %v1969 = vmul.f32 %v1894, %v1967
      %v1970 = vmul.f32 %v1895, %v1968
      %v1971 = vpack.c.bf16 %v1970, %v1969
      %v1973 = vunpack.c.l.b16 %v1971
      %v1974 = vunpack.c.h.b16 %v1971
      %v1975 = vpack.c.b16 %v1973, %v1973
      %v1976 = vpack.c.b16 %v1974, %v1974
      %vm1979 = vcmask 257024
      %1980 = vst.msk [vmem:[%s260] sm:$0xf] %vm1979, %v1975
      %1981 = vst.msk [vmem:[%s260 + $0x4] sm:$0xf] %vm1979, %v1976
      %p1982 = scmp.lt.s32.totalorder %s20, 1
      %s1983 = scalar_select %p1982, %s20, 1
      %p1984 = scmp.lt.s32.totalorder %s21, 0
      %s1985 = scalar_select %p1984, %s21, 0
      %s1986 = smul.addr %s1985, 2
      %s1987 = smul.addr %s1983, 2
      %s1988 = sadd.s32 %s1986, %s1987
      %s1989 = smul.addr %s1988, 4
      %s1990 = scalar_lea.vmem %s5, %s1989
      // Predicated region
      $region41: #{rgb_encoder_forward.5} parent=39 // pred_check
        %p1991 = pneg %p160
      $region42: #{rgb_encoder_forward.5} parent=39 // pred_check_branch
        %1993 = sbr.rel (%p1991) target = $region44
      $region43: #{rgb_encoder_forward.5} parent=39 // pred_region
        _
      $region44: #{rgb_encoder_forward.5} parent=39 // pred_fallthru
        _
    $region40: #{rgb_encoder_forward.5} parent=5 // pred_fallthru
      _
    %p1994 = scmp.le.s32.totalorder 2, %s11
    // Predicated region
    $region45: #{rgb_encoder_forward.5} parent=5 // pred_check
      %p1995 = pneg %p1994
    $region46: #{rgb_encoder_forward.5} parent=5 // pred_check_branch
      %1997 = sbr.rel (%p1995) target = $region48
    $region47: #{rgb_encoder_forward.5} parent=5 // pred_region
      %s1998 = ssub.s32 %s11, 2
      // Predicated region
      $region49: #{rgb_encoder_forward.5} parent=47 // pred_check
        %p1999 = pneg %p166
      $region50: #{rgb_encoder_forward.5} parent=47 // pred_check_branch
        %2001 = sbr.rel (%p1999) target = $region52
      $region51: #{rgb_encoder_forward.5} parent=47 // pred_region
        %p2002 = scmp.lt.s32.totalorder %s22, 1
        %s2003 = scalar_select %p2002, %s22, 1
        %p2004 = scmp.lt.s32.totalorder %s23, 0
        %s2005 = scalar_select %p2004, %s23, 0
        %s2006 = smul.addr %s2005, 2
        %s2007 = smul.addr %s2003, 2
        %s2008 = sadd.s32 %s2006, %s2007
        %s2009 = smul.addr %s2008, 4
        %s2010 = scalar_lea.vmem %s5, %s2009
      $region52: #{rgb_encoder_forward.5} parent=47 // pred_fallthru
        _
    $region48: #{rgb_encoder_forward.5} parent=5 // pred_fallthru
      _
  $region6: #{rgb_encoder_forward.5} parent=0 // loop_footer
    %s15 = sadd.s32 1, %s11
  $region7: #{rgb_encoder_forward.5} parent=0 // loop_footer_branch
    %10 = sbr.rel target = $region3
  $region8: #{rgb_encoder_forward.5} parent=0 // loop_exit
    _

// kernel: rgb_encoder_forward.6
$region0: #{rgb_encoder_forward.6}
  #allocation0 [shape = 'u32[]', space=smem, size = 0x4, offset = 0x4, fixed_abs, tag = 'smem constant byte address 0x4 - core index']
  #allocation1 [shape = 'u32[144,128]{1,0:T(1,128)}', space=vmem, size = 0x12000, scoped, tag = 'internal scratch']
  %s0 = inlined_call_operand.vmem [shape: bf16[2,1,4,4,128], index: 0, kind: input, shape index: {}]
  %s1 = inlined_call_operand.vmem [shape: bf16[9,128,32], index: 1, kind: input, shape index: {}]
  %s2 = inlined_call_operand.vmem [shape: f32[1,32], index: 2, kind: input, shape index: {}]
  %s3 = inlined_call_operand.vmem [shape: bf16[32,32], index: 3, kind: input, shape index: {}]
  %s4 = inlined_call_operand.vmem [shape: f32[1,32], index: 4, kind: input, shape index: {}]
  %s5 = inlined_call_operand.vmem [shape: bf16[2,1,4,32], index: 5, kind: output, shape index: {}]
  %s6 = sld [smem:[#allocation0]]
  $region53: #{rgb_encoder_forward.6} parent=0
    _
  %s8 = ssub.s32 1, %s6
  %s9 = scalar_select 0, %s8, %s6
  loop: start=0, step=1, limit=4
  $region2: #{rgb_encoder_forward.6} parent=0 // loop_pre_header
    _
  $region3: #{rgb_encoder_forward.6} parent=0 // loop_header
    %s11 = sphi 0, %s15
    %p12 = scmp.ge.s32.totalorder %s11, 4
    %s18 = sphi 0, %s30
    %s19 = sphi 0, %s26
    %s20 = sphi 0, %s18
    %s21 = sphi 0, %s19
    %s22 = sphi 0, %s20
    %s23 = sphi 0, %s21
    %s35 = sphi 0, %s37
    %s38 = sphi 0, %s35
    %s39 = sphi 0, %s38
    %s55 = sphi 0, %s39
    %s59 = sphi 0, %s59
    %s61 = sphi 0, %s59
    %s62 = sphi 0, %s61
    %s76 = sphi 0, %s62
    %s80 = sphi 0, %s80
    %s82 = sphi 0, %s80
    %s83 = sphi 0, %s82
    %s97 = sphi 0, %s83
    %s101 = sphi 0, %s101
    %s103 = sphi 0, %s101
    %s104 = sphi 0, %s103
    %s118 = sphi 0, %s104
    %s122 = sphi 0, %s122
    %s124 = sphi 0, %s122
    %s125 = sphi 0, %s124
    %s139 = sphi 0, %s125
    %s147 = sphi 0, %s149
    %s150 = sphi 0, %s147
    %s151 = sphi 0, %s150
    %s167 = sphi 0, %s151
  $region4: #{rgb_encoder_forward.6} parent=0 // loop_header_branch
    %14 = sbr.rel (%p12) target = $region8
  $region5: #{rgb_encoder_forward.6} parent=0 // loop_body
    %s16 = ssub.s32 %s11, 1
    %s17 = ssub.s32 %s11, 2
    %s24 = sadd.s32 1, %s19
    %p25 = scmp.ge.s32.totalorder %s24, 1
    %s26 = scalar_select %p25, 0, %s24
    %s27 = sadd.s32 1, %s18
    %s28 = scalar_select %p25, %s27, %s18
    %p29 = scmp.ge.s32.totalorder %s28, 2
    %s30 = scalar_select %p29, 0, %s28
    %s31 = ssub.s32 %s18, %s30
    %s32 = ssub.s32 %s19, %s26
    %s33 = sor.u32 %s31, %s32
    %p34 = scmp.eq.s32.totalorder %s33, 0
    %s36 = sadd.s32 %s35, 1
    %s37 = scalar_select %p34, %s35, %s36
    %p40 = pneg %p34
    %p41 = scmp.eq.s32.totalorder %s11, 1
    %p42 = por %p40, %p41
    %p43 = scmp.ne.s32.totalorder %s35, %s38
    %p44 = scmp.eq.s32.totalorder %s11, 0
    %p45 = por %p43, %p44
    %p46 = scmp.ne.s32.totalorder %s35, %s38
    %p47 = scmp.eq.s32.totalorder %s16, 1
    %p48 = por %p46, %p47
    %p49 = scmp.ne.s32.totalorder %s38, %s39
    %p50 = scmp.eq.s32.totalorder %s16, 0
    %p51 = por %p49, %p50
    %p52 = scmp.ne.s32.totalorder %s38, %s39
    %p53 = scmp.eq.s32.totalorder %s17, 1
    %p54 = por %p52, %p53
    %p56 = scmp.ne.s32.totalorder %s39, %s55
    %p57 = scmp.eq.s32.totalorder %s17, 0
    %p58 = por %p56, %p57
    %s60 = sadd.s32 %s59, 1
    %p63 = scmp.eq.s32.totalorder %s11, 1
    %p64 = scmp.ne.s32.totalorder %s59, %s61
    %p65 = scmp.eq.s32.totalorder %s11, 0
    %p66 = por %p64, %p65
    %p67 = scmp.ne.s32.totalorder %s59, %s61
    %p68 = scmp.eq.s32.totalorder %s16, 1
    %p69 = por %p67, %p68
    %p70 = scmp.ne.s32.totalorder %s61, %s62
    %p71 = scmp.eq.s32.totalorder %s16, 0
    %p72 = por %p70, %p71
    %p73 = scmp.ne.s32.totalorder %s61, %s62
    %p74 = scmp.eq.s32.totalorder %s17, 1
    %p75 = por %p73, %p74
    %p77 = scmp.ne.s32.totalorder %s62, %s76
    %p78 = scmp.eq.s32.totalorder %s17, 0
    %p79 = por %p77, %p78
    %s81 = sadd.s32 %s80, 1
    %p84 = scmp.eq.s32.totalorder %s11, 1
    %p85 = scmp.ne.s32.totalorder %s80, %s82
    %p86 = scmp.eq.s32.totalorder %s11, 0
    %p87 = por %p85, %p86
    %p88 = scmp.ne.s32.totalorder %s80, %s82
    %p89 = scmp.eq.s32.totalorder %s16, 1
    %p90 = por %p88, %p89
    %p91 = scmp.ne.s32.totalorder %s82, %s83
    %p92 = scmp.eq.s32.totalorder %s16, 0
    %p93 = por %p91, %p92
    %p94 = scmp.ne.s32.totalorder %s82, %s83
    %p95 = scmp.eq.s32.totalorder %s17, 1
    %p96 = por %p94, %p95
    %p98 = scmp.ne.s32.totalorder %s83, %s97
    %p99 = scmp.eq.s32.totalorder %s17, 0
    %p100 = por %p98, %p99
    %s102 = sadd.s32 %s101, 1
    %p105 = scmp.eq.s32.totalorder %s11, 1
    %p106 = scmp.ne.s32.totalorder %s101, %s103
    %p107 = scmp.eq.s32.totalorder %s11, 0
    %p108 = por %p106, %p107
    %p109 = scmp.ne.s32.totalorder %s101, %s103
    %p110 = scmp.eq.s32.totalorder %s16, 1
    %p111 = por %p109, %p110
    %p112 = scmp.ne.s32.totalorder %s103, %s104
    %p113 = scmp.eq.s32.totalorder %s16, 0
    %p114 = por %p112, %p113
    %p115 = scmp.ne.s32.totalorder %s103, %s104
    %p116 = scmp.eq.s32.totalorder %s17, 1
    %p117 = por %p115, %p116
    %p119 = scmp.ne.s32.totalorder %s104, %s118
    %p120 = scmp.eq.s32.totalorder %s17, 0
    %p121 = por %p119, %p120
    %s123 = sadd.s32 %s122, 1
    %p126 = scmp.eq.s32.totalorder %s11, 1
    %p127 = scmp.ne.s32.totalorder %s122, %s124
    %p128 = scmp.eq.s32.totalorder %s11, 0
    %p129 = por %p127, %p128
    %p130 = scmp.ne.s32.totalorder %s122, %s124
    %p131 = scmp.eq.s32.totalorder %s16, 1
    %p132 = por %p130, %p131
    %p133 = scmp.ne.s32.totalorder %s124, %s125
    %p134 = scmp.eq.s32.totalorder %s16, 0
    %p135 = por %p133, %p134
    %p136 = scmp.ne.s32.totalorder %s124, %s125
    %p137 = scmp.eq.s32.totalorder %s17, 1
    %p138 = por %p136, %p137
    %p140 = scmp.ne.s32.totalorder %s125, %s139
    %p141 = scmp.eq.s32.totalorder %s17, 0
    %p142 = por %p140, %p141
    %s143 = ssub.s32 %s18, %s30
    %s144 = ssub.s32 %s19, %s26
    %s145 = sor.u32 %s143, %s144
    %p146 = scmp.eq.s32.totalorder %s145, 0
    %s148 = sadd.s32 %s147, 1
    %s149 = scalar_select %p146, %s147, %s148
    %p152 = pneg %p146
    %p153 = scmp.eq.s32.totalorder %s11, 1
    %p154 = por %p152, %p153
    %p155 = scmp.ne.s32.totalorder %s147, %s150
    %p156 = scmp.eq.s32.totalorder %s11, 0
    %p157 = por %p155, %p156
    %p158 = scmp.ne.s32.totalorder %s147, %s150
    %p159 = scmp.eq.s32.totalorder %s16, 1
    %p160 = por %p158, %p159
    %p161 = scmp.ne.s32.totalorder %s150, %s151
    %p162 = scmp.eq.s32.totalorder %s16, 0
    %p163 = por %p161, %p162
    %p164 = scmp.ne.s32.totalorder %s150, %s151
    %p165 = scmp.eq.s32.totalorder %s17, 1
    %p166 = por %p164, %p165
    %p168 = scmp.ne.s32.totalorder %s151, %s167
    %p169 = scmp.eq.s32.totalorder %s17, 0
    %p170 = por %p168, %p169
    %p171 = scmp.le.s32.totalorder 1, %s11
    %p172 = scmp.lt.s32.totalorder %s11, 3
    %p173 = pnand %p171, %p172
    %p174 = pneg %p173
    // Predicated region
    $region9: #{rgb_encoder_forward.6} parent=5 // pred_check
      _
    $region10: #{rgb_encoder_forward.6} parent=5 // pred_check_branch
      %176 = sbr.rel (%p173) target = $region12
    $region11: #{rgb_encoder_forward.6} parent=5 // pred_region
      %s177 = ssub.s32 %s11, 1
      // Predicated region
      $region13: #{rgb_encoder_forward.6} parent=11 // pred_check
        %p178 = pneg %p72
      $region14: #{rgb_encoder_forward.6} parent=11 // pred_check_branch
        %180 = sbr.rel (%p178) target = $region16
      $region15: #{rgb_encoder_forward.6} parent=11 // pred_region
        _
      $region16: #{rgb_encoder_forward.6} parent=11 // pred_fallthru
        _
      // Predicated region
      $region17: #{rgb_encoder_forward.6} parent=11 // pred_check
        %p181 = pneg %p93
      $region18: #{rgb_encoder_forward.6} parent=11 // pred_check_branch
        %183 = sbr.rel (%p181) target = $region20
      $region19: #{rgb_encoder_forward.6} parent=11 // pred_region
        _
      $region20: #{rgb_encoder_forward.6} parent=11 // pred_fallthru
        _
      // Predicated region
      $region21: #{rgb_encoder_forward.6} parent=11 // pred_check
        %p184 = pneg %p114
      $region22: #{rgb_encoder_forward.6} parent=11 // pred_check_branch
        %186 = sbr.rel (%p184) target = $region24
      $region23: #{rgb_encoder_forward.6} parent=11 // pred_region
        _
      $region24: #{rgb_encoder_forward.6} parent=11 // pred_fallthru
        _
      // Predicated region
      $region25: #{rgb_encoder_forward.6} parent=11 // pred_check
        %p187 = pneg %p135
      $region26: #{rgb_encoder_forward.6} parent=11 // pred_check_branch
        %189 = sbr.rel (%p187) target = $region28
      $region27: #{rgb_encoder_forward.6} parent=11 // pred_region
        _
      $region28: #{rgb_encoder_forward.6} parent=11 // pred_fallthru
        _
    $region12: #{rgb_encoder_forward.6} parent=5 // pred_fallthru
      _
    %p190 = scmp.lt.s32.totalorder %s11, 2
    // Predicated region
    $region29: #{rgb_encoder_forward.6} parent=5 // pred_check
      %p191 = pneg %p190
    $region30: #{rgb_encoder_forward.6} parent=5 // pred_check_branch
      %193 = sbr.rel (%p191) target = $region32
    $region31: #{rgb_encoder_forward.6} parent=5 // pred_region
      // Predicated region
      $region33: #{rgb_encoder_forward.6} parent=31 // pred_check
        %p194 = pneg %p45
      $region34: #{rgb_encoder_forward.6} parent=31 // pred_check_branch
        %196 = sbr.rel (%p194) target = $region36
      $region35: #{rgb_encoder_forward.6} parent=31 // pred_region
        %p197 = scmp.lt.s32.totalorder %s18, 1
        %s198 = scalar_select %p197, %s18, 1
        %p199 = scmp.lt.s32.totalorder %s19, 0
        %s200 = scalar_select %p199, %s19, 0
        %s201 = smul.addr %s200, 4
        %s202 = smul.addr %s198, 4
        %s203 = sadd.s32 %s201, %s202
        %s204 = smul.addr %s203, 2
        %s205 = scalar_lea.vmem %s0, %s204
      $region36: #{rgb_encoder_forward.6} parent=31 // pred_fallthru
        _
    $region32: #{rgb_encoder_forward.6} parent=5 // pred_fallthru
      _
    %p206 = scmp.le.s32.totalorder 1, %s11
    %p207 = scmp.lt.s32.totalorder %s11, 3
    %p208 = pnand %p206, %p207
    %p209 = pneg %p208
    // Predicated region
    $region37: #{rgb_encoder_forward.6} parent=5 // pred_check
      _
    $region38: #{rgb_encoder_forward.6} parent=5 // pred_check_branch
      %211 = sbr.rel (%p208) target = $region40
    $region39: #{rgb_encoder_forward.6} parent=5 // pred_region
      %s212 = ssub.s32 %s11, 1
      %p213 = scmp.lt.s32.totalorder %s20, 1
      %s214 = scalar_select %p213, %s20, 1
      %p215 = scmp.lt.s32.totalorder %s21, 0
      %s216 = scalar_select %p215, %s21, 0
      %s217 = smul.addr %s216, 4
      %s218 = smul.addr %s214, 4
      %s219 = sadd.s32 %s217, %s218
      %s220 = smul.addr %s219, 2
      %s221 = scalar_lea.vmem %s0, %s220
      %p222 = pneg %p51
      %p223 = pneg %p48
      %p224 = pneg %p72
      %p225 = pneg %p69
      %p226 = pneg %p93
      %p227 = pneg %p90
      %p228 = pneg %p114
      %p229 = pneg %p111
      %p230 = pneg %p135
      %p231 = pneg %p132
      %p232 = pneg %p163
      %p233 = pneg %p160
      %p234 = scmp.lt.s32.totalorder %s20, 1
      %s235 = scalar_select %p234, %s20, 1
      %p236 = scmp.lt.s32.totalorder %s21, 0
      %s237 = scalar_select %p236, %s21, 0
      %s238 = sadd.s32 %s237, %s235
      %s239 = smul.addr %s238, 2
      %s240 = scalar_lea.vmem %s5, %s239
      %p241 = scmp.lt.s32.totalorder %s20, 1
      %s242 = scalar_select %p241, %s20, 1
      %p243 = scmp.lt.s32.totalorder %s21, 0
      %s244 = scalar_select %p243, %s21, 0
      %s245 = smul.addr %s244, 4
      %s246 = smul.addr %s242, 4
      %s247 = sadd.s32 %s245, %s246
      %s248 = smul.addr %s247, 2
      %s249 = scalar_lea.vmem %s0, %s248
      %p250 = scmp.lt.s32.totalorder %s20, 1
      %s251 = scalar_select %p250, %s20, 1
      %p252 = scmp.lt.s32.totalorder %s21, 0
      %s253 = scalar_select %p252, %s21, 0
      %s254 = sadd.s32 %s253, %s251
      %s255 = smul.addr %s254, 2
      %s256 = scalar_lea.vmem %s5, %s255
      %v258 = vld [vmem:[%s249] sm:$0x1]
      %v259 = vld [vmem:[%s249 + $0x2] sm:$0x1]
      %v260 = vld [vmem:[%s1] sm:$0xf]
      %v261 = vld [vmem:[%s1 + $0x4] sm:$0xf]
      %v262 = vld [vmem:[%s1 + $0x8] sm:$0xf]
      %v263 = vld [vmem:[%s1 + $0xc] sm:$0xf]
      %v264 = vld [vmem:[%s1 + $0x10] sm:$0xf]
      %v265 = vld [vmem:[%s1 + $0x14] sm:$0xf]
      %v266 = vld [vmem:[%s1 + $0x18] sm:$0xf]
      %v267 = vld [vmem:[%s1 + $0x1c] sm:$0xf]
      %v268 = vld [vmem:[%s1 + $0x20] sm:$0xf]
      %v269 = vld [vmem:[%s1 + $0x24] sm:$0xf]
      %v270 = vld [vmem:[%s1 + $0x28] sm:$0xf]
      %v271 = vld [vmem:[%s1 + $0x2c] sm:$0xf]
      %v272 = vld [vmem:[%s1 + $0x30] sm:$0xf]
      %v273 = vld [vmem:[%s1 + $0x34] sm:$0xf]
      %v274 = vld [vmem:[%s1 + $0x38] sm:$0xf]
      %v275 = vld [vmem:[%s1 + $0x3c] sm:$0xf]
      %v276 = vld [vmem:[%s249] sm:$0x3]
      %v277 = vld [vmem:[%s249 + $0x2] sm:$0x3]
      %v281 = vunpack.c.l.s4 1966171168
      %v282 = vunpack.c.0.s8 %v281
      %v283 = vlaneseq
      %v284 = vshrl.u32 %v283, 7
      %v285 = vsub.s32 %v282, %v284
      %v286 = vrot.slane %v276, %v285
      %v287 = vcombine.high %v286, %v286
      %v289 = vunpack.c.l.s4 1966171168
      %v290 = vunpack.c.0.s8 %v289
      %v291 = vlaneseq
      %v292 = vshrl.u32 %v291, 7
      %v293 = vsub.s32 %v290, %v292
      %v294 = vrot.slane %v277, %v293
      %v295 = vcombine.high %v294, %v294
      %vm296 = vsmask.f32 256
      %vm297 = vsmask.f32 1284
      %vm298 = vmor %vm296, %vm297
      %vm299 = vsmask.f32 2312
      %vm300 = vmor %vm298, %vm299
      %vm301 = vsmask.f32 3340
      %vm302 = vmor %vm300, %vm301
      %vm303 = vsmask.f32 4368
      %vm304 = vmor %vm302, %vm303
      %vm305 = vsmask.f32 5396
      %vm306 = vmor %vm304, %vm305
      %vm307 = vsmask.f32 6424
      %vm308 = vmor %vm306, %vm307
      %vm309 = vsmask.f32 7452
      %vm310 = vmor %vm308, %vm309
      %v312 = vshrl.u32 %v286, 16
      %v314 = vrot.slane %v312, 7
      %v315 = vrot.slane %v314, 1
      %v317 = vshll.u32 %v287, 16
      %v319 = vsel %vm310, %v315, %v317
      %v321 = vshrl.u32 %v294, 16
      %v323 = vrot.slane %v321, 7
      %v324 = vrot.slane %v323, 1
      %v326 = vshll.u32 %v295, 16
      %v328 = vsel %vm310, %v324, %v326
      %s329 = scalar_lea.vmem %s1, 64
      %v330 = vld [vmem:[%s329] sm:$0xf]
      %v331 = vld [vmem:[%s329 + $0x4] sm:$0xf]
      %v332 = vld [vmem:[%s329 + $0x8] sm:$0xf]
      %v333 = vld [vmem:[%s329 + $0xc] sm:$0xf]
      %v334 = vld [vmem:[%s329 + $0x10] sm:$0xf]
      %v335 = vld [vmem:[%s329 + $0x14] sm:$0xf]
      %v336 = vld [vmem:[%s329 + $0x18] sm:$0xf]
      %v337 = vld [vmem:[%s329 + $0x1c] sm:$0xf]
      %v338 = vld [vmem:[%s329 + $0x20] sm:$0xf]
      %v339 = vld [vmem:[%s329 + $0x24] sm:$0xf]
      %v340 = vld [vmem:[%s329 + $0x28] sm:$0xf]
      %v341 = vld [vmem:[%s329 + $0x2c] sm:$0xf]
      %v342 = vld [vmem:[%s329 + $0x30] sm:$0xf]
      %v343 = vld [vmem:[%s329 + $0x34] sm:$0xf]
      %v344 = vld [vmem:[%s329 + $0x38] sm:$0xf]
      %v345 = vld [vmem:[%s329 + $0x3c] sm:$0xf]
      %v346 = vcombine.low %v319, %v328
      %v348 = vunpack.c.l.s4 1966171168
      %v349 = vunpack.c.0.s8 %v348
      %v350 = vlaneseq
      %v351 = vshrl.u32 %v350, 7
      %v352 = vsub.s32 %v349, %v351
      %v353 = vrot.slane %v346, %v352
      %v355 = vunpack.c.l.s4 1966171168
      %v356 = vunpack.c.0.s8 %v355
      %v357 = vlaneseq
      %v358 = vshrl.u32 %v357, 7
      %v359 = vsub.s32 %v356, %v358
      %v360 = vrot.slane %v353, %v359
      %v378 = vunpack.c.l.b16 %v330
      %v379 = vunpack.c.l.b16 %v331
      %v380 = vunpack.c.l.b16 %v332
      %v381 = vunpack.c.l.b16 %v333
      %v382 = vunpack.c.l.b16 %v334
      %v383 = vunpack.c.l.b16 %v335
      %v384 = vunpack.c.l.b16 %v336
      %v385 = vunpack.c.l.b16 %v337
      %v386 = vunpack.c.l.b16 %v338
      %v387 = vunpack.c.l.b16 %v339
      %v388 = vunpack.c.l.b16 %v340
      %v389 = vunpack.c.l.b16 %v341
      %v390 = vunpack.c.l.b16 %v342
      %v391 = vunpack.c.l.b16 %v343
      %v392 = vunpack.c.l.b16 %v344
      %v393 = vunpack.c.l.b16 %v345
      %v394 = vpack.c.b16 %v379, %v378
      %v395 = vpack.c.b16 %v381, %v380
      %v396 = vpack.c.b16 %v383, %v382
      %v397 = vpack.c.b16 %v385, %v384
      %v398 = vpack.c.b16 %v387, %v386
      %v399 = vpack.c.b16 %v389, %v388
      %v400 = vpack.c.b16 %v391, %v390
      %v401 = vpack.c.b16 %v393, %v392
      %410 = vmatprep.subr.bf16.mxu0 0
      %411 = vmatpush1.bf16.msra.mxu0 %v394
      %412 = vmatprep.subr.bf16.mxu0 0
      %413 = vmatpush1.bf16.msra.mxu0 %v395
      %414 = vmatprep.subr.bf16.mxu0 0
      %415 = vmatpush1.bf16.msra.mxu0 %v396
      %416 = vmatprep.subr.bf16.mxu0 0
      %417 = vmatpush1.bf16.msra.mxu0 %v397
      %418 = vmatprep.subr.bf16.mxu0 0
      %419 = vmatpush1.bf16.msra.mxu0 %v398
      %420 = vmatprep.subr.bf16.mxu0 0
      %421 = vmatpush1.bf16.msra.mxu0 %v399
      %422 = vmatprep.subr.bf16.mxu0 0
      %423 = vmatpush1.bf16.msra.mxu0 %v400
      %424 = vmatprep.subr.bf16.mxu0 0
      %425 = vmatpush1.bf16.msra.mxu0 %v401
      %426 = vmatprep.subr.bf16.mxu0 0
      %427 = vmatpush1.bf16.msra.mxu0 0
      %428 = vmatprep.subr.bf16.mxu0 0
      %429 = vmatpush1.bf16.msra.mxu0 0
      %430 = vmatprep.subr.bf16.mxu0 0
      %431 = vmatpush1.bf16.msra.mxu0 0
      %432 = vmatprep.subr.bf16.mxu0 0
      %433 = vmatpush1.bf16.msra.mxu0 0
      %434 = vmatprep.subr.bf16.mxu0 0
      %435 = vmatpush1.bf16.msra.mxu0 0
      %436 = vmatprep.subr.bf16.mxu0 0
      %437 = vmatpush1.bf16.msra.mxu0 0
      %438 = vmatprep.subr.bf16.mxu0 0
      %439 = vmatpush1.bf16.msra.mxu0 0
      %440 = vmatprep.subr.bf16.mxu0 0
      %441 = vmatpush1.bf16.msra.mxu0 0
      %442 = vmatprep.mubr.bf16.mxu0 0
      %443 = vmatmul.mubr.bf16.gmra.mrb[0].mxu0 %v360
      %v444 = vpop.f32.mrb[0].mxu0
      %v445 = vadd.f32 0.0, %v444
      %v446 = vpop.f32.mrb[0].mxu0
      %v447 = vpop.f32.mrb[0].mxu0
      %v448 = vpop.f32.mrb[0].mxu0
      %449 = vdwg.mxu0
      %v452 = vcombine.low %v258, %v259
      %v454 = vunpack.c.l.s4 1966171168
      %v455 = vunpack.c.0.s8 %v454
      %v456 = vlaneseq
      %v457 = vshrl.u32 %v456, 7
      %v458 = vsub.s32 %v455, %v457
      %v459 = vrot.slane %v452, %v458
      %v461 = vunpack.c.l.s4 1966171168
      %v462 = vunpack.c.0.s8 %v461
      %v463 = vlaneseq
      %v464 = vshrl.u32 %v463, 7
      %v465 = vsub.s32 %v462, %v464
      %v466 = vrot.slane %v459, %v465
      %v484 = vunpack.c.l.b16 %v260
      %v485 = vunpack.c.l.b16 %v261
      %v486 = vunpack.c.l.b16 %v262
      %v487 = vunpack.c.l.b16 %v263
      %v488 = vunpack.c.l.b16 %v264
      %v489 = vunpack.c.l.b16 %v265
      %v490 = vunpack.c.l.b16 %v266
      %v491 = vunpack.c.l.b16 %v267
      %v492 = vunpack.c.l.b16 %v268
      %v493 = vunpack.c.l.b16 %v269
      %v494 = vunpack.c.l.b16 %v270
      %v495 = vunpack.c.l.b16 %v271
      %v496 = vunpack.c.l.b16 %v272
      %v497 = vunpack.c.l.b16 %v273
      %v498 = vunpack.c.l.b16 %v274
      %v499 = vunpack.c.l.b16 %v275
      %v500 = vpack.c.b16 %v485, %v484
      %v501 = vpack.c.b16 %v487, %v486
      %v502 = vpack.c.b16 %v489, %v488
      %v503 = vpack.c.b16 %v491, %v490
      %v504 = vpack.c.b16 %v493, %v492
      %v505 = vpack.c.b16 %v495, %v494
      %v506 = vpack.c.b16 %v497, %v496
      %v507 = vpack.c.b16 %v499, %v498
      %516 = vmatprep.subr.bf16.mxu0 0
      %517 = vmatpush1.bf16.msra.mxu0 %v500
      %518 = vmatprep.subr.bf16.mxu0 0
      %519 = vmatpush1.bf16.msra.mxu0 %v501
      %520 = vmatprep.subr.bf16.mxu0 0
      %521 = vmatpush1.bf16.msra.mxu0 %v502
      %522 = vmatprep.subr.bf16.mxu0 0
      %523 = vmatpush1.bf16.msra.mxu0 %v503
      %524 = vmatprep.subr.bf16.mxu0 0
      %525 = vmatpush1.bf16.msra.mxu0 %v504
      %526 = vmatprep.subr.bf16.mxu0 0
      %527 = vmatpush1.bf16.msra.mxu0 %v505
      %528 = vmatprep.subr.bf16.mxu0 0
      %529 = vmatpush1.bf16.msra.mxu0 %v506
      %530 = vmatprep.subr.bf16.mxu0 0
      %531 = vmatpush1.bf16.msra.mxu0 %v507
      %532 = vmatprep.subr.bf16.mxu0 0
      %533 = vmatpush1.bf16.msra.mxu0 0
      %534 = vmatprep.subr.bf16.mxu0 0
      %535 = vmatpush1.bf16.msra.mxu0 0
      %536 = vmatprep.subr.bf16.mxu0 0
      %537 = vmatpush1.bf16.msra.mxu0 0
      %538 = vmatprep.subr.bf16.mxu0 0
      %539 = vmatpush1.bf16.msra.mxu0 0
      %540 = vmatprep.subr.bf16.mxu0 0
      %541 = vmatpush1.bf16.msra.mxu0 0
      %542 = vmatprep.subr.bf16.mxu0 0
      %543 = vmatpush1.bf16.msra.mxu0 0
      %544 = vmatprep.subr.bf16.mxu0 0
      %545 = vmatpush1.bf16.msra.mxu0 0
      %546 = vmatprep.subr.bf16.mxu0 0
      %547 = vmatpush1.bf16.msra.mxu0 0
      %548 = vmatprep.mubr.bf16.mxu0 0
      %549 = vmatmul.mubr.bf16.gmra.mrb[0].mxu0 %v466
      %v550 = vpop.f32.mrb[0].mxu0
      %v551 = vadd.f32 %v445, %v550
      %v552 = vpop.f32.mrb[0].mxu0
      %v553 = vpop.f32.mrb[0].mxu0
      %v554 = vpop.f32.mrb[0].mxu0
      %555 = vdwg.mxu0
      %v556 = vld [vmem:[%s249] sm:$0x2]
      %v557 = vld [vmem:[%s249 + $0x2] sm:$0x2]
      %v561 = vunpack.c.l.s4 1966171168
      %v562 = vunpack.c.0.s8 %v561
      %v563 = vlaneseq
      %v564 = vshrl.u32 %v563, 7
      %v565 = vsub.s32 %v562, %v564
      %v566 = vrot.slane %v556, %v565
      %v567 = vcombine.high %v566, %v566
      %v569 = vunpack.c.l.s4 1966171168
      %v570 = vunpack.c.0.s8 %v569
      %v571 = vlaneseq
      %v572 = vshrl.u32 %v571, 7
      %v573 = vsub.s32 %v570, %v572
      %v574 = vrot.slane %v557, %v573
      %v575 = vcombine.high %v574, %v574
      %s576 = scalar_lea.vmem %s1, 128
      %v577 = vld [vmem:[%s576] sm:$0xf]
      %v578 = vld [vmem:[%s576 + $0x4] sm:$0xf]
      %v579 = vld [vmem:[%s576 + $0x8] sm:$0xf]
      %v580 = vld [vmem:[%s576 + $0xc] sm:$0xf]
      %v581 = vld [vmem:[%s576 + $0x10] sm:$0xf]
      %v582 = vld [vmem:[%s576 + $0x14] sm:$0xf]
      %v583 = vld [vmem:[%s576 + $0x18] sm:$0xf]
      %v584 = vld [vmem:[%s576 + $0x1c] sm:$0xf]
      %v585 = vld [vmem:[%s576 + $0x20] sm:$0xf]
      %v586 = vld [vmem:[%s576 + $0x24] sm:$0xf]
      %v587 = vld [vmem:[%s576 + $0x28] sm:$0xf]
      %v588 = vld [vmem:[%s576 + $0x2c] sm:$0xf]
      %v589 = vld [vmem:[%s576 + $0x30] sm:$0xf]
      %v590 = vld [vmem:[%s576 + $0x34] sm:$0xf]
      %v591 = vld [vmem:[%s576 + $0x38] sm:$0xf]
      %v592 = vld [vmem:[%s576 + $0x3c] sm:$0xf]
      %v593 = vcombine.low %v567, %v575
      %v595 = vunpack.c.l.s4 1966171168
      %v596 = vunpack.c.0.s8 %v595
      %v597 = vlaneseq
      %v598 = vshrl.u32 %v597, 7
      %v599 = vsub.s32 %v596, %v598
      %v600 = vrot.slane %v593, %v599
      %v602 = vunpack.c.l.s4 1966171168
      %v603 = vunpack.c.0.s8 %v602
      %v604 = vlaneseq
      %v605 = vshrl.u32 %v604, 7
      %v606 = vsub.s32 %v603, %v605
      %v607 = vrot.slane %v600, %v606
      %v625 = vunpack.c.l.b16 %v577
      %v626 = vunpack.c.l.b16 %v578
      %v627 = vunpack.c.l.b16 %v579
      %v628 = vunpack.c.l.b16 %v580
      %v629 = vunpack.c.l.b16 %v581
      %v630 = vunpack.c.l.b16 %v582
      %v631 = vunpack.c.l.b16 %v583
      %v632 = vunpack.c.l.b16 %v584
      %v633 = vunpack.c.l.b16 %v585
      %v634 = vunpack.c.l.b16 %v586
      %v635 = vunpack.c.l.b16 %v587
      %v636 = vunpack.c.l.b16 %v588
      %v637 = vunpack.c.l.b16 %v589
      %v638 = vunpack.c.l.b16 %v590
      %v639 = vunpack.c.l.b16 %v591
      %v640 = vunpack.c.l.b16 %v592
      %v641 = vpack.c.b16 %v626, %v625
      %v642 = vpack.c.b16 %v628, %v627
      %v643 = vpack.c.b16 %v630, %v629
      %v644 = vpack.c.b16 %v632, %v631
      %v645 = vpack.c.b16 %v634, %v633
      %v646 = vpack.c.b16 %v636, %v635
      %v647 = vpack.c.b16 %v638, %v637
      %v648 = vpack.c.b16 %v640, %v639
      %657 = vmatprep.subr.bf16.mxu0 0
      %658 = vmatpush1.bf16.msra.mxu0 %v641
      %659 = vmatprep.subr.bf16.mxu0 0
      %660 = vmatpush1.bf16.msra.mxu0 %v642
      %661 = vmatprep.subr.bf16.mxu0 0
      %662 = vmatpush1.bf16.msra.mxu0 %v643
      %663 = vmatprep.subr.bf16.mxu0 0
      %664 = vmatpush1.bf16.msra.mxu0 %v644
      %665 = vmatprep.subr.bf16.mxu0 0
      %666 = vmatpush1.bf16.msra.mxu0 %v645
      %667 = vmatprep.subr.bf16.mxu0 0
      %668 = vmatpush1.bf16.msra.mxu0 %v646
      %669 = vmatprep.subr.bf16.mxu0 0
      %670 = vmatpush1.bf16.msra.mxu0 %v647
      %671 = vmatprep.subr.bf16.mxu0 0
      %672 = vmatpush1.bf16.msra.mxu0 %v648
      %673 = vmatprep.subr.bf16.mxu0 0
      %674 = vmatpush1.bf16.msra.mxu0 0
      %675 = vmatprep.subr.bf16.mxu0 0
      %676 = vmatpush1.bf16.msra.mxu0 0
      %677 = vmatprep.subr.bf16.mxu0 0
      %678 = vmatpush1.bf16.msra.mxu0 0
      %679 = vmatprep.subr.bf16.mxu0 0
      %680 = vmatpush1.bf16.msra.mxu0 0
      %681 = vmatprep.subr.bf16.mxu0 0
      %682 = vmatpush1.bf16.msra.mxu0 0
      %683 = vmatprep.subr.bf16.mxu0 0
      %684 = vmatpush1.bf16.msra.mxu0 0
      %685 = vmatprep.subr.bf16.mxu0 0
      %686 = vmatpush1.bf16.msra.mxu0 0
      %687 = vmatprep.subr.bf16.mxu0 0
      %688 = vmatpush1.bf16.msra.mxu0 0
      %689 = vmatprep.mubr.bf16.mxu0 0
      %690 = vmatmul.mubr.bf16.gmra.mrb[0].mxu0 %v607
      %v691 = vpop.f32.mrb[0].mxu0
      %v692 = vadd.f32 0.0, %v691
      %v693 = vpop.f32.mrb[0].mxu0
      %v694 = vpop.f32.mrb[0].mxu0
      %v695 = vpop.f32.mrb[0].mxu0
      %696 = vdwg.mxu0
      %v697 = vadd.f32 %v551, %v692
      %s698 = scalar_lea.vmem %s249, 2
      %v699 = vld [vmem:[%s698] sm:$0x1]
      %v700 = vld [vmem:[%s698 + $0x2] sm:$0x1]
      %s701 = scalar_lea.vmem %s1, 192
      %v702 = vld [vmem:[%s701] sm:$0xf]
      %v703 = vld [vmem:[%s701 + $0x4] sm:$0xf]
      %v704 = vld [vmem:[%s701 + $0x8] sm:$0xf]
      %v705 = vld [vmem:[%s701 + $0xc] sm:$0xf]
      %v706 = vld [vmem:[%s701 + $0x10] sm:$0xf]
      %v707 = vld [vmem:[%s701 + $0x14] sm:$0xf]
      %v708 = vld [vmem:[%s701 + $0x18] sm:$0xf]
      %v709 = vld [vmem:[%s701 + $0x1c] sm:$0xf]
      %v710 = vld [vmem:[%s701 + $0x20] sm:$0xf]
      %v711 = vld [vmem:[%s701 + $0x24] sm:$0xf]
      %v712 = vld [vmem:[%s701 + $0x28] sm:$0xf]
      %v713 = vld [vmem:[%s701 + $0x2c] sm:$0xf]
      %v714 = vld [vmem:[%s701 + $0x30] sm:$0xf]
      %v715 = vld [vmem:[%s701 + $0x34] sm:$0xf]
      %v716 = vld [vmem:[%s701 + $0x38] sm:$0xf]
      %v717 = vld [vmem:[%s701 + $0x3c] sm:$0xf]
      %v720 = vcombine.low %v699, %v700
      %v722 = vunpack.c.l.s4 1966171168
      %v723 = vunpack.c.0.s8 %v722
      %v724 = vlaneseq
      %v725 = vshrl.u32 %v724, 7
      %v726 = vsub.s32 %v723, %v725
      %v727 = vrot.slane %v720, %v726
      %v729 = vunpack.c.l.s4 1966171168
      %v730 = vunpack.c.0.s8 %v729
      %v731 = vlaneseq
      %v732 = vshrl.u32 %v731, 7
      %v733 = vsub.s32 %v730, %v732
      %v734 = vrot.slane %v727, %v733
      %v752 = vunpack.c.l.b16 %v702
      %v753 = vunpack.c.l.b16 %v703
      %v754 = vunpack.c.l.b16 %v704
      %v755 = vunpack.c.l.b16 %v705
      %v756 = vunpack.c.l.b16 %v706
      %v757 = vunpack.c.l.b16 %v707
      %v758 = vunpack.c.l.b16 %v708
      %v759 = vunpack.c.l.b16 %v709
      %v760 = vunpack.c.l.b16 %v710
      %v761 = vunpack.c.l.b16 %v711
      %v762 = vunpack.c.l.b16 %v712
      %v763 = vunpack.c.l.b16 %v713
      %v764 = vunpack.c.l.b16 %v714
      %v765 = vunpack.c.l.b16 %v715
      %v766 = vunpack.c.l.b16 %v716
      %v767 = vunpack.c.l.b16 %v717
      %v768 = vpack.c.b16 %v753, %v752
      %v769 = vpack.c.b16 %v755, %v754
      %v770 = vpack.c.b16 %v757, %v756
      %v771 = vpack.c.b16 %v759, %v758
      %v772 = vpack.c.b16 %v761, %v760
      %v773 = vpack.c.b16 %v763, %v762
      %v774 = vpack.c.b16 %v765, %v764
      %v775 = vpack.c.b16 %v767, %v766
      %784 = vmatprep.subr.bf16.mxu0 0
      %785 = vmatpush1.bf16.msra.mxu0 %v768
      %786 = vmatprep.subr.bf16.mxu0 0
      %787 = vmatpush1.bf16.msra.mxu0 %v769
      %788 = vmatprep.subr.bf16.mxu0 0
      %789 = vmatpush1.bf16.msra.mxu0 %v770
      %790 = vmatprep.subr.bf16.mxu0 0
      %791 = vmatpush1.bf16.msra.mxu0 %v771
      %792 = vmatprep.subr.bf16.mxu0 0
      %793 = vmatpush1.bf16.msra.mxu0 %v772
      %794 = vmatprep.subr.bf16.mxu0 0
      %795 = vmatpush1.bf16.msra.mxu0 %v773
      %796 = vmatprep.subr.bf16.mxu0 0
      %797 = vmatpush1.bf16.msra.mxu0 %v774
      %798 = vmatprep.subr.bf16.mxu0 0
      %799 = vmatpush1.bf16.msra.mxu0 %v775
      %800 = vmatprep.subr.bf16.mxu0 0
      %801 = vmatpush1.bf16.msra.mxu0 0
      %802 = vmatprep.subr.bf16.mxu0 0
      %803 = vmatpush1.bf16.msra.mxu0 0
      %804 = vmatprep.subr.bf16.mxu0 0
      %805 = vmatpush1.bf16.msra.mxu0 0
      %806 = vmatprep.subr.bf16.mxu0 0
      %807 = vmatpush1.bf16.msra.mxu0 0
      %808 = vmatprep.subr.bf16.mxu0 0
      %809 = vmatpush1.bf16.msra.mxu0 0
      %810 = vmatprep.subr.bf16.mxu0 0
      %811 = vmatpush1.bf16.msra.mxu0 0
      %812 = vmatprep.subr.bf16.mxu0 0
      %813 = vmatpush1.bf16.msra.mxu0 0
      %814 = vmatprep.subr.bf16.mxu0 0
      %815 = vmatpush1.bf16.msra.mxu0 0
      %816 = vmatprep.mubr.bf16.mxu0 0
      %817 = vmatmul.mubr.bf16.gmra.mrb[0].mxu0 %v734
      %v818 = vpop.f32.mrb[0].mxu0
      %v819 = vadd.f32 0.0, %v818
      %v820 = vpop.f32.mrb[0].mxu0
      %v821 = vpop.f32.mrb[0].mxu0
      %v822 = vpop.f32.mrb[0].mxu0
      %823 = vdwg.mxu0
      %v824 = vadd.f32 %v697, %v819
      %v825 = vld [vmem:[%s698] sm:$0x3]
      %v826 = vld [vmem:[%s698 + $0x2] sm:$0x3]
      %v830 = vunpack.c.l.s4 1966171168
      %v831 = vunpack.c.0.s8 %v830
      %v832 = vlaneseq
      %v833 = vshrl.u32 %v832, 7
      %v834 = vsub.s32 %v831, %v833
      %v835 = vrot.slane %v825, %v834
      %v836 = vcombine.high %v835, %v835
      %v838 = vunpack.c.l.s4 1966171168
      %v839 = vunpack.c.0.s8 %v838
      %v840 = vlaneseq
      %v841 = vshrl.u32 %v840, 7
      %v842 = vsub.s32 %v839, %v841
      %v843 = vrot.slane %v826, %v842
      %v844 = vcombine.high %v843, %v843
      %v846 = vshrl.u32 %v835, 16
      %v848 = vrot.slane %v846, 7
      %v849 = vrot.slane %v848, 1
      %v851 = vshll.u32 %v836, 16
      %v853 = vsel %vm310, %v849, %v851
      %v855 = vshrl.u32 %v843, 16
      %v857 = vrot.slane %v855, 7
      %v858 = vrot.slane %v857, 1
      %v860 = vshll.u32 %v844, 16
      %v862 = vsel %vm310, %v858, %v860
      %s863 = scalar_lea.vmem %s1, 256
      %v864 = vld [vmem:[%s863] sm:$0xf]
      %v865 = vld [vmem:[%s863 + $0x4] sm:$0xf]
      %v866 = vld [vmem:[%s863 + $0x8] sm:$0xf]
      %v867 = vld [vmem:[%s863 + $0xc] sm:$0xf]
      %v868 = vld [vmem:[%s863 + $0x10] sm:$0xf]
      %v869 = vld [vmem:[%s863 + $0x14] sm:$0xf]
      %v870 = vld [vmem:[%s863 + $0x18] sm:$0xf]
      %v871 = vld [vmem:[%s863 + $0x1c] sm:$0xf]
      %v872 = vld [vmem:[%s863 + $0x20] sm:$0xf]
      %v873 = vld [vmem:[%s863 + $0x24] sm:$0xf]
      %v874 = vld [vmem:[%s863 + $0x28] sm:$0xf]
      %v875 = vld [vmem:[%s863 + $0x2c] sm:$0xf]
      %v876 = vld [vmem:[%s863 + $0x30] sm:$0xf]
      %v877 = vld [vmem:[%s863 + $0x34] sm:$0xf]
      %v878 = vld [vmem:[%s863 + $0x38] sm:$0xf]
      %v879 = vld [vmem:[%s863 + $0x3c] sm:$0xf]
      %v880 = vcombine.low %v853, %v862
      %v882 = vunpack.c.l.s4 1966171168
      %v883 = vunpack.c.0.s8 %v882
      %v884 = vlaneseq
      %v885 = vshrl.u32 %v884, 7
      %v886 = vsub.s32 %v883, %v885
      %v887 = vrot.slane %v880, %v886
      %v889 = vunpack.c.l.s4 1966171168
      %v890 = vunpack.c.0.s8 %v889
      %v891 = vlaneseq
      %v892 = vshrl.u32 %v891, 7
      %v893 = vsub.s32 %v890, %v892
      %v894 = vrot.slane %v887, %v893
      %v912 = vunpack.c.l.b16 %v864
      %v913 = vunpack.c.l.b16 %v865
      %v914 = vunpack.c.l.b16 %v866
      %v915 = vunpack.c.l.b16 %v867
      %v916 = vunpack.c.l.b16 %v868
      %v917 = vunpack.c.l.b16 %v869
      %v918 = vunpack.c.l.b16 %v870
      %v919 = vunpack.c.l.b16 %v871
      %v920 = vunpack.c.l.b16 %v872
      %v921 = vunpack.c.l.b16 %v873
      %v922 = vunpack.c.l.b16 %v874
      %v923 = vunpack.c.l.b16 %v875
      %v924 = vunpack.c.l.b16 %v876
      %v925 = vunpack.c.l.b16 %v877
      %v926 = vunpack.c.l.b16 %v878
      %v927 = vunpack.c.l.b16 %v879
      %v928 = vpack.c.b16 %v913, %v912
      %v929 = vpack.c.b16 %v915, %v914
      %v930 = vpack.c.b16 %v917, %v916
      %v931 = vpack.c.b16 %v919, %v918
      %v932 = vpack.c.b16 %v921, %v920
      %v933 = vpack.c.b16 %v923, %v922
      %v934 = vpack.c.b16 %v925, %v924
      %v935 = vpack.c.b16 %v927, %v926
      %944 = vmatprep.subr.bf16.mxu0 0
      %945 = vmatpush1.bf16.msra.mxu0 %v928
      %946 = vmatprep.subr.bf16.mxu0 0
      %947 = vmatpush1.bf16.msra.mxu0 %v929
      %948 = vmatprep.subr.bf16.mxu0 0
      %949 = vmatpush1.bf16.msra.mxu0 %v930
      %950 = vmatprep.subr.bf16.mxu0 0
      %951 = vmatpush1.bf16.msra.mxu0 %v931
      %952 = vmatprep.subr.bf16.mxu0 0
      %953 = vmatpush1.bf16.msra.mxu0 %v932
      %954 = vmatprep.subr.bf16.mxu0 0
      %955 = vmatpush1.bf16.msra.mxu0 %v933
      %956 = vmatprep.subr.bf16.mxu0 0
      %957 = vmatpush1.bf16.msra.mxu0 %v934
      %958 = vmatprep.subr.bf16.mxu0 0
      %959 = vmatpush1.bf16.msra.mxu0 %v935
      %960 = vmatprep.subr.bf16.mxu0 0
      %961 = vmatpush1.bf16.msra.mxu0 0
      %962 = vmatprep.subr.bf16.mxu0 0
      %963 = vmatpush1.bf16.msra.mxu0 0
      %964 = vmatprep.subr.bf16.mxu0 0
      %965 = vmatpush1.bf16.msra.mxu0 0
      %966 = vmatprep.subr.bf16.mxu0 0
      %967 = vmatpush1.bf16.msra.mxu0 0
      %968 = vmatprep.subr.bf16.mxu0 0
      %969 = vmatpush1.bf16.msra.mxu0 0
      %970 = vmatprep.subr.bf16.mxu0 0
      %971 = vmatpush1.bf16.msra.mxu0 0
      %972 = vmatprep.subr.bf16.mxu0 0
      %973 = vmatpush1.bf16.msra.mxu0 0
      %974 = vmatprep.subr.bf16.mxu0 0
      %975 = vmatpush1.bf16.msra.mxu0 0
      %976 = vmatprep.mubr.bf16.mxu0 0
      %977 = vmatmul.mubr.bf16.gmra.mrb[0].mxu0 %v894
      %v978 = vpop.f32.mrb[0].mxu0
      %v979 = vadd.f32 0.0, %v978
      %v980 = vpop.f32.mrb[0].mxu0
      %v981 = vpop.f32.mrb[0].mxu0
      %v982 = vpop.f32.mrb[0].mxu0
      %983 = vdwg.mxu0
      %v984 = vadd.f32 %v824, %v979
      %v985 = vld [vmem:[%s698] sm:$0x2]
      %v986 = vld [vmem:[%s698 + $0x2] sm:$0x2]
      %v990 = vunpack.c.l.s4 1966171168
      %v991 = vunpack.c.0.s8 %v990
      %v992 = vlaneseq
      %v993 = vshrl.u32 %v992, 7
      %v994 = vsub.s32 %v991, %v993
      %v995 = vrot.slane %v985, %v994
      %v996 = vcombine.high %v995, %v995
      %v998 = vunpack.c.l.s4 1966171168
      %v999 = vunpack.c.0.s8 %v998
      %v1000 = vlaneseq
      %v1001 = vshrl.u32 %v1000, 7
      %v1002 = vsub.s32 %v999, %v1001
      %v1003 = vrot.slane %v986, %v1002
      %v1004 = vcombine.high %v1003, %v1003
      %s1005 = scalar_lea.vmem %s1, 320
      %v1006 = vld [vmem:[%s1005] sm:$0xf]
      %v1007 = vld [vmem:[%s1005 + $0x4] sm:$0xf]
      %v1008 = vld [vmem:[%s1005 + $0x8] sm:$0xf]
      %v1009 = vld [vmem:[%s1005 + $0xc] sm:$0xf]
      %v1010 = vld [vmem:[%s1005 + $0x10] sm:$0xf]
      %v1011 = vld [vmem:[%s1005 + $0x14] sm:$0xf]
      %v1012 = vld [vmem:[%s1005 + $0x18] sm:$0xf]
      %v1013 = vld [vmem:[%s1005 + $0x1c] sm:$0xf]
      %v1014 = vld [vmem:[%s1005 + $0x20] sm:$0xf]
      %v1015 = vld [vmem:[%s1005 + $0x24] sm:$0xf]
      %v1016 = vld [vmem:[%s1005 + $0x28] sm:$0xf]
      %v1017 = vld [vmem:[%s1005 + $0x2c] sm:$0xf]
      %v1018 = vld [vmem:[%s1005 + $0x30] sm:$0xf]
      %v1019 = vld [vmem:[%s1005 + $0x34] sm:$0xf]
      %v1020 = vld [vmem:[%s1005 + $0x38] sm:$0xf]
      %v1021 = vld [vmem:[%s1005 + $0x3c] sm:$0xf]
      %v1022 = vcombine.low %v996, %v1004
      %v1024 = vunpack.c.l.s4 1966171168
      %v1025 = vunpack.c.0.s8 %v1024
      %v1026 = vlaneseq
      %v1027 = vshrl.u32 %v1026, 7
      %v1028 = vsub.s32 %v1025, %v1027
      %v1029 = vrot.slane %v1022, %v1028
      %v1031 = vunpack.c.l.s4 1966171168
      %v1032 = vunpack.c.0.s8 %v1031
      %v1033 = vlaneseq
      %v1034 = vshrl.u32 %v1033, 7
      %v1035 = vsub.s32 %v1032, %v1034
      %v1036 = vrot.slane %v1029, %v1035
      %v1054 = vunpack.c.l.b16 %v1006
      %v1055 = vunpack.c.l.b16 %v1007
      %v1056 = vunpack.c.l.b16 %v1008
      %v1057 = vunpack.c.l.b16 %v1009
      %v1058 = vunpack.c.l.b16 %v1010
      %v1059 = vunpack.c.l.b16 %v1011
      %v1060 = vunpack.c.l.b16 %v1012
      %v1061 = vunpack.c.l.b16 %v1013
      %v1062 = vunpack.c.l.b16 %v1014
      %v1063 = vunpack.c.l.b16 %v1015
      %v1064 = vunpack.c.l.b16 %v1016
      %v1065 = vunpack.c.l.b16 %v1017
      %v1066 = vunpack.c.l.b16 %v1018
      %v1067 = vunpack.c.l.b16 %v1019
      %v1068 = vunpack.c.l.b16 %v1020
      %v1069 = vunpack.c.l.b16 %v1021
      %v1070 = vpack.c.b16 %v1055, %v1054
      %v1071 = vpack.c.b16 %v1057, %v1056
      %v1072 = vpack.c.b16 %v1059, %v1058
      %v1073 = vpack.c.b16 %v1061, %v1060
      %v1074 = vpack.c.b16 %v1063, %v1062
      %v1075 = vpack.c.b16 %v1065, %v1064
      %v1076 = vpack.c.b16 %v1067, %v1066
      %v1077 = vpack.c.b16 %v1069, %v1068
      %1086 = vmatprep.subr.bf16.mxu0 0
      %1087 = vmatpush1.bf16.msra.mxu0 %v1070
      %1088 = vmatprep.subr.bf16.mxu0 0
      %1089 = vmatpush1.bf16.msra.mxu0 %v1071
      %1090 = vmatprep.subr.bf16.mxu0 0
      %1091 = vmatpush1.bf16.msra.mxu0 %v1072
      %1092 = vmatprep.subr.bf16.mxu0 0
      %1093 = vmatpush1.bf16.msra.mxu0 %v1073
      %1094 = vmatprep.subr.bf16.mxu0 0
      %1095 = vmatpush1.bf16.msra.mxu0 %v1074
      %1096 = vmatprep.subr.bf16.mxu0 0
      %1097 = vmatpush1.bf16.msra.mxu0 %v1075
      %1098 = vmatprep.subr.bf16.mxu0 0
      %1099 = vmatpush1.bf16.msra.mxu0 %v1076
      %1100 = vmatprep.subr.bf16.mxu0 0
      %1101 = vmatpush1.bf16.msra.mxu0 %v1077
      %1102 = vmatprep.subr.bf16.mxu0 0
      %1103 = vmatpush1.bf16.msra.mxu0 0
      %1104 = vmatprep.subr.bf16.mxu0 0
      %1105 = vmatpush1.bf16.msra.mxu0 0
      %1106 = vmatprep.subr.bf16.mxu0 0
      %1107 = vmatpush1.bf16.msra.mxu0 0
      %1108 = vmatprep.subr.bf16.mxu0 0
      %1109 = vmatpush1.bf16.msra.mxu0 0
      %1110 = vmatprep.subr.bf16.mxu0 0
      %1111 = vmatpush1.bf16.msra.mxu0 0
      %1112 = vmatprep.subr.bf16.mxu0 0
      %1113 = vmatpush1.bf16.msra.mxu0 0
      %1114 = vmatprep.subr.bf16.mxu0 0
      %1115 = vmatpush1.bf16.msra.mxu0 0
      %1116 = vmatprep.subr.bf16.mxu0 0
      %1117 = vmatpush1.bf16.msra.mxu0 0
      %1118 = vmatprep.mubr.bf16.mxu0 0
      %1119 = vmatmul.mubr.bf16.gmra.mrb[0].mxu0 %v1036
      %v1120 = vpop.f32.mrb[0].mxu0
      %v1121 = vadd.f32 0.0, %v1120
      %v1122 = vpop.f32.mrb[0].mxu0
      %v1123 = vpop.f32.mrb[0].mxu0
      %v1124 = vpop.f32.mrb[0].mxu0
      %1125 = vdwg.mxu0
      %v1126 = vadd.f32 %v984, %v1121
      %s1127 = scalar_lea.vmem %s249, 4
      %v1128 = vld [vmem:[%s1127] sm:$0x1]
      %v1129 = vld [vmem:[%s1127 + $0x2] sm:$0x1]
      %s1130 = scalar_lea.vmem %s1, 384
      %v1131 = vld [vmem:[%s1130] sm:$0xf]
      %v1132 = vld [vmem:[%s1130 + $0x4] sm:$0xf]
      %v1133 = vld [vmem:[%s1130 + $0x8] sm:$0xf]
      %v1134 = vld [vmem:[%s1130 + $0xc] sm:$0xf]
      %v1135 = vld [vmem:[%s1130 + $0x10] sm:$0xf]
      %v1136 = vld [vmem:[%s1130 + $0x14] sm:$0xf]
      %v1137 = vld [vmem:[%s1130 + $0x18] sm:$0xf]
      %v1138 = vld [vmem:[%s1130 + $0x1c] sm:$0xf]
      %v1139 = vld [vmem:[%s1130 + $0x20] sm:$0xf]
      %v1140 = vld [vmem:[%s1130 + $0x24] sm:$0xf]
      %v1141 = vld [vmem:[%s1130 + $0x28] sm:$0xf]
      %v1142 = vld [vmem:[%s1130 + $0x2c] sm:$0xf]
      %v1143 = vld [vmem:[%s1130 + $0x30] sm:$0xf]
      %v1144 = vld [vmem:[%s1130 + $0x34] sm:$0xf]
      %v1145 = vld [vmem:[%s1130 + $0x38] sm:$0xf]
      %v1146 = vld [vmem:[%s1130 + $0x3c] sm:$0xf]
      %v1149 = vcombine.low %v1128, %v1129
      %v1151 = vunpack.c.l.s4 1966171168
      %v1152 = vunpack.c.0.s8 %v1151
      %v1153 = vlaneseq
      %v1154 = vshrl.u32 %v1153, 7
      %v1155 = vsub.s32 %v1152, %v1154
      %v1156 = vrot.slane %v1149, %v1155
      %v1158 = vunpack.c.l.s4 1966171168
      %v1159 = vunpack.c.0.s8 %v1158
      %v1160 = vlaneseq
      %v1161 = vshrl.u32 %v1160, 7
      %v1162 = vsub.s32 %v1159, %v1161
      %v1163 = vrot.slane %v1156, %v1162
      %v1181 = vunpack.c.l.b16 %v1131
      %v1182 = vunpack.c.l.b16 %v1132
      %v1183 = vunpack.c.l.b16 %v1133
      %v1184 = vunpack.c.l.b16 %v1134
      %v1185 = vunpack.c.l.b16 %v1135
      %v1186 = vunpack.c.l.b16 %v1136
      %v1187 = vunpack.c.l.b16 %v1137
      %v1188 = vunpack.c.l.b16 %v1138
      %v1189 = vunpack.c.l.b16 %v1139
      %v1190 = vunpack.c.l.b16 %v1140
      %v1191 = vunpack.c.l.b16 %v1141
      %v1192 = vunpack.c.l.b16 %v1142
      %v1193 = vunpack.c.l.b16 %v1143
      %v1194 = vunpack.c.l.b16 %v1144
      %v1195 = vunpack.c.l.b16 %v1145
      %v1196 = vunpack.c.l.b16 %v1146
      %v1197 = vpack.c.b16 %v1182, %v1181
      %v1198 = vpack.c.b16 %v1184, %v1183
      %v1199 = vpack.c.b16 %v1186, %v1185
      %v1200 = vpack.c.b16 %v1188, %v1187
      %v1201 = vpack.c.b16 %v1190, %v1189
      %v1202 = vpack.c.b16 %v1192, %v1191
      %v1203 = vpack.c.b16 %v1194, %v1193
      %v1204 = vpack.c.b16 %v1196, %v1195
      %1213 = vmatprep.subr.bf16.mxu0 0
      %1214 = vmatpush1.bf16.msra.mxu0 %v1197
      %1215 = vmatprep.subr.bf16.mxu0 0
      %1216 = vmatpush1.bf16.msra.mxu0 %v1198
      %1217 = vmatprep.subr.bf16.mxu0 0
      %1218 = vmatpush1.bf16.msra.mxu0 %v1199
      %1219 = vmatprep.subr.bf16.mxu0 0
      %1220 = vmatpush1.bf16.msra.mxu0 %v1200
      %1221 = vmatprep.subr.bf16.mxu0 0
      %1222 = vmatpush1.bf16.msra.mxu0 %v1201
      %1223 = vmatprep.subr.bf16.mxu0 0
      %1224 = vmatpush1.bf16.msra.mxu0 %v1202
      %1225 = vmatprep.subr.bf16.mxu0 0
      %1226 = vmatpush1.bf16.msra.mxu0 %v1203
      %1227 = vmatprep.subr.bf16.mxu0 0
      %1228 = vmatpush1.bf16.msra.mxu0 %v1204
      %1229 = vmatprep.subr.bf16.mxu0 0
      %1230 = vmatpush1.bf16.msra.mxu0 0
      %1231 = vmatprep.subr.bf16.mxu0 0
      %1232 = vmatpush1.bf16.msra.mxu0 0
      %1233 = vmatprep.subr.bf16.mxu0 0
      %1234 = vmatpush1.bf16.msra.mxu0 0
      %1235 = vmatprep.subr.bf16.mxu0 0
      %1236 = vmatpush1.bf16.msra.mxu0 0
      %1237 = vmatprep.subr.bf16.mxu0 0
      %1238 = vmatpush1.bf16.msra.mxu0 0
      %1239 = vmatprep.subr.bf16.mxu0 0
      %1240 = vmatpush1.bf16.msra.mxu0 0
      %1241 = vmatprep.subr.bf16.mxu0 0
      %1242 = vmatpush1.bf16.msra.mxu0 0
      %1243 = vmatprep.subr.bf16.mxu0 0
      %1244 = vmatpush1.bf16.msra.mxu0 0
      %1245 = vmatprep.mubr.bf16.mxu0 0
      %1246 = vmatmul.mubr.bf16.gmra.mrb[0].mxu0 %v1163
      %v1247 = vpop.f32.mrb[0].mxu0
      %v1248 = vadd.f32 0.0, %v1247
      %v1249 = vpop.f32.mrb[0].mxu0
      %v1250 = vpop.f32.mrb[0].mxu0
      %v1251 = vpop.f32.mrb[0].mxu0
      %1252 = vdwg.mxu0
      %v1253 = vadd.f32 %v1126, %v1248
      %v1254 = vld [vmem:[%s1127] sm:$0x3]
      %v1255 = vld [vmem:[%s1127 + $0x2] sm:$0x3]
      %v1259 = vunpack.c.l.s4 1966171168
      %v1260 = vunpack.c.0.s8 %v1259
      %v1261 = vlaneseq
      %v1262 = vshrl.u32 %v1261, 7
      %v1263 = vsub.s32 %v1260, %v1262
      %v1264 = vrot.slane %v1254, %v1263
      %v1265 = vcombine.high %v1264, %v1264
      %v1267 = vunpack.c.l.s4 1966171168
      %v1268 = vunpack.c.0.s8 %v1267
      %v1269 = vlaneseq
      %v1270 = vshrl.u32 %v1269, 7
      %v1271 = vsub.s32 %v1268, %v1270
      %v1272 = vrot.slane %v1255, %v1271
      %v1273 = vcombine.high %v1272, %v1272
      %v1275 = vshrl.u32 %v1264, 16
      %v1277 = vrot.slane %v1275, 7
      %v1278 = vrot.slane %v1277, 1
      %v1280 = vshll.u32 %v1265, 16
      %v1282 = vsel %vm310, %v1278, %v1280
      %v1284 = vshrl.u32 %v1272, 16
      %v1286 = vrot.slane %v1284, 7
      %v1287 = vrot.slane %v1286, 1
      %v1289 = vshll.u32 %v1273, 16
      %v1291 = vsel %vm310, %v1287, %v1289
      %s1292 = scalar_lea.vmem %s1, 448
      %v1293 = vld [vmem:[%s1292] sm:$0xf]
      %v1294 = vld [vmem:[%s1292 + $0x4] sm:$0xf]
      %v1295 = vld [vmem:[%s1292 + $0x8] sm:$0xf]
      %v1296 = vld [vmem:[%s1292 + $0xc] sm:$0xf]
      %v1297 = vld [vmem:[%s1292 + $0x10] sm:$0xf]
      %v1298 = vld [vmem:[%s1292 + $0x14] sm:$0xf]
      %v1299 = vld [vmem:[%s1292 + $0x18] sm:$0xf]
      %v1300 = vld [vmem:[%s1292 + $0x1c] sm:$0xf]
      %v1301 = vld [vmem:[%s1292 + $0x20] sm:$0xf]
      %v1302 = vld [vmem:[%s1292 + $0x24] sm:$0xf]
      %v1303 = vld [vmem:[%s1292 + $0x28] sm:$0xf]
      %v1304 = vld [vmem:[%s1292 + $0x2c] sm:$0xf]
      %v1305 = vld [vmem:[%s1292 + $0x30] sm:$0xf]
      %v1306 = vld [vmem:[%s1292 + $0x34] sm:$0xf]
      %v1307 = vld [vmem:[%s1292 + $0x38] sm:$0xf]
      %v1308 = vld [vmem:[%s1292 + $0x3c] sm:$0xf]
      %v1309 = vcombine.low %v1282, %v1291
      %v1311 = vunpack.c.l.s4 1966171168
      %v1312 = vunpack.c.0.s8 %v1311
      %v1313 = vlaneseq
      %v1314 = vshrl.u32 %v1313, 7
      %v1315 = vsub.s32 %v1312, %v1314
      %v1316 = vrot.slane %v1309, %v1315
      %v1318 = vunpack.c.l.s4 1966171168
      %v1319 = vunpack.c.0.s8 %v1318
      %v1320 = vlaneseq
      %v1321 = vshrl.u32 %v1320, 7
      %v1322 = vsub.s32 %v1319, %v1321
      %v1323 = vrot.slane %v1316, %v1322
      %v1341 = vunpack.c.l.b16 %v1293
      %v1342 = vunpack.c.l.b16 %v1294
      %v1343 = vunpack.c.l.b16 %v1295
      %v1344 = vunpack.c.l.b16 %v1296
      %v1345 = vunpack.c.l.b16 %v1297
      %v1346 = vunpack.c.l.b16 %v1298
      %v1347 = vunpack.c.l.b16 %v1299
      %v1348 = vunpack.c.l.b16 %v1300
      %v1349 = vunpack.c.l.b16 %v1301
      %v1350 = vunpack.c.l.b16 %v1302
      %v1351 = vunpack.c.l.b16 %v1303
      %v1352 = vunpack.c.l.b16 %v1304
      %v1353 = vunpack.c.l.b16 %v1305
      %v1354 = vunpack.c.l.b16 %v1306
      %v1355 = vunpack.c.l.b16 %v1307
      %v1356 = vunpack.c.l.b16 %v1308
      %v1357 = vpack.c.b16 %v1342, %v1341
      %v1358 = vpack.c.b16 %v1344, %v1343
      %v1359 = vpack.c.b16 %v1346, %v1345
      %v1360 = vpack.c.b16 %v1348, %v1347
      %v1361 = vpack.c.b16 %v1350, %v1349
      %v1362 = vpack.c.b16 %v1352, %v1351
      %v1363 = vpack.c.b16 %v1354, %v1353
      %v1364 = vpack.c.b16 %v1356, %v1355
      %1373 = vmatprep.subr.bf16.mxu0 0
      %1374 = vmatpush1.bf16.msra.mxu0 %v1357
      %1375 = vmatprep.subr.bf16.mxu0 0
      %1376 = vmatpush1.bf16.msra.mxu0 %v1358
      %1377 = vmatprep.subr.bf16.mxu0 0
      %1378 = vmatpush1.bf16.msra.mxu0 %v1359
      %1379 = vmatprep.subr.bf16.mxu0 0
      %1380 = vmatpush1.bf16.msra.mxu0 %v1360
      %1381 = vmatprep.subr.bf16.mxu0 0
      %1382 = vmatpush1.bf16.msra.mxu0 %v1361
      %1383 = vmatprep.subr.bf16.mxu0 0
      %1384 = vmatpush1.bf16.msra.mxu0 %v1362
      %1385 = vmatprep.subr.bf16.mxu0 0
      %1386 = vmatpush1.bf16.msra.mxu0 %v1363
      %1387 = vmatprep.subr.bf16.mxu0 0
      %1388 = vmatpush1.bf16.msra.mxu0 %v1364
      %1389 = vmatprep.subr.bf16.mxu0 0
      %1390 = vmatpush1.bf16.msra.mxu0 0
      %1391 = vmatprep.subr.bf16.mxu0 0
      %1392 = vmatpush1.bf16.msra.mxu0 0
      %1393 = vmatprep.subr.bf16.mxu0 0
      %1394 = vmatpush1.bf16.msra.mxu0 0
      %1395 = vmatprep.subr.bf16.mxu0 0
      %1396 = vmatpush1.bf16.msra.mxu0 0
      %1397 = vmatprep.subr.bf16.mxu0 0
      %1398 = vmatpush1.bf16.msra.mxu0 0
      %1399 = vmatprep.subr.bf16.mxu0 0
      %1400 = vmatpush1.bf16.msra.mxu0 0
      %1401 = vmatprep.subr.bf16.mxu0 0
      %1402 = vmatpush1.bf16.msra.mxu0 0
      %1403 = vmatprep.subr.bf16.mxu0 0
      %1404 = vmatpush1.bf16.msra.mxu0 0
      %1405 = vmatprep.mubr.bf16.mxu0 0
      %1406 = vmatmul.mubr.bf16.gmra.mrb[0].mxu0 %v1323
      %v1407 = vpop.f32.mrb[0].mxu0
      %v1408 = vadd.f32 0.0, %v1407
      %v1409 = vpop.f32.mrb[0].mxu0
      %v1410 = vpop.f32.mrb[0].mxu0
      %v1411 = vpop.f32.mrb[0].mxu0
      %1412 = vdwg.mxu0
      %v1413 = vadd.f32 %v1253, %v1408
      %v1414 = vld [vmem:[%s1127] sm:$0x2]
      %v1415 = vld [vmem:[%s1127 + $0x2] sm:$0x2]
      %v1419 = vunpack.c.l.s4 1966171168
      %v1420 = vunpack.c.0.s8 %v1419
      %v1421 = vlaneseq
      %v1422 = vshrl.u32 %v1421, 7
      %v1423 = vsub.s32 %v1420, %v1422
      %v1424 = vrot.slane %v1414, %v1423
      %v1425 = vcombine.high %v1424, %v1424
      %v1427 = vunpack.c.l.s4 1966171168
      %v1428 = vunpack.c.0.s8 %v1427
      %v1429 = vlaneseq
      %v1430 = vshrl.u32 %v1429, 7
      %v1431 = vsub.s32 %v1428, %v1430
      %v1432 = vrot.slane %v1415, %v1431
      %v1433 = vcombine.high %v1432, %v1432
      %s1434 = scalar_lea.vmem %s1, 512
      %v1435 = vld [vmem:[%s1434] sm:$0xf]
      %v1436 = vld [vmem:[%s1434 + $0x4] sm:$0xf]
      %v1437 = vld [vmem:[%s1434 + $0x8] sm:$0xf]
      %v1438 = vld [vmem:[%s1434 + $0xc] sm:$0xf]
      %v1439 = vld [vmem:[%s1434 + $0x10] sm:$0xf]
      %v1440 = vld [vmem:[%s1434 + $0x14] sm:$0xf]
      %v1441 = vld [vmem:[%s1434 + $0x18] sm:$0xf]
      %v1442 = vld [vmem:[%s1434 + $0x1c] sm:$0xf]
      %v1443 = vld [vmem:[%s1434 + $0x20] sm:$0xf]
      %v1444 = vld [vmem:[%s1434 + $0x24] sm:$0xf]
      %v1445 = vld [vmem:[%s1434 + $0x28] sm:$0xf]
      %v1446 = vld [vmem:[%s1434 + $0x2c] sm:$0xf]
      %v1447 = vld [vmem:[%s1434 + $0x30] sm:$0xf]
      %v1448 = vld [vmem:[%s1434 + $0x34] sm:$0xf]
      %v1449 = vld [vmem:[%s1434 + $0x38] sm:$0xf]
      %v1450 = vld [vmem:[%s1434 + $0x3c] sm:$0xf]
      %v1451 = vcombine.low %v1425, %v1433
      %v1453 = vunpack.c.l.s4 1966171168
      %v1454 = vunpack.c.0.s8 %v1453
      %v1455 = vlaneseq
      %v1456 = vshrl.u32 %v1455, 7
      %v1457 = vsub.s32 %v1454, %v1456
      %v1458 = vrot.slane %v1451, %v1457
      %v1460 = vunpack.c.l.s4 1966171168
      %v1461 = vunpack.c.0.s8 %v1460
      %v1462 = vlaneseq
      %v1463 = vshrl.u32 %v1462, 7
      %v1464 = vsub.s32 %v1461, %v1463
      %v1465 = vrot.slane %v1458, %v1464
      %v1483 = vunpack.c.l.b16 %v1435
      %v1484 = vunpack.c.l.b16 %v1436
      %v1485 = vunpack.c.l.b16 %v1437
      %v1486 = vunpack.c.l.b16 %v1438
      %v1487 = vunpack.c.l.b16 %v1439
      %v1488 = vunpack.c.l.b16 %v1440
      %v1489 = vunpack.c.l.b16 %v1441
      %v1490 = vunpack.c.l.b16 %v1442
      %v1491 = vunpack.c.l.b16 %v1443
      %v1492 = vunpack.c.l.b16 %v1444
      %v1493 = vunpack.c.l.b16 %v1445
      %v1494 = vunpack.c.l.b16 %v1446
      %v1495 = vunpack.c.l.b16 %v1447
      %v1496 = vunpack.c.l.b16 %v1448
      %v1497 = vunpack.c.l.b16 %v1449
      %v1498 = vunpack.c.l.b16 %v1450
      %v1499 = vpack.c.b16 %v1484, %v1483
      %v1500 = vpack.c.b16 %v1486, %v1485
      %v1501 = vpack.c.b16 %v1488, %v1487
      %v1502 = vpack.c.b16 %v1490, %v1489
      %v1503 = vpack.c.b16 %v1492, %v1491
      %v1504 = vpack.c.b16 %v1494, %v1493
      %v1505 = vpack.c.b16 %v1496, %v1495
      %v1506 = vpack.c.b16 %v1498, %v1497
      %1515 = vmatprep.subr.bf16.mxu0 0
      %1516 = vmatpush1.bf16.msra.mxu0 %v1499
      %1517 = vmatprep.subr.bf16.mxu0 0
      %1518 = vmatpush1.bf16.msra.mxu0 %v1500
      %1519 = vmatprep.subr.bf16.mxu0 0
      %1520 = vmatpush1.bf16.msra.mxu0 %v1501
      %1521 = vmatprep.subr.bf16.mxu0 0
      %1522 = vmatpush1.bf16.msra.mxu0 %v1502
      %1523 = vmatprep.subr.bf16.mxu0 0
      %1524 = vmatpush1.bf16.msra.mxu0 %v1503
      %1525 = vmatprep.subr.bf16.mxu0 0
      %1526 = vmatpush1.bf16.msra.mxu0 %v1504
      %1527 = vmatprep.subr.bf16.mxu0 0
      %1528 = vmatpush1.bf16.msra.mxu0 %v1505
      %1529 = vmatprep.subr.bf16.mxu0 0
      %1530 = vmatpush1.bf16.msra.mxu0 %v1506
      %1531 = vmatprep.subr.bf16.mxu0 0
      %1532 = vmatpush1.bf16.msra.mxu0 0
      %1533 = vmatprep.subr.bf16.mxu0 0
      %1534 = vmatpush1.bf16.msra.mxu0 0
      %1535 = vmatprep.subr.bf16.mxu0 0
      %1536 = vmatpush1.bf16.msra.mxu0 0
      %1537 = vmatprep.subr.bf16.mxu0 0
      %1538 = vmatpush1.bf16.msra.mxu0 0
      %1539 = vmatprep.subr.bf16.mxu0 0
      %1540 = vmatpush1.bf16.msra.mxu0 0
      %1541 = vmatprep.subr.bf16.mxu0 0
      %1542 = vmatpush1.bf16.msra.mxu0 0
      %1543 = vmatprep.subr.bf16.mxu0 0
      %1544 = vmatpush1.bf16.msra.mxu0 0
      %1545 = vmatprep.subr.bf16.mxu0 0
      %1546 = vmatpush1.bf16.msra.mxu0 0
      %1547 = vmatprep.mubr.bf16.mxu0 0
      %1548 = vmatmul.mubr.bf16.gmra.mrb[0].mxu0 %v1465
      %v1549 = vpop.f32.mrb[0].mxu0
      %v1550 = vadd.f32 0.0, %v1549
      %v1551 = vpop.f32.mrb[0].mxu0
      %v1552 = vpop.f32.mrb[0].mxu0
      %v1553 = vpop.f32.mrb[0].mxu0
      %1554 = vdwg.mxu0
      %v1555 = vadd.f32 %v1413, %v1550
      %v1556 = vld [vmem:[%s2] sm:$0x1]
      %v1558 = vlaneseq
      %v1559 = vshrl.u32 %v1558, 7
      %v1560 = vsub.s32 0, %v1559
      %v1561 = vrot.slane %v1556, %v1560
      %v1563 = vadd.f32 %v1555, %v1561
      %v1564 = vmul.f32 %v1563, %v1563
      %v1565 = vpack.c.bf16 %v1564, %v1564
      %v1566 = vld [vmem:[%s3] sm:$0xf]
      %v1567 = vld [vmem:[%s3 + $0x4] sm:$0xf]
      %v1568 = vld [vmem:[%s3 + $0x8] sm:$0xf]
      %v1569 = vld [vmem:[%s3 + $0xc] sm:$0xf]
      %v1570 = vld [vmem:[%s4] sm:$0x1]
      %v1572 = vlaneseq
      %v1573 = vshrl.u32 %v1572, 7
      %v1574 = vsub.s32 0, %v1573
      %v1575 = vrot.slane %v1570, %v1574
      %v1581 = vunpack.c.l.b16 %v1566
      %v1582 = vunpack.c.l.b16 %v1567
      %v1583 = vunpack.c.l.b16 %v1568
      %v1584 = vunpack.c.l.b16 %v1569
      %v1585 = vpack.c.b16 %v1582, %v1581
      %v1586 = vpack.c.b16 %v1584, %v1583
      %vm1589 = vcmask 261120
      %v1591 = vsel %vm1589, %v1565, 0
      %1593 = vmatprep.subr.bf16.mxu0 0
      %1594 = vmatpush1.bf16.msra.mxu0 %v1585
      %1595 = vmatprep.subr.bf16.mxu0 0
      %1596 = vmatpush1.bf16.msra.mxu0 %v1586
      %1597 = vmatprep.subr.bf16.mxu0 0
      %1598 = vmatpush1.bf16.msra.mxu0 0
      %1599 = vmatprep.subr.bf16.mxu0 0
      %1600 = vmatpush1.bf16.msra.mxu0 0
      %1601 = vmatprep.subr.bf16.mxu0 0
      %1602 = vmatpush1.bf16.msra.mxu0 0
      %1603 = vmatprep.subr.bf16.mxu0 0
      %1604 = vmatpush1.bf16.msra.mxu0 0
      %1605 = vmatprep.subr.bf16.mxu0 0
      %1606 = vmatpush1.bf16.msra.mxu0 0
      %1607 = vmatprep.subr.bf16.mxu0 0
      %1608 = vmatpush1.bf16.msra.mxu0 0
      %1609 = vmatprep.subr.bf16.mxu0 0
      %1610 = vmatpush1.bf16.msra.mxu0 0
      %1611 = vmatprep.subr.bf16.mxu0 0
      %1612 = vmatpush1.bf16.msra.mxu0 0
      %1613 = vmatprep.subr.bf16.mxu0 0
      %1614 = vmatpush1.bf16.msra.mxu0 0
      %1615 = vmatprep.subr.bf16.mxu0 0
      %1616 = vmatpush1.bf16.msra.mxu0 0
      %1617 = vmatprep.subr.bf16.mxu0 0
      %1618 = vmatpush1.bf16.msra.mxu0 0
      %1619 = vmatprep.subr.bf16.mxu0 0
      %1620 = vmatpush1.bf16.msra.mxu0 0
      %1621 = vmatprep.subr.bf16.mxu0 0
      %1622 = vmatpush1.bf16.msra.mxu0 0
      %1623 = vmatprep.subr.bf16.mxu0 0
      %1624 = vmatpush1.bf16.msra.mxu0 0
      %1625 = vmatprep.mubr.bf16.mxu0 0
      %1626 = vmatmul.mubr.bf16.gmra.mrb[0].mxu0 %v1591
      %v1627 = vpop.f32.mrb[0].mxu0
      %v1628 = vadd.f32 %v1575, %v1627
      %v1629 = vpop.f32.mrb[0].mxu0
      %v1630 = vpop.f32.mrb[0].mxu0
      %v1631 = vpop.f32.mrb[0].mxu0
      %1632 = vdwg.mxu0
      %v1633 = vrsqrt.pop %v1628
      %v1634 = vmul.f32 %v1563, %v1633
      %v1635 = vpack.c.bf16 %v1634, %v1634
      %vm1636 = vcmask 254976
      %1637 = vst.msk [vmem:[%s256] sm:$0x3] %vm1636, %v1635
      %p1638 = scmp.lt.s32.totalorder %s20, 1
      %s1639 = scalar_select %p1638, %s20, 1
      %p1640 = scmp.lt.s32.totalorder %s21, 0
      %s1641 = scalar_select %p1640, %s21, 0
      %s1642 = sadd.s32 %s1641, %s1639
      %s1643 = smul.addr %s1642, 2
      %s1644 = scalar_lea.vmem %s5, %s1643
      // Predicated region
      $region41: #{rgb_encoder_forward.6} parent=39 // pred_check
        %p1645 = pneg %p160
      $region42: #{rgb_encoder_forward.6} parent=39 // pred_check_branch
        %1647 = sbr.rel (%p1645) target = $region44
      $region43: #{rgb_encoder_forward.6} parent=39 // pred_region
        _
      $region44: #{rgb_encoder_forward.6} parent=39 // pred_fallthru
        _
    $region40: #{rgb_encoder_forward.6} parent=5 // pred_fallthru
      _
    %p1648 = scmp.le.s32.totalorder 2, %s11
    // Predicated region
    $region45: #{rgb_encoder_forward.6} parent=5 // pred_check
      %p1649 = pneg %p1648
    $region46: #{rgb_encoder_forward.6} parent=5 // pred_check_branch
      %1651 = sbr.rel (%p1649) target = $region48
    $region47: #{rgb_encoder_forward.6} parent=5 // pred_region
      %s1652 = ssub.s32 %s11, 2
      // Predicated region
      $region49: #{rgb_encoder_forward.6} parent=47 // pred_check
        %p1653 = pneg %p166
      $region50: #{rgb_encoder_forward.6} parent=47 // pred_check_branch
        %1655 = sbr.rel (%p1653) target = $region52
      $region51: #{rgb_encoder_forward.6} parent=47 // pred_region
        %p1656 = scmp.lt.s32.totalorder %s22, 1
        %s1657 = scalar_select %p1656, %s22, 1
        %p1658 = scmp.lt.s32.totalorder %s23, 0
        %s1659 = scalar_select %p1658, %s23, 0
        %s1660 = sadd.s32 %s1659, %s1657
        %s1661 = smul.addr %s1660, 2
        %s1662 = scalar_lea.vmem %s5, %s1661
      $region52: #{rgb_encoder_forward.6} parent=47 // pred_fallthru
        _
    $region48: #{rgb_encoder_forward.6} parent=5 // pred_fallthru
      _
  $region6: #{rgb_encoder_forward.6} parent=0 // loop_footer
    %s15 = sadd.s32 1, %s11
  $region7: #{rgb_encoder_forward.6} parent=0 // loop_footer_branch
    %10 = sbr.rel target = $region3
  $region8: #{rgb_encoder_forward.6} parent=0 // loop_exit
    _

// kernel: rgb_encoder_forward.7
$region0: #{rgb_encoder_forward.7}
  #allocation0 [shape = 'u32[]', space=smem, size = 0x4, offset = 0x4, fixed_abs, tag = 'smem constant byte address 0x4 - core index']
  #allocation1 [shape = 'u32[144,128]{1,0:T(1,128)}', space=vmem, size = 0x12000, scoped, tag = 'internal scratch']
  %s0 = inlined_call_operand.vmem [shape: bf16[2,1,3,3,128], index: 0, kind: input, shape index: {}]
  %s1 = inlined_call_operand.vmem [shape: bf16[9,128,64], index: 1, kind: input, shape index: {}]
  %s2 = inlined_call_operand.vmem [shape: f32[1,64], index: 2, kind: input, shape index: {}]
  %s3 = inlined_call_operand.hbm [shape: f32[2,1,1,64], index: 3, kind: output, shape index: {}]
  %s4 = sld [smem:[#allocation0]]
  $region45: #{rgb_encoder_forward.7} parent=0
    _
  %s6 = ssub.s32 1, %s4
  %s7 = scalar_select 0, %s6, %s4
  $region1: #{rgb_encoder_forward.7} parent=0
    #allocation2 [shape = 'u8[1024]{0}', space=vmem, size = 0x400, scoped, tag = 'output window, operand 0']
    #allocation3 [shape = 's32[2]{0}', space=sflag, size = 0x8, scoped, tag = 'scoped memory for rgb_encoder_forward.7']
    %8 = vsyncpa [#allocation3], 0
    %s9 = scalar_lea.sflag [#allocation3], 1
    %10 = vsyncpa %s9, 0
    loop: start=0, step=1, limit=4
    $region2: #{rgb_encoder_forward.7} parent=1 // loop_pre_header
      _
    $region3: #{rgb_encoder_forward.7} parent=1 // loop_header
      %s12 = sphi 0, %s16
      %p13 = scmp.ge.s32.totalorder %s12, 4
      %s19 = sphi 0, %s31
      %s20 = sphi 0, %s27
      %s21 = sphi 0, %s19
      %s22 = sphi 0, %s20
      %s23 = sphi 0, %s21
      %s24 = sphi 0, %s22
      %s36 = sphi 0, %s38
      %s39 = sphi 0, %s36
      %s40 = sphi 0, %s39
      %s56 = sphi 0, %s40
      %s60 = sphi 0, %s60
      %s62 = sphi 0, %s60
      %s63 = sphi 0, %s62
      %s77 = sphi 0, %s63
      %s81 = sphi 0, %s81
      %s83 = sphi 0, %s81
      %s84 = sphi 0, %s83
      %s98 = sphi 0, %s84
      %s106 = sphi 0, %s108
      %s109 = sphi 0, %s106
      %s110 = sphi 0, %s109
      %s126 = sphi 0, %s110
    $region4: #{rgb_encoder_forward.7} parent=1 // loop_header_branch
      %15 = sbr.rel (%p13) target = $region8
    $region5: #{rgb_encoder_forward.7} parent=1 // loop_body
      %s17 = ssub.s32 %s12, 1
      %s18 = ssub.s32 %s12, 2
      %s25 = sadd.s32 1, %s20
      %p26 = scmp.ge.s32.totalorder %s25, 1
      %s27 = scalar_select %p26, 0, %s25
      %s28 = sadd.s32 1, %s19
      %s29 = scalar_select %p26, %s28, %s19
      %p30 = scmp.ge.s32.totalorder %s29, 2
      %s31 = scalar_select %p30, 0, %s29
      %s32 = ssub.s32 %s19, %s31
      %s33 = ssub.s32 %s20, %s27
      %s34 = sor.u32 %s32, %s33
      %p35 = scmp.eq.s32.totalorder %s34, 0
      %s37 = sadd.s32 %s36, 1
      %s38 = scalar_select %p35, %s36, %s37
      %p41 = pneg %p35
      %p42 = scmp.eq.s32.totalorder %s12, 1
      %p43 = por %p41, %p42
      %p44 = scmp.ne.s32.totalorder %s36, %s39
      %p45 = scmp.eq.s32.totalorder %s12, 0
      %p46 = por %p44, %p45
      %p47 = scmp.ne.s32.totalorder %s36, %s39
      %p48 = scmp.eq.s32.totalorder %s17, 1
      %p49 = por %p47, %p48
      %p50 = scmp.ne.s32.totalorder %s39, %s40
      %p51 = scmp.eq.s32.totalorder %s17, 0
      %p52 = por %p50, %p51
      %p53 = scmp.ne.s32.totalorder %s39, %s40
      %p54 = scmp.eq.s32.totalorder %s18, 1
      %p55 = por %p53, %p54
      %p57 = scmp.ne.s32.totalorder %s40, %s56
      %p58 = scmp.eq.s32.totalorder %s18, 0
      %p59 = por %p57, %p58
      %s61 = sadd.s32 %s60, 1
      %p64 = scmp.eq.s32.totalorder %s12, 1
      %p65 = scmp.ne.s32.totalorder %s60, %s62
      %p66 = scmp.eq.s32.totalorder %s12, 0
      %p67 = por %p65, %p66
      %p68 = scmp.ne.s32.totalorder %s60, %s62
      %p69 = scmp.eq.s32.totalorder %s17, 1
      %p70 = por %p68, %p69
      %p71 = scmp.ne.s32.totalorder %s62, %s63
      %p72 = scmp.eq.s32.totalorder %s17, 0
      %p73 = por %p71, %p72
      %p74 = scmp.ne.s32.totalorder %s62, %s63
      %p75 = scmp.eq.s32.totalorder %s18, 1
      %p76 = por %p74, %p75
      %p78 = scmp.ne.s32.totalorder %s63, %s77
      %p79 = scmp.eq.s32.totalorder %s18, 0
      %p80 = por %p78, %p79
      %s82 = sadd.s32 %s81, 1
      %p85 = scmp.eq.s32.totalorder %s12, 1
      %p86 = scmp.ne.s32.totalorder %s81, %s83
      %p87 = scmp.eq.s32.totalorder %s12, 0
      %p88 = por %p86, %p87
      %p89 = scmp.ne.s32.totalorder %s81, %s83
      %p90 = scmp.eq.s32.totalorder %s17, 1
      %p91 = por %p89, %p90
      %p92 = scmp.ne.s32.totalorder %s83, %s84
      %p93 = scmp.eq.s32.totalorder %s17, 0
      %p94 = por %p92, %p93
      %p95 = scmp.ne.s32.totalorder %s83, %s84
      %p96 = scmp.eq.s32.totalorder %s18, 1
      %p97 = por %p95, %p96
      %p99 = scmp.ne.s32.totalorder %s84, %s98
      %p100 = scmp.eq.s32.totalorder %s18, 0
      %p101 = por %p99, %p100
      %s102 = ssub.s32 %s19, %s31
      %s103 = ssub.s32 %s20, %s27
      %s104 = sor.u32 %s102, %s103
      %p105 = scmp.eq.s32.totalorder %s104, 0
      %s107 = sadd.s32 %s106, 1
      %s108 = scalar_select %p105, %s106, %s107
      %p111 = pneg %p105
      %p112 = scmp.eq.s32.totalorder %s12, 1
      %p113 = por %p111, %p112
      %p114 = scmp.ne.s32.totalorder %s106, %s109
      %p115 = scmp.eq.s32.totalorder %s12, 0
      %p116 = por %p114, %p115
      %p117 = scmp.ne.s32.totalorder %s106, %s109
      %p118 = scmp.eq.s32.totalorder %s17, 1
      %p119 = por %p117, %p118
      %p120 = scmp.ne.s32.totalorder %s109, %s110
      %p121 = scmp.eq.s32.totalorder %s17, 0
      %p122 = por %p120, %p121
      %p123 = scmp.ne.s32.totalorder %s109, %s110
      %p124 = scmp.eq.s32.totalorder %s18, 1
      %p125 = por %p123, %p124
      %p127 = scmp.ne.s32.totalorder %s110, %s126
      %p128 = scmp.eq.s32.totalorder %s18, 0
      %p129 = por %p127, %p128
      %p130 = scmp.le.s32.totalorder 1, %s12
      %p131 = scmp.lt.s32.totalorder %s12, 3
      %p132 = pnand %p130, %p131
      %p133 = pneg %p132
      // Predicated region
      $region9: #{rgb_encoder_forward.7} parent=5 // pred_check
        _
      $region10: #{rgb_encoder_forward.7} parent=5 // pred_check_branch
        %135 = sbr.rel (%p132) target = $region12
      $region11: #{rgb_encoder_forward.7} parent=5 // pred_region
        %s136 = ssub.s32 %s12, 1
        // Predicated region
        $region13: #{rgb_encoder_forward.7} parent=11 // pred_check
          %p137 = pneg %p73
        $region14: #{rgb_encoder_forward.7} parent=11 // pred_check_branch
          %139 = sbr.rel (%p137) target = $region16
        $region15: #{rgb_encoder_forward.7} parent=11 // pred_region
          _
        $region16: #{rgb_encoder_forward.7} parent=11 // pred_fallthru
          _
        // Predicated region
        $region17: #{rgb_encoder_forward.7} parent=11 // pred_check
          %p140 = pneg %p94
        $region18: #{rgb_encoder_forward.7} parent=11 // pred_check_branch
          %142 = sbr.rel (%p140) target = $region20
        $region19: #{rgb_encoder_forward.7} parent=11 // pred_region
          _
        $region20: #{rgb_encoder_forward.7} parent=11 // pred_fallthru
          _
      $region12: #{rgb_encoder_forward.7} parent=5 // pred_fallthru
        _
      %p143 = scmp.lt.s32.totalorder %s12, 2
      // Predicated region
      $region21: #{rgb_encoder_forward.7} parent=5 // pred_check
        %p144 = pneg %p143
      $region22: #{rgb_encoder_forward.7} parent=5 // pred_check_branch
        %146 = sbr.rel (%p144) target = $region24
      $region23: #{rgb_encoder_forward.7} parent=5 // pred_region
        // Predicated region
        $region25: #{rgb_encoder_forward.7} parent=23 // pred_check
          %p147 = pneg %p46
        $region26: #{rgb_encoder_forward.7} parent=23 // pred_check_branch
          %149 = sbr.rel (%p147) target = $region28
        $region27: #{rgb_encoder_forward.7} parent=23 // pred_region
          %p150 = scmp.lt.s32.totalorder %s19, 1
          %s151 = scalar_select %p150, %s19, 1
          %p152 = scmp.lt.s32.totalorder %s20, 0
          %s153 = scalar_select %p152, %s20, 0
          %s154 = smul.addr %s153, 3
          %s155 = smul.addr %s151, 3
          %s156 = sadd.s32 %s154, %s155
          %s157 = smul.addr %s156, 2
          %s158 = scalar_lea.vmem %s0, %s157
        $region28: #{rgb_encoder_forward.7} parent=23 // pred_fallthru
          _
      $region24: #{rgb_encoder_forward.7} parent=5 // pred_fallthru
        _
      %p159 = scmp.le.s32.totalorder 1, %s12
      %p160 = scmp.lt.s32.totalorder %s12, 3
      %p161 = pnand %p159, %p160
      %p162 = pneg %p161
      // Predicated region
      $region29: #{rgb_encoder_forward.7} parent=5 // pred_check
        _
      $region30: #{rgb_encoder_forward.7} parent=5 // pred_check_branch
        %164 = sbr.rel (%p161) target = $region32
      $region31: #{rgb_encoder_forward.7} parent=5 // pred_region
        %s165 = ssub.s32 %s12, 1
        %p166 = scmp.lt.s32.totalorder %s21, 1
        %s167 = scalar_select %p166, %s21, 1
        %p168 = scmp.lt.s32.totalorder %s22, 0
        %s169 = scalar_select %p168, %s22, 0
        %s170 = smul.addr %s169, 3
        %s171 = smul.addr %s167, 3
        %s172 = sadd.s32 %s170, %s171
        %s173 = smul.addr %s172, 2
        %s174 = scalar_lea.vmem %s0, %s173
        %p175 = pneg %p52
        %p176 = pneg %p49
        %p177 = pneg %p73
        %p178 = pneg %p70
        %p179 = pneg %p94
        %p180 = pneg %p91
        %p181 = pneg %p122
        %p182 = pneg %p119
        %s183 = sand.u32 %s109, 1
        %s184 = scalar_lea.sflag [#allocation3], %s183
        %s185 = sand.u32 %s109, 1
        %s186 = scalar_lea.vmem [#allocation2], %s185
        %p187 = scmp.lt.s32.totalorder %s21, 1
        %s188 = scalar_select %p187, %s21, 1
        %p189 = scmp.lt.s32.totalorder %s22, 0
        %s190 = scalar_select %p189, %s22, 0
        %s191 = smul.addr %s190, 3
        %s192 = smul.addr %s188, 3
        %s193 = sadd.s32 %s191, %s192
        %s194 = smul.addr %s193, 2
        %s195 = scalar_lea.vmem %s0, %s194
        %v197 = vld [vmem:[%s195] sm:$0x1]
        %v198 = vld [vmem:[%s1] sm:$0xf]
        %v199 = vld [vmem:[%s1 + $0x4] sm:$0xf]
        %v200 = vld [vmem:[%s1 + $0x8] sm:$0xf]
        %v201 = vld [vmem:[%s1 + $0xc] sm:$0xf]
        %v202 = vld [vmem:[%s1 + $0x10] sm:$0xf]
        %v203 = vld [vmem:[%s1 + $0x14] sm:$0xf]
        %v204 = vld [vmem:[%s1 + $0x18] sm:$0xf]
        %v205 = vld [vmem:[%s1 + $0x1c] sm:$0xf]
        %v206 = vld [vmem:[%s1 + $0x20] sm:$0xf]
        %v207 = vld [vmem:[%s1 + $0x24] sm:$0xf]
        %v208 = vld [vmem:[%s1 + $0x28] sm:$0xf]
        %v209 = vld [vmem:[%s1 + $0x2c] sm:$0xf]
        %v210 = vld [vmem:[%s1 + $0x30] sm:$0xf]
        %v211 = vld [vmem:[%s1 + $0x34] sm:$0xf]
        %v212 = vld [vmem:[%s1 + $0x38] sm:$0xf]
        %v213 = vld [vmem:[%s1 + $0x3c] sm:$0xf]
        %s214 = scalar_lea.vmem %s1, 64
        %v215 = vld [vmem:[%s214] sm:$0xf]
        %v216 = vld [vmem:[%s214 + $0x4] sm:$0xf]
        %v217 = vld [vmem:[%s214 + $0x8] sm:$0xf]
        %v218 = vld [vmem:[%s214 + $0xc] sm:$0xf]
        %v219 = vld [vmem:[%s214 + $0x10] sm:$0xf]
        %v220 = vld [vmem:[%s214 + $0x14] sm:$0xf]
        %v221 = vld [vmem:[%s214 + $0x18] sm:$0xf]
        %v222 = vld [vmem:[%s214 + $0x1c] sm:$0xf]
        %v223 = vld [vmem:[%s214 + $0x20] sm:$0xf]
        %v224 = vld [vmem:[%s214 + $0x24] sm:$0xf]
        %v225 = vld [vmem:[%s214 + $0x28] sm:$0xf]
        %v226 = vld [vmem:[%s214 + $0x2c] sm:$0xf]
        %v227 = vld [vmem:[%s214 + $0x30] sm:$0xf]
        %v228 = vld [vmem:[%s214 + $0x34] sm:$0xf]
        %v229 = vld [vmem:[%s214 + $0x38] sm:$0xf]
        %v230 = vld [vmem:[%s214 + $0x3c] sm:$0xf]
        %v233 = vunpack.c.l.s4 1983009808
        %v234 = vunpack.c.0.s8 %v233
        %v235 = vlaneseq
        %v236 = vshrl.u32 %v235, 7
        %v237 = vsub.s32 %v234, %v236
        %v238 = vrot.slane %v197, %v237
        %v240 = vshrl.u32 %v238, 16
        %v259 = vunpack.c.l.b16 %v215
        %v260 = vunpack.c.l.b16 %v216
        %v261 = vunpack.c.l.b16 %v217
        %v262 = vunpack.c.l.b16 %v218
        %v263 = vunpack.c.l.b16 %v219
        %v264 = vunpack.c.l.b16 %v220
        %v265 = vunpack.c.l.b16 %v221
        %v266 = vunpack.c.l.b16 %v222
        %v267 = vunpack.c.l.b16 %v223
        %v268 = vunpack.c.l.b16 %v224
        %v269 = vunpack.c.l.b16 %v225
        %v270 = vunpack.c.l.b16 %v226
        %v271 = vunpack.c.l.b16 %v227
        %v272 = vunpack.c.l.b16 %v228
        %v273 = vunpack.c.l.b16 %v229
        %v274 = vunpack.c.l.b16 %v230
        %v275 = vpack.c.b16 %v260, %v259
        %v276 = vpack.c.b16 %v262, %v261
        %v277 = vpack.c.b16 %v264, %v263
        %v278 = vpack.c.b16 %v266, %v265
        %v279 = vpack.c.b16 %v268, %v267
        %v280 = vpack.c.b16 %v270, %v269
        %v281 = vpack.c.b16 %v272, %v271
        %v282 = vpack.c.b16 %v274, %v273
        %291 = vmatprep.subr.bf16.mxu0 0
        %292 = vmatpush1.bf16.msra.mxu0 %v275
        %293 = vmatprep.subr.bf16.mxu0 0
        %294 = vmatpush1.bf16.msra.mxu0 %v276
        %295 = vmatprep.subr.bf16.mxu0 0
        %296 = vmatpush1.bf16.msra.mxu0 %v277
        %297 = vmatprep.subr.bf16.mxu0 0
        %298 = vmatpush1.bf16.msra.mxu0 %v278
        %299 = vmatprep.subr.bf16.mxu0 0
        %300 = vmatpush1.bf16.msra.mxu0 %v279
        %301 = vmatprep.subr.bf16.mxu0 0
        %302 = vmatpush1.bf16.msra.mxu0 %v280
        %303 = vmatprep.subr.bf16.mxu0 0
        %304 = vmatpush1.bf16.msra.mxu0 %v281
        %305 = vmatprep.subr.bf16.mxu0 0
        %306 = vmatpush1.bf16.msra.mxu0 %v282
        %307 = vmatprep.subr.bf16.mxu0 0
        %308 = vmatpush1.bf16.msra.mxu0 0
        %309 = vmatprep.subr.bf16.mxu0 0
        %310 = vmatpush1.bf16.msra.mxu0 0
        %311 = vmatprep.subr.bf16.mxu0 0
        %312 = vmatpush1.bf16.msra.mxu0 0
        %313 = vmatprep.subr.bf16.mxu0 0
        %314 = vmatpush1.bf16.msra.mxu0 0
        %315 = vmatprep.subr.bf16.mxu0 0
        %316 = vmatpush1.bf16.msra.mxu0 0
        %317 = vmatprep.subr.bf16.mxu0 0
        %318 = vmatpush1.bf16.msra.mxu0 0
        %319 = vmatprep.subr.bf16.mxu0 0
        %320 = vmatpush1.bf16.msra.mxu0 0
        %321 = vmatprep.subr.bf16.mxu0 0
        %322 = vmatpush1.bf16.msra.mxu0 0
        %323 = vmatprep.mubr.bf16.mxu0 0
        %324 = vmatmul.mubr.bf16.gmra.mrb[0].mxu0 %v240
        %v325 = vpop.f32.mrb[0].mxu0
        %v326 = vadd.f32 0.0, %v325
        %v327 = vpop.f32.mrb[0].mxu0
        %v328 = vpop.f32.mrb[0].mxu0
        %v329 = vpop.f32.mrb[0].mxu0
        %330 = vdwg.mxu0
        %v347 = vunpack.c.l.b16 %v198
        %v348 = vunpack.c.l.b16 %v199
        %v349 = vunpack.c.l.b16 %v200
        %v350 = vunpack.c.l.b16 %v201
        %v351 = vunpack.c.l.b16 %v202
        %v352 = vunpack.c.l.b16 %v203
        %v353 = vunpack.c.l.b16 %v204
        %v354 = vunpack.c.l.b16 %v205
        %v355 = vunpack.c.l.b16 %v206
        %v356 = vunpack.c.l.b16 %v207
        %v357 = vunpack.c.l.b16 %v208
        %v358 = vunpack.c.l.b16 %v209
        %v359 = vunpack.c.l.b16 %v210
        %v360 = vunpack.c.l.b16 %v211
        %v361 = vunpack.c.l.b16 %v212
        %v362 = vunpack.c.l.b16 %v213
        %v363 = vpack.c.b16 %v348, %v347
        %v364 = vpack.c.b16 %v350, %v349
        %v365 = vpack.c.b16 %v352, %v351
        %v366 = vpack.c.b16 %v354, %v353
        %v367 = vpack.c.b16 %v356, %v355
        %v368 = vpack.c.b16 %v358, %v357
        %v369 = vpack.c.b16 %v360, %v359
        %v370 = vpack.c.b16 %v362, %v361
        %379 = vmatprep.subr.bf16.mxu0 0
        %380 = vmatpush1.bf16.msra.mxu0 %v363
        %381 = vmatprep.subr.bf16.mxu0 0
        %382 = vmatpush1.bf16.msra.mxu0 %v364
        %383 = vmatprep.subr.bf16.mxu0 0
        %384 = vmatpush1.bf16.msra.mxu0 %v365
        %385 = vmatprep.subr.bf16.mxu0 0
        %386 = vmatpush1.bf16.msra.mxu0 %v366
        %387 = vmatprep.subr.bf16.mxu0 0
        %388 = vmatpush1.bf16.msra.mxu0 %v367
        %389 = vmatprep.subr.bf16.mxu0 0
        %390 = vmatpush1.bf16.msra.mxu0 %v368
        %391 = vmatprep.subr.bf16.mxu0 0
        %392 = vmatpush1.bf16.msra.mxu0 %v369
        %393 = vmatprep.subr.bf16.mxu0 0
        %394 = vmatpush1.bf16.msra.mxu0 %v370
        %395 = vmatprep.subr.bf16.mxu0 0
        %396 = vmatpush1.bf16.msra.mxu0 0
        %397 = vmatprep.subr.bf16.mxu0 0
        %398 = vmatpush1.bf16.msra.mxu0 0
        %399 = vmatprep.subr.bf16.mxu0 0
        %400 = vmatpush1.bf16.msra.mxu0 0
        %401 = vmatprep.subr.bf16.mxu0 0
        %402 = vmatpush1.bf16.msra.mxu0 0
        %403 = vmatprep.subr.bf16.mxu0 0
        %404 = vmatpush1.bf16.msra.mxu0 0
        %405 = vmatprep.subr.bf16.mxu0 0
        %406 = vmatpush1.bf16.msra.mxu0 0
        %407 = vmatprep.subr.bf16.mxu0 0
        %408 = vmatpush1.bf16.msra.mxu0 0
        %409 = vmatprep.subr.bf16.mxu0 0
        %410 = vmatpush1.bf16.msra.mxu0 0
        %411 = vmatprep.mubr.bf16.mxu0 0
        %412 = vmatmul.mubr.bf16.gmra.mrb[0].mxu0 %v197
        %v413 = vpop.f32.mrb[0].mxu0
        %v414 = vadd.f32 %v326, %v413
        %v415 = vpop.f32.mrb[0].mxu0
        %v416 = vpop.f32.mrb[0].mxu0
        %v417 = vpop.f32.mrb[0].mxu0
        %418 = vdwg.mxu0
        %v419 = vld [vmem:[%s195] sm:$0x2]
        %s420 = scalar_lea.vmem %s1, 128
        %v421 = vld [vmem:[%s420] sm:$0xf]
        %v422 = vld [vmem:[%s420 + $0x4] sm:$0xf]
        %v423 = vld [vmem:[%s420 + $0x8] sm:$0xf]
        %v424 = vld [vmem:[%s420 + $0xc] sm:$0xf]
        %v425 = vld [vmem:[%s420 + $0x10] sm:$0xf]
        %v426 = vld [vmem:[%s420 + $0x14] sm:$0xf]
        %v427 = vld [vmem:[%s420 + $0x18] sm:$0xf]
        %v428 = vld [vmem:[%s420 + $0x1c] sm:$0xf]
        %v429 = vld [vmem:[%s420 + $0x20] sm:$0xf]
        %v430 = vld [vmem:[%s420 + $0x24] sm:$0xf]
        %v431 = vld [vmem:[%s420 + $0x28] sm:$0xf]
        %v432 = vld [vmem:[%s420 + $0x2c] sm:$0xf]
        %v433 = vld [vmem:[%s420 + $0x30] sm:$0xf]
        %v434 = vld [vmem:[%s420 + $0x34] sm:$0xf]
        %v435 = vld [vmem:[%s420 + $0x38] sm:$0xf]
        %v436 = vld [vmem:[%s420 + $0x3c] sm:$0xf]
        %v439 = vunpack.c.l.s4 1983009808
        %v440 = vunpack.c.0.s8 %v439
        %v441 = vlaneseq
        %v442 = vshrl.u32 %v441, 7
        %v443 = vsub.s32 %v440, %v442
        %v444 = vrot.slane %v419, %v443
        %v445 = vrot.slane %v444, 1
        %v463 = vunpack.c.l.b16 %v421
        %v464 = vunpack.c.l.b16 %v422
        %v465 = vunpack.c.l.b16 %v423
        %v466 = vunpack.c.l.b16 %v424
        %v467 = vunpack.c.l.b16 %v425
        %v468 = vunpack.c.l.b16 %v426
        %v469 = vunpack.c.l.b16 %v427
        %v470 = vunpack.c.l.b16 %v428
        %v471 = vunpack.c.l.b16 %v429
        %v472 = vunpack.c.l.b16 %v430
        %v473 = vunpack.c.l.b16 %v431
        %v474 = vunpack.c.l.b16 %v432
        %v475 = vunpack.c.l.b16 %v433
        %v476 = vunpack.c.l.b16 %v434
        %v477 = vunpack.c.l.b16 %v435
        %v478 = vunpack.c.l.b16 %v436
        %v479 = vpack.c.b16 %v464, %v463
        %v480 = vpack.c.b16 %v466, %v465
        %v481 = vpack.c.b16 %v468, %v467
        %v482 = vpack.c.b16 %v470, %v469
        %v483 = vpack.c.b16 %v472, %v471
        %v484 = vpack.c.b16 %v474, %v473
        %v485 = vpack.c.b16 %v476, %v475
        %v486 = vpack.c.b16 %v478, %v477
        %495 = vmatprep.subr.bf16.mxu0 0
        %496 = vmatpush1.bf16.msra.mxu0 %v479
        %497 = vmatprep.subr.bf16.mxu0 0
        %498 = vmatpush1.bf16.msra.mxu0 %v480
        %499 = vmatprep.subr.bf16.mxu0 0
        %500 = vmatpush1.bf16.msra.mxu0 %v481
        %501 = vmatprep.subr.bf16.mxu0 0
        %502 = vmatpush1.bf16.msra.mxu0 %v482
        %503 = vmatprep.subr.bf16.mxu0 0
        %504 = vmatpush1.bf16.msra.mxu0 %v483
        %505 = vmatprep.subr.bf16.mxu0 0
        %506 = vmatpush1.bf16.msra.mxu0 %v484
        %507 = vmatprep.subr.bf16.mxu0 0
        %508 = vmatpush1.bf16.msra.mxu0 %v485
        %509 = vmatprep.subr.bf16.mxu0 0
        %510 = vmatpush1.bf16.msra.mxu0 %v486
        %511 = vmatprep.subr.bf16.mxu0 0
        %512 = vmatpush1.bf16.msra.mxu0 0
        %513 = vmatprep.subr.bf16.mxu0 0
        %514 = vmatpush1.bf16.msra.mxu0 0
        %515 = vmatprep.subr.bf16.mxu0 0
        %516 = vmatpush1.bf16.msra.mxu0 0
        %517 = vmatprep.subr.bf16.mxu0 0
        %518 = vmatpush1.bf16.msra.mxu0 0
        %519 = vmatprep.subr.bf16.mxu0 0
        %520 = vmatpush1.bf16.msra.mxu0 0
        %521 = vmatprep.subr.bf16.mxu0 0
        %522 = vmatpush1.bf16.msra.mxu0 0
        %523 = vmatprep.subr.bf16.mxu0 0
        %524 = vmatpush1.bf16.msra.mxu0 0
        %525 = vmatprep.subr.bf16.mxu0 0
        %526 = vmatpush1.bf16.msra.mxu0 0
        %527 = vmatprep.mubr.bf16.mxu0 0
        %528 = vmatmul.mubr.bf16.gmra.mrb[0].mxu0 %v445
        %v529 = vpop.f32.mrb[0].mxu0
        %v530 = vadd.f32 0.0, %v529
        %v531 = vpop.f32.mrb[0].mxu0
        %v532 = vpop.f32.mrb[0].mxu0
        %v533 = vpop.f32.mrb[0].mxu0
        %534 = vdwg.mxu0
        %v535 = vadd.f32 %v414, %v530
        %s536 = scalar_lea.vmem %s195, 2
        %v537 = vld [vmem:[%s536] sm:$0x1]
        %s538 = scalar_lea.vmem %s1, 192
        %v539 = vld [vmem:[%s538] sm:$0xf]
        %v540 = vld [vmem:[%s538 + $0x4] sm:$0xf]
        %v541 = vld [vmem:[%s538 + $0x8] sm:$0xf]
        %v542 = vld [vmem:[%s538 + $0xc] sm:$0xf]
        %v543 = vld [vmem:[%s538 + $0x10] sm:$0xf]
        %v544 = vld [vmem:[%s538 + $0x14] sm:$0xf]
        %v545 = vld [vmem:[%s538 + $0x18] sm:$0xf]
        %v546 = vld [vmem:[%s538 + $0x1c] sm:$0xf]
        %v547 = vld [vmem:[%s538 + $0x20] sm:$0xf]
        %v548 = vld [vmem:[%s538 + $0x24] sm:$0xf]
        %v549 = vld [vmem:[%s538 + $0x28] sm:$0xf]
        %v550 = vld [vmem:[%s538 + $0x2c] sm:$0xf]
        %v551 = vld [vmem:[%s538 + $0x30] sm:$0xf]
        %v552 = vld [vmem:[%s538 + $0x34] sm:$0xf]
        %v553 = vld [vmem:[%s538 + $0x38] sm:$0xf]
        %v554 = vld [vmem:[%s538 + $0x3c] sm:$0xf]
        %v571 = vunpack.c.l.b16 %v539
        %v572 = vunpack.c.l.b16 %v540
        %v573 = vunpack.c.l.b16 %v541
        %v574 = vunpack.c.l.b16 %v542
        %v575 = vunpack.c.l.b16 %v543
        %v576 = vunpack.c.l.b16 %v544
        %v577 = vunpack.c.l.b16 %v545
        %v578 = vunpack.c.l.b16 %v546
        %v579 = vunpack.c.l.b16 %v547
        %v580 = vunpack.c.l.b16 %v548
        %v581 = vunpack.c.l.b16 %v549
        %v582 = vunpack.c.l.b16 %v550
        %v583 = vunpack.c.l.b16 %v551
        %v584 = vunpack.c.l.b16 %v552
        %v585 = vunpack.c.l.b16 %v553
        %v586 = vunpack.c.l.b16 %v554
        %v587 = vpack.c.b16 %v572, %v571
        %v588 = vpack.c.b16 %v574, %v573
        %v589 = vpack.c.b16 %v576, %v575
        %v590 = vpack.c.b16 %v578, %v577
        %v591 = vpack.c.b16 %v580, %v579
        %v592 = vpack.c.b16 %v582, %v581
        %v593 = vpack.c.b16 %v584, %v583
        %v594 = vpack.c.b16 %v586, %v585
        %603 = vmatprep.subr.bf16.mxu0 0
        %604 = vmatpush1.bf16.msra.mxu0 %v587
        %605 = vmatprep.subr.bf16.mxu0 0
        %606 = vmatpush1.bf16.msra.mxu0 %v588
        %607 = vmatprep.subr.bf16.mxu0 0
        %608 = vmatpush1.bf16.msra.mxu0 %v589
        %609 = vmatprep.subr.bf16.mxu0 0
        %610 = vmatpush1.bf16.msra.mxu0 %v590
        %611 = vmatprep.subr.bf16.mxu0 0
        %612 = vmatpush1.bf16.msra.mxu0 %v591
        %613 = vmatprep.subr.bf16.mxu0 0
        %614 = vmatpush1.bf16.msra.mxu0 %v592
        %615 = vmatprep.subr.bf16.mxu0 0
        %616 = vmatpush1.bf16.msra.mxu0 %v593
        %617 = vmatprep.subr.bf16.mxu0 0
        %618 = vmatpush1.bf16.msra.mxu0 %v594
        %619 = vmatprep.subr.bf16.mxu0 0
        %620 = vmatpush1.bf16.msra.mxu0 0
        %621 = vmatprep.subr.bf16.mxu0 0
        %622 = vmatpush1.bf16.msra.mxu0 0
        %623 = vmatprep.subr.bf16.mxu0 0
        %624 = vmatpush1.bf16.msra.mxu0 0
        %625 = vmatprep.subr.bf16.mxu0 0
        %626 = vmatpush1.bf16.msra.mxu0 0
        %627 = vmatprep.subr.bf16.mxu0 0
        %628 = vmatpush1.bf16.msra.mxu0 0
        %629 = vmatprep.subr.bf16.mxu0 0
        %630 = vmatpush1.bf16.msra.mxu0 0
        %631 = vmatprep.subr.bf16.mxu0 0
        %632 = vmatpush1.bf16.msra.mxu0 0
        %633 = vmatprep.subr.bf16.mxu0 0
        %634 = vmatpush1.bf16.msra.mxu0 0
        %635 = vmatprep.mubr.bf16.mxu0 0
        %636 = vmatmul.mubr.bf16.gmra.mrb[0].mxu0 %v537
        %v637 = vpop.f32.mrb[0].mxu0
        %v638 = vadd.f32 0.0, %v637
        %v639 = vpop.f32.mrb[0].mxu0
        %v640 = vpop.f32.mrb[0].mxu0
        %v641 = vpop.f32.mrb[0].mxu0
        %642 = vdwg.mxu0
        %v643 = vadd.f32 %v535, %v638
        %s644 = scalar_lea.vmem %s1, 256
        %v645 = vld [vmem:[%s644] sm:$0xf]
        %v646 = vld [vmem:[%s644 + $0x4] sm:$0xf]
        %v647 = vld [vmem:[%s644 + $0x8] sm:$0xf]
        %v648 = vld [vmem:[%s644 + $0xc] sm:$0xf]
        %v649 = vld [vmem:[%s644 + $0x10] sm:$0xf]
        %v650 = vld [vmem:[%s644 + $0x14] sm:$0xf]
        %v651 = vld [vmem:[%s644 + $0x18] sm:$0xf]
        %v652 = vld [vmem:[%s644 + $0x1c] sm:$0xf]
        %v653 = vld [vmem:[%s644 + $0x20] sm:$0xf]
        %v654 = vld [vmem:[%s644 + $0x24] sm:$0xf]
        %v655 = vld [vmem:[%s644 + $0x28] sm:$0xf]
        %v656 = vld [vmem:[%s644 + $0x2c] sm:$0xf]
        %v657 = vld [vmem:[%s644 + $0x30] sm:$0xf]
        %v658 = vld [vmem:[%s644 + $0x34] sm:$0xf]
        %v659 = vld [vmem:[%s644 + $0x38] sm:$0xf]
        %v660 = vld [vmem:[%s644 + $0x3c] sm:$0xf]
        %v663 = vunpack.c.l.s4 1983009808
        %v664 = vunpack.c.0.s8 %v663
        %v665 = vlaneseq
        %v666 = vshrl.u32 %v665, 7
        %v667 = vsub.s32 %v664, %v666
        %v668 = vrot.slane %v537, %v667
        %v670 = vshrl.u32 %v668, 16
        %v689 = vunpack.c.l.b16 %v645
        %v690 = vunpack.c.l.b16 %v646
        %v691 = vunpack.c.l.b16 %v647
        %v692 = vunpack.c.l.b16 %v648
        %v693 = vunpack.c.l.b16 %v649
        %v694 = vunpack.c.l.b16 %v650
        %v695 = vunpack.c.l.b16 %v651
        %v696 = vunpack.c.l.b16 %v652
        %v697 = vunpack.c.l.b16 %v653
        %v698 = vunpack.c.l.b16 %v654
        %v699 = vunpack.c.l.b16 %v655
        %v700 = vunpack.c.l.b16 %v656
        %v701 = vunpack.c.l.b16 %v657
        %v702 = vunpack.c.l.b16 %v658
        %v703 = vunpack.c.l.b16 %v659
        %v704 = vunpack.c.l.b16 %v660
        %v705 = vpack.c.b16 %v690, %v689
        %v706 = vpack.c.b16 %v692, %v691
        %v707 = vpack.c.b16 %v694, %v693
        %v708 = vpack.c.b16 %v696, %v695
        %v709 = vpack.c.b16 %v698, %v697
        %v710 = vpack.c.b16 %v700, %v699
        %v711 = vpack.c.b16 %v702, %v701
        %v712 = vpack.c.b16 %v704, %v703
        %721 = vmatprep.subr.bf16.mxu0 0
        %722 = vmatpush1.bf16.msra.mxu0 %v705
        %723 = vmatprep.subr.bf16.mxu0 0
        %724 = vmatpush1.bf16.msra.mxu0 %v706
        %725 = vmatprep.subr.bf16.mxu0 0
        %726 = vmatpush1.bf16.msra.mxu0 %v707
        %727 = vmatprep.subr.bf16.mxu0 0
        %728 = vmatpush1.bf16.msra.mxu0 %v708
        %729 = vmatprep.subr.bf16.mxu0 0
        %730 = vmatpush1.bf16.msra.mxu0 %v709
        %731 = vmatprep.subr.bf16.mxu0 0
        %732 = vmatpush1.bf16.msra.mxu0 %v710
        %733 = vmatprep.subr.bf16.mxu0 0
        %734 = vmatpush1.bf16.msra.mxu0 %v711
        %735 = vmatprep.subr.bf16.mxu0 0
        %736 = vmatpush1.bf16.msra.mxu0 %v712
        %737 = vmatprep.subr.bf16.mxu0 0
        %738 = vmatpush1.bf16.msra.mxu0 0
        %739 = vmatprep.subr.bf16.mxu0 0
        %740 = vmatpush1.bf16.msra.mxu0 0
        %741 = vmatprep.subr.bf16.mxu0 0
        %742 = vmatpush1.bf16.msra.mxu0 0
        %743 = vmatprep.subr.bf16.mxu0 0
        %744 = vmatpush1.bf16.msra.mxu0 0
        %745 = vmatprep.subr.bf16.mxu0 0
        %746 = vmatpush1.bf16.msra.mxu0 0
        %747 = vmatprep.subr.bf16.mxu0 0
        %748 = vmatpush1.bf16.msra.mxu0 0
        %749 = vmatprep.subr.bf16.mxu0 0
        %750 = vmatpush1.bf16.msra.mxu0 0
        %751 = vmatprep.subr.bf16.mxu0 0
        %752 = vmatpush1.bf16.msra.mxu0 0
        %753 = vmatprep.mubr.bf16.mxu0 0
        %754 = vmatmul.mubr.bf16.gmra.mrb[0].mxu0 %v670
        %v755 = vpop.f32.mrb[0].mxu0
        %v756 = vadd.f32 0.0, %v755
        %v757 = vpop.f32.mrb[0].mxu0
        %v758 = vpop.f32.mrb[0].mxu0
        %v759 = vpop.f32.mrb[0].mxu0
        %760 = vdwg.mxu0
        %v761 = vadd.f32 %v643, %v756
        %v762 = vld [vmem:[%s536] sm:$0x2]
        %s763 = scalar_lea.vmem %s1, 320
        %v764 = vld [vmem:[%s763] sm:$0xf]
        %v765 = vld [vmem:[%s763 + $0x4] sm:$0xf]
        %v766 = vld [vmem:[%s763 + $0x8] sm:$0xf]
        %v767 = vld [vmem:[%s763 + $0xc] sm:$0xf]
        %v768 = vld [vmem:[%s763 + $0x10] sm:$0xf]
        %v769 = vld [vmem:[%s763 + $0x14] sm:$0xf]
        %v770 = vld [vmem:[%s763 + $0x18] sm:$0xf]
        %v771 = vld [vmem:[%s763 + $0x1c] sm:$0xf]
        %v772 = vld [vmem:[%s763 + $0x20] sm:$0xf]
        %v773 = vld [vmem:[%s763 + $0x24] sm:$0xf]
        %v774 = vld [vmem:[%s763 + $0x28] sm:$0xf]
        %v775 = vld [vmem:[%s763 + $0x2c] sm:$0xf]
        %v776 = vld [vmem:[%s763 + $0x30] sm:$0xf]
        %v777 = vld [vmem:[%s763 + $0x34] sm:$0xf]
        %v778 = vld [vmem:[%s763 + $0x38] sm:$0xf]
        %v779 = vld [vmem:[%s763 + $0x3c] sm:$0xf]
        %v782 = vunpack.c.l.s4 1983009808
        %v783 = vunpack.c.0.s8 %v782
        %v784 = vlaneseq
        %v785 = vshrl.u32 %v784, 7
        %v786 = vsub.s32 %v783, %v785
        %v787 = vrot.slane %v762, %v786
        %v788 = vrot.slane %v787, 1
        %v806 = vunpack.c.l.b16 %v764
        %v807 = vunpack.c.l.b16 %v765
        %v808 = vunpack.c.l.b16 %v766
        %v809 = vunpack.c.l.b16 %v767
        %v810 = vunpack.c.l.b16 %v768
        %v811 = vunpack.c.l.b16 %v769
        %v812 = vunpack.c.l.b16 %v770
        %v813 = vunpack.c.l.b16 %v771
        %v814 = vunpack.c.l.b16 %v772
        %v815 = vunpack.c.l.b16 %v773
        %v816 = vunpack.c.l.b16 %v774
        %v817 = vunpack.c.l.b16 %v775
        %v818 = vunpack.c.l.b16 %v776
        %v819 = vunpack.c.l.b16 %v777
        %v820 = vunpack.c.l.b16 %v778
        %v821 = vunpack.c.l.b16 %v779
        %v822 = vpack.c.b16 %v807, %v806
        %v823 = vpack.c.b16 %v809, %v808
        %v824 = vpack.c.b16 %v811, %v810
        %v825 = vpack.c.b16 %v813, %v812
        %v826 = vpack.c.b16 %v815, %v814
        %v827 = vpack.c.b16 %v817, %v816
        %v828 = vpack.c.b16 %v819, %v818
        %v829 = vpack.c.b16 %v821, %v820
        %838 = vmatprep.subr.bf16.mxu0 0
        %839 = vmatpush1.bf16.msra.mxu0 %v822
        %840 = vmatprep.subr.bf16.mxu0 0
        %841 = vmatpush1.bf16.msra.mxu0 %v823
        %842 = vmatprep.subr.bf16.mxu0 0
        %843 = vmatpush1.bf16.msra.mxu0 %v824
        %844 = vmatprep.subr.bf16.mxu0 0
        %845 = vmatpush1.bf16.msra.mxu0 %v825
        %846 = vmatprep.subr.bf16.mxu0 0
        %847 = vmatpush1.bf16.msra.mxu0 %v826
        %848 = vmatprep.subr.bf16.mxu0 0
        %849 = vmatpush1.bf16.msra.mxu0 %v827
        %850 = vmatprep.subr.bf16.mxu0 0
        %851 = vmatpush1.bf16.msra.mxu0 %v828
        %852 = vmatprep.subr.bf16.mxu0 0
        %853 = vmatpush1.bf16.msra.mxu0 %v829
        %854 = vmatprep.subr.bf16.mxu0 0
        %855 = vmatpush1.bf16.msra.mxu0 0
        %856 = vmatprep.subr.bf16.mxu0 0
        %857 = vmatpush1.bf16.msra.mxu0 0
        %858 = vmatprep.subr.bf16.mxu0 0
        %859 = vmatpush1.bf16.msra.mxu0 0
        %860 = vmatprep.subr.bf16.mxu0 0
        %861 = vmatpush1.bf16.msra.mxu0 0
        %862 = vmatprep.subr.bf16.mxu0 0
        %863 = vmatpush1.bf16.msra.mxu0 0
        %864 = vmatprep.subr.bf16.mxu0 0
        %865 = vmatpush1.bf16.msra.mxu0 0
        %866 = vmatprep.subr.bf16.mxu0 0
        %867 = vmatpush1.bf16.msra.mxu0 0
        %868 = vmatprep.subr.bf16.mxu0 0
        %869 = vmatpush1.bf16.msra.mxu0 0
        %870 = vmatprep.mubr.bf16.mxu0 0
        %871 = vmatmul.mubr.bf16.gmra.mrb[0].mxu0 %v788
        %v872 = vpop.f32.mrb[0].mxu0
        %v873 = vadd.f32 0.0, %v872
        %v874 = vpop.f32.mrb[0].mxu0
        %v875 = vpop.f32.mrb[0].mxu0
        %v876 = vpop.f32.mrb[0].mxu0
        %877 = vdwg.mxu0
        %v878 = vadd.f32 %v761, %v873
        %s879 = scalar_lea.vmem %s195, 4
        %v880 = vld [vmem:[%s879] sm:$0x1]
        %s881 = scalar_lea.vmem %s1, 384
        %v882 = vld [vmem:[%s881] sm:$0xf]
        %v883 = vld [vmem:[%s881 + $0x4] sm:$0xf]
        %v884 = vld [vmem:[%s881 + $0x8] sm:$0xf]
        %v885 = vld [vmem:[%s881 + $0xc] sm:$0xf]
        %v886 = vld [vmem:[%s881 + $0x10] sm:$0xf]
        %v887 = vld [vmem:[%s881 + $0x14] sm:$0xf]
        %v888 = vld [vmem:[%s881 + $0x18] sm:$0xf]
        %v889 = vld [vmem:[%s881 + $0x1c] sm:$0xf]
        %v890 = vld [vmem:[%s881 + $0x20] sm:$0xf]
        %v891 = vld [vmem:[%s881 + $0x24] sm:$0xf]
        %v892 = vld [vmem:[%s881 + $0x28] sm:$0xf]
        %v893 = vld [vmem:[%s881 + $0x2c] sm:$0xf]
        %v894 = vld [vmem:[%s881 + $0x30] sm:$0xf]
        %v895 = vld [vmem:[%s881 + $0x34] sm:$0xf]
        %v896 = vld [vmem:[%s881 + $0x38] sm:$0xf]
        %v897 = vld [vmem:[%s881 + $0x3c] sm:$0xf]
        %v914 = vunpack.c.l.b16 %v882
        %v915 = vunpack.c.l.b16 %v883
        %v916 = vunpack.c.l.b16 %v884
        %v917 = vunpack.c.l.b16 %v885
        %v918 = vunpack.c.l.b16 %v886
        %v919 = vunpack.c.l.b16 %v887
        %v920 = vunpack.c.l.b16 %v888
        %v921 = vunpack.c.l.b16 %v889
        %v922 = vunpack.c.l.b16 %v890
        %v923 = vunpack.c.l.b16 %v891
        %v924 = vunpack.c.l.b16 %v892
        %v925 = vunpack.c.l.b16 %v893
        %v926 = vunpack.c.l.b16 %v894
        %v927 = vunpack.c.l.b16 %v895
        %v928 = vunpack.c.l.b16 %v896
        %v929 = vunpack.c.l.b16 %v897
        %v930 = vpack.c.b16 %v915, %v914
        %v931 = vpack.c.b16 %v917, %v916
        %v932 = vpack.c.b16 %v919, %v918
        %v933 = vpack.c.b16 %v921, %v920
        %v934 = vpack.c.b16 %v923, %v922
        %v935 = vpack.c.b16 %v925, %v924
        %v936 = vpack.c.b16 %v927, %v926
        %v937 = vpack.c.b16 %v929, %v928
        %946 = vmatprep.subr.bf16.mxu0 0
        %947 = vmatpush1.bf16.msra.mxu0 %v930
        %948 = vmatprep.subr.bf16.mxu0 0
        %949 = vmatpush1.bf16.msra.mxu0 %v931
        %950 = vmatprep.subr.bf16.mxu0 0
        %951 = vmatpush1.bf16.msra.mxu0 %v932
        %952 = vmatprep.subr.bf16.mxu0 0
        %953 = vmatpush1.bf16.msra.mxu0 %v933
        %954 = vmatprep.subr.bf16.mxu0 0
        %955 = vmatpush1.bf16.msra.mxu0 %v934
        %956 = vmatprep.subr.bf16.mxu0 0
        %957 = vmatpush1.bf16.msra.mxu0 %v935
        %958 = vmatprep.subr.bf16.mxu0 0
        %959 = vmatpush1.bf16.msra.mxu0 %v936
        %960 = vmatprep.subr.bf16.mxu0 0
        %961 = vmatpush1.bf16.msra.mxu0 %v937
        %962 = vmatprep.subr.bf16.mxu0 0
        %963 = vmatpush1.bf16.msra.mxu0 0
        %964 = vmatprep.subr.bf16.mxu0 0
        %965 = vmatpush1.bf16.msra.mxu0 0
        %966 = vmatprep.subr.bf16.mxu0 0
        %967 = vmatpush1.bf16.msra.mxu0 0
        %968 = vmatprep.subr.bf16.mxu0 0
        %969 = vmatpush1.bf16.msra.mxu0 0
        %970 = vmatprep.subr.bf16.mxu0 0
        %971 = vmatpush1.bf16.msra.mxu0 0
        %972 = vmatprep.subr.bf16.mxu0 0
        %973 = vmatpush1.bf16.msra.mxu0 0
        %974 = vmatprep.subr.bf16.mxu0 0
        %975 = vmatpush1.bf16.msra.mxu0 0
        %976 = vmatprep.subr.bf16.mxu0 0
        %977 = vmatpush1.bf16.msra.mxu0 0
        %978 = vmatprep.mubr.bf16.mxu0 0
        %979 = vmatmul.mubr.bf16.gmra.mrb[0].mxu0 %v880
        %v980 = vpop.f32.mrb[0].mxu0
        %v981 = vadd.f32 0.0, %v980
        %v982 = vpop.f32.mrb[0].mxu0
        %v983 = vpop.f32.mrb[0].mxu0
        %v984 = vpop.f32.mrb[0].mxu0
        %985 = vdwg.mxu0
        %v986 = vadd.f32 %v878, %v981
        %s987 = scalar_lea.vmem %s1, 448
        %v988 = vld [vmem:[%s987] sm:$0xf]
        %v989 = vld [vmem:[%s987 + $0x4] sm:$0xf]
        %v990 = vld [vmem:[%s987 + $0x8] sm:$0xf]
        %v991 = vld [vmem:[%s987 + $0xc] sm:$0xf]
        %v992 = vld [vmem:[%s987 + $0x10] sm:$0xf]
        %v993 = vld [vmem:[%s987 + $0x14] sm:$0xf]
        %v994 = vld [vmem:[%s987 + $0x18] sm:$0xf]
        %v995 = vld [vmem:[%s987 + $0x1c] sm:$0xf]
        %v996 = vld [vmem:[%s987 + $0x20] sm:$0xf]
        %v997 = vld [vmem:[%s987 + $0x24] sm:$0xf]
        %v998 = vld [vmem:[%s987 + $0x28] sm:$0xf]
        %v999 = vld [vmem:[%s987 + $0x2c] sm:$0xf]
        %v1000 = vld [vmem:[%s987 + $0x30] sm:$0xf]
        %v1001 = vld [vmem:[%s987 + $0x34] sm:$0xf]
        %v1002 = vld [vmem:[%s987 + $0x38] sm:$0xf]
        %v1003 = vld [vmem:[%s987 + $0x3c] sm:$0xf]
        %v1006 = vunpack.c.l.s4 1983009808
        %v1007 = vunpack.c.0.s8 %v1006
        %v1008 = vlaneseq
        %v1009 = vshrl.u32 %v1008, 7
        %v1010 = vsub.s32 %v1007, %v1009
        %v1011 = vrot.slane %v880, %v1010
        %v1013 = vshrl.u32 %v1011, 16
        %v1032 = vunpack.c.l.b16 %v988
        %v1033 = vunpack.c.l.b16 %v989
        %v1034 = vunpack.c.l.b16 %v990
        %v1035 = vunpack.c.l.b16 %v991
        %v1036 = vunpack.c.l.b16 %v992
        %v1037 = vunpack.c.l.b16 %v993
        %v1038 = vunpack.c.l.b16 %v994
        %v1039 = vunpack.c.l.b16 %v995
        %v1040 = vunpack.c.l.b16 %v996
        %v1041 = vunpack.c.l.b16 %v997
        %v1042 = vunpack.c.l.b16 %v998
        %v1043 = vunpack.c.l.b16 %v999
        %v1044 = vunpack.c.l.b16 %v1000
        %v1045 = vunpack.c.l.b16 %v1001
        %v1046 = vunpack.c.l.b16 %v1002
        %v1047 = vunpack.c.l.b16 %v1003
        %v1048 = vpack.c.b16 %v1033, %v1032
        %v1049 = vpack.c.b16 %v1035, %v1034
        %v1050 = vpack.c.b16 %v1037, %v1036
        %v1051 = vpack.c.b16 %v1039, %v1038
        %v1052 = vpack.c.b16 %v1041, %v1040
        %v1053 = vpack.c.b16 %v1043, %v1042
        %v1054 = vpack.c.b16 %v1045, %v1044
        %v1055 = vpack.c.b16 %v1047, %v1046
        %1064 = vmatprep.subr.bf16.mxu0 0
        %1065 = vmatpush1.bf16.msra.mxu0 %v1048
        %1066 = vmatprep.subr.bf16.mxu0 0
        %1067 = vmatpush1.bf16.msra.mxu0 %v1049
        %1068 = vmatprep.subr.bf16.mxu0 0
        %1069 = vmatpush1.bf16.msra.mxu0 %v1050
        %1070 = vmatprep.subr.bf16.mxu0 0
        %1071 = vmatpush1.bf16.msra.mxu0 %v1051
        %1072 = vmatprep.subr.bf16.mxu0 0
        %1073 = vmatpush1.bf16.msra.mxu0 %v1052
        %1074 = vmatprep.subr.bf16.mxu0 0
        %1075 = vmatpush1.bf16.msra.mxu0 %v1053
        %1076 = vmatprep.subr.bf16.mxu0 0
        %1077 = vmatpush1.bf16.msra.mxu0 %v1054
        %1078 = vmatprep.subr.bf16.mxu0 0
        %1079 = vmatpush1.bf16.msra.mxu0 %v1055
        %1080 = vmatprep.subr.bf16.mxu0 0
        %1081 = vmatpush1.bf16.msra.mxu0 0
        %1082 = vmatprep.subr.bf16.mxu0 0
        %1083 = vmatpush1.bf16.msra.mxu0 0
        %1084 = vmatprep.subr.bf16.mxu0 0
        %1085 = vmatpush1.bf16.msra.mxu0 0
        %1086 = vmatprep.subr.bf16.mxu0 0
        %1087 = vmatpush1.bf16.msra.mxu0 0
        %1088 = vmatprep.subr.bf16.mxu0 0
        %1089 = vmatpush1.bf16.msra.mxu0 0
        %1090 = vmatprep.subr.bf16.mxu0 0
        %1091 = vmatpush1.bf16.msra.mxu0 0
        %1092 = vmatprep.subr.bf16.mxu0 0
        %1093 = vmatpush1.bf16.msra.mxu0 0
        %1094 = vmatprep.subr.bf16.mxu0 0
        %1095 = vmatpush1.bf16.msra.mxu0 0
        %1096 = vmatprep.mubr.bf16.mxu0 0
        %1097 = vmatmul.mubr.bf16.gmra.mrb[0].mxu0 %v1013
        %v1098 = vpop.f32.mrb[0].mxu0
        %v1099 = vadd.f32 0.0, %v1098
        %v1100 = vpop.f32.mrb[0].mxu0
        %v1101 = vpop.f32.mrb[0].mxu0
        %v1102 = vpop.f32.mrb[0].mxu0
        %1103 = vdwg.mxu0
        %v1104 = vadd.f32 %v986, %v1099
        %v1105 = vld [vmem:[%s879] sm:$0x2]
        %s1106 = scalar_lea.vmem %s1, 512
        %v1107 = vld [vmem:[%s1106] sm:$0xf]
        %v1108 = vld [vmem:[%s1106 + $0x4] sm:$0xf]
        %v1109 = vld [vmem:[%s1106 + $0x8] sm:$0xf]
        %v1110 = vld [vmem:[%s1106 + $0xc] sm:$0xf]
        %v1111 = vld [vmem:[%s1106 + $0x10] sm:$0xf]
        %v1112 = vld [vmem:[%s1106 + $0x14] sm:$0xf]
        %v1113 = vld [vmem:[%s1106 + $0x18] sm:$0xf]
        %v1114 = vld [vmem:[%s1106 + $0x1c] sm:$0xf]
        %v1115 = vld [vmem:[%s1106 + $0x20] sm:$0xf]
        %v1116 = vld [vmem:[%s1106 + $0x24] sm:$0xf]
        %v1117 = vld [vmem:[%s1106 + $0x28] sm:$0xf]
        %v1118 = vld [vmem:[%s1106 + $0x2c] sm:$0xf]
        %v1119 = vld [vmem:[%s1106 + $0x30] sm:$0xf]
        %v1120 = vld [vmem:[%s1106 + $0x34] sm:$0xf]
        %v1121 = vld [vmem:[%s1106 + $0x38] sm:$0xf]
        %v1122 = vld [vmem:[%s1106 + $0x3c] sm:$0xf]
        %v1125 = vunpack.c.l.s4 1983009808
        %v1126 = vunpack.c.0.s8 %v1125
        %v1127 = vlaneseq
        %v1128 = vshrl.u32 %v1127, 7
        %v1129 = vsub.s32 %v1126, %v1128
        %v1130 = vrot.slane %v1105, %v1129
        %v1131 = vrot.slane %v1130, 1
        %v1149 = vunpack.c.l.b16 %v1107
        %v1150 = vunpack.c.l.b16 %v1108
        %v1151 = vunpack.c.l.b16 %v1109
        %v1152 = vunpack.c.l.b16 %v1110
        %v1153 = vunpack.c.l.b16 %v1111
        %v1154 = vunpack.c.l.b16 %v1112
        %v1155 = vunpack.c.l.b16 %v1113
        %v1156 = vunpack.c.l.b16 %v1114
        %v1157 = vunpack.c.l.b16 %v1115
        %v1158 = vunpack.c.l.b16 %v1116
        %v1159 = vunpack.c.l.b16 %v1117
        %v1160 = vunpack.c.l.b16 %v1118
        %v1161 = vunpack.c.l.b16 %v1119
        %v1162 = vunpack.c.l.b16 %v1120
        %v1163 = vunpack.c.l.b16 %v1121
        %v1164 = vunpack.c.l.b16 %v1122
        %v1165 = vpack.c.b16 %v1150, %v1149
        %v1166 = vpack.c.b16 %v1152, %v1151
        %v1167 = vpack.c.b16 %v1154, %v1153
        %v1168 = vpack.c.b16 %v1156, %v1155
        %v1169 = vpack.c.b16 %v1158, %v1157
        %v1170 = vpack.c.b16 %v1160, %v1159
        %v1171 = vpack.c.b16 %v1162, %v1161
        %v1172 = vpack.c.b16 %v1164, %v1163
        %1181 = vmatprep.subr.bf16.mxu0 0
        %1182 = vmatpush1.bf16.msra.mxu0 %v1165
        %1183 = vmatprep.subr.bf16.mxu0 0
        %1184 = vmatpush1.bf16.msra.mxu0 %v1166
        %1185 = vmatprep.subr.bf16.mxu0 0
        %1186 = vmatpush1.bf16.msra.mxu0 %v1167
        %1187 = vmatprep.subr.bf16.mxu0 0
        %1188 = vmatpush1.bf16.msra.mxu0 %v1168
        %1189 = vmatprep.subr.bf16.mxu0 0
        %1190 = vmatpush1.bf16.msra.mxu0 %v1169
        %1191 = vmatprep.subr.bf16.mxu0 0
        %1192 = vmatpush1.bf16.msra.mxu0 %v1170
        %1193 = vmatprep.subr.bf16.mxu0 0
        %1194 = vmatpush1.bf16.msra.mxu0 %v1171
        %1195 = vmatprep.subr.bf16.mxu0 0
        %1196 = vmatpush1.bf16.msra.mxu0 %v1172
        %1197 = vmatprep.subr.bf16.mxu0 0
        %1198 = vmatpush1.bf16.msra.mxu0 0
        %1199 = vmatprep.subr.bf16.mxu0 0
        %1200 = vmatpush1.bf16.msra.mxu0 0
        %1201 = vmatprep.subr.bf16.mxu0 0
        %1202 = vmatpush1.bf16.msra.mxu0 0
        %1203 = vmatprep.subr.bf16.mxu0 0
        %1204 = vmatpush1.bf16.msra.mxu0 0
        %1205 = vmatprep.subr.bf16.mxu0 0
        %1206 = vmatpush1.bf16.msra.mxu0 0
        %1207 = vmatprep.subr.bf16.mxu0 0
        %1208 = vmatpush1.bf16.msra.mxu0 0
        %1209 = vmatprep.subr.bf16.mxu0 0
        %1210 = vmatpush1.bf16.msra.mxu0 0
        %1211 = vmatprep.subr.bf16.mxu0 0
        %1212 = vmatpush1.bf16.msra.mxu0 0
        %1213 = vmatprep.mubr.bf16.mxu0 0
        %1214 = vmatmul.mubr.bf16.gmra.mrb[0].mxu0 %v1131
        %v1215 = vpop.f32.mrb[0].mxu0
        %v1216 = vadd.f32 0.0, %v1215
        %v1217 = vpop.f32.mrb[0].mxu0
        %v1218 = vpop.f32.mrb[0].mxu0
        %v1219 = vpop.f32.mrb[0].mxu0
        %1220 = vdwg.mxu0
        %v1221 = vadd.f32 %v1104, %v1216
        %v1222 = vld [vmem:[%s2] sm:$0x1]
        %v1223 = vadd.f32 %v1221, %v1222
        %vm1224 = vcmask 516096
        %1225 = vst.msk [vmem:[%s186] sm:$0x1] %vm1224, %v1223
        %s1226 = sand.u32 %s109, 1
        %s1227 = scalar_lea.sflag [#allocation3], %s1226
        %s1228 = sand.u32 %s109, 1
        %s1229 = scalar_lea.vmem [#allocation2], %s1228
        // Predicated region
        $region33: #{rgb_encoder_forward.7} parent=31 // pred_check
          %p1230 = pneg %p119
        $region34: #{rgb_encoder_forward.7} parent=31 // pred_check_branch
          %1232 = sbr.rel (%p1230) target = $region36
        $region35: #{rgb_encoder_forward.7} parent=31 // pred_region
          %s1234 = ssub.s32 16, 16
          %1235 = vsyncadd %s1227, %s1234
          %s1236 = sadd.s32 %s22, %s21
          %s1237 = smul.addr %s1236, 16
          %s1238 = scalar_lea.hbm %s3, %s1237
          %s1240 = sshll.u32 %s1229, 4
          %s1241 = int_to_ptr.vmem [resolvable:$true] %s1240
          %1243 = dma.vmem_to_hbm [thread:$0]  %s1241, 16, %s1238, %s1227
        $region36: #{rgb_encoder_forward.7} parent=31 // pred_fallthru
          _
      $region32: #{rgb_encoder_forward.7} parent=5 // pred_fallthru
        _
      %p1244 = scmp.le.s32.totalorder 2, %s12
      // Predicated region
      $region37: #{rgb_encoder_forward.7} parent=5 // pred_check
        %p1245 = pneg %p1244
      $region38: #{rgb_encoder_forward.7} parent=5 // pred_check_branch
        %1247 = sbr.rel (%p1245) target = $region40
      $region39: #{rgb_encoder_forward.7} parent=5 // pred_region
        %s1248 = ssub.s32 %s12, 2
        // Predicated region
        $region41: #{rgb_encoder_forward.7} parent=39 // pred_check
          %p1249 = pneg %p125
        $region42: #{rgb_encoder_forward.7} parent=39 // pred_check_branch
          %1251 = sbr.rel (%p1249) target = $region44
        $region43: #{rgb_encoder_forward.7} parent=39 // pred_region
          %s1252 = sand.u32 %s110, 1
          %s1253 = scalar_lea.sflag [#allocation3], %s1252
          %s1254 = sand.u32 %s110, 1
          %s1255 = scalar_lea.vmem [#allocation2], %s1254
          %1256 = dma.done %s1253, 16
        $region44: #{rgb_encoder_forward.7} parent=39 // pred_fallthru
          _
      $region40: #{rgb_encoder_forward.7} parent=5 // pred_fallthru
        _
    $region6: #{rgb_encoder_forward.7} parent=1 // loop_footer
      %s16 = sadd.s32 1, %s12
    $region7: #{rgb_encoder_forward.7} parent=1 // loop_footer_branch
      %11 = sbr.rel target = $region3
    $region8: #{rgb_encoder_forward.7} parent=1 // loop_exit
      _
    %1257 = vsyncpa [#allocation3], 1
    %s1258 = scalar_lea.sflag [#allocation3], 1
    %1259 = vsyncpa %s1258, 1

</llo_original>
